<compile_context>
chip_gen: v5e
topology: v5e:2x2
jax: 0.10.0
libtpu: 0.0.40
codegen_flags: <defaults>
</compile_context>

<pallas_src>
import functools

import jax
import jax.numpy as jnp
from jax import lax
from jax.experimental import pallas as pl
from jax.experimental.pallas import tpu as pltpu

_GROUPS = 2
_EPS = 1e-5
_SLOPE = 0.2


# -----------------------------------------------------------------------------
# In-kernel helpers
# -----------------------------------------------------------------------------
def _gn_lrelu(y, gamma, beta):
    """GroupNorm(2) over a (N, C) tile (N = all spatial positions of ONE sample)
    followed by LeakyReLU(0.2).  Column sums + tiny per-group lane-masked
    reductions; no per-group slice/concat relayouts."""
    n, c = y.shape
    cpg = c // _GROUPS
    cnt = float(n * cpg)
    col = lax.broadcasted_iota(jnp.int32, (1, c), 1)

    col_sum = jnp.sum(y, axis=0, keepdims=True)                    # (1, C)
    mu = jnp.zeros((1, c), jnp.float32)
    for g in range(_GROUPS):
        msk = jnp.logical_and(col >= g * cpg, col < (g + 1) * cpg)
        mu = jnp.where(msk, jnp.sum(jnp.where(msk, col_sum, 0.0)) / cnt, mu)

    d = y - mu
    col_ss = jnp.sum(d * d, axis=0, keepdims=True)                 # (1, C)
    var = jnp.zeros((1, c), jnp.float32)
    for g in range(_GROUPS):
        msk = jnp.logical_and(col >= g * cpg, col < (g + 1) * cpg)
        var = jnp.where(msk, jnp.sum(jnp.where(msk, col_ss, 0.0)) / cnt, var)

    yn = d * lax.rsqrt(var + _EPS) * gamma + beta
    return jnp.where(yn > 0, yn, _SLOPE * yn)


# -----------------------------------------------------------------------------
# The fused decoder kernel (one grid step == one batch sample)
# -----------------------------------------------------------------------------
def _decoder_kernel(c_in, hid_ref, skip0_ref, skip1p_ref,
                    w3_ref, p3_ref, w2_ref, p2_ref, w1_ref, p1_ref,
                    wr_ref, br_ref, out_ref, pad3_s, pad2_s, pad1_s):
    f32 = jnp.float32
    _, h, w, c2 = hid_ref.shape                 # (1, H, W, 2*C_hid)
    ch = c2 // 2                                # C_hid
    hw = h * w

    # ---- dec3: 3x3 conv (s=1, p=1) + GN(2) + LeakyReLU ----------------------
    pad3_s[...] = jnp.zeros(pad3_s.shape, pad3_s.dtype)
    pad3_s[1:h + 1, 1:w + 1, :] = hid_ref[0]
    taps3 = [pad3_s[ky:ky + h, kx:kx + w, :].reshape(hw, c2)
             for ky in range(3) for kx in range(3)]
    acc3 = jnp.dot(jnp.concatenate(taps3, axis=-1), w3_ref[...],
                   preferred_element_type=f32) + p3_ref[0:1, :]
    dec3 = _gn_lrelu(acc3, p3_ref[1:2, :], p3_ref[2:3, :])          # (HW, 2C)

    # ---- dec2: ConvTranspose2d(k3, s2, p1, op1) + GN + LeakyReLU ------------
    # Sub-pixel decomposition: output pixel (2m+py, 2n+px) == phase (py, px).
    cat2 = jnp.concatenate([dec3.reshape(h, w, c2), skip0_ref[0]], axis=-1)
    ci2 = 2 * c2
    pad2_s[...] = jnp.zeros(pad2_s.shape, pad2_s.dtype)
    pad2_s[0:h, 0:w, :] = cat2                  # zero border on bottom/right
    t00 = cat2.reshape(hw, ci2)
    t01 = pad2_s[0:h, 1:w + 1, :].reshape(hw, ci2)
    t10 = pad2_s[1:h + 1, 0:w, :].reshape(hw, ci2)
    t11 = pad2_s[1:h + 1, 1:w + 1, :].reshape(hw, ci2)
    ph = [
        jnp.dot(t00, w2_ref[0:ci2, :], preferred_element_type=f32),
        jnp.dot(jnp.concatenate([t00, t01], axis=-1),
                w2_ref[ci2:3 * ci2, :], preferred_element_type=f32),
        jnp.dot(jnp.concatenate([t00, t10], axis=-1),
                w2_ref[3 * ci2:5 * ci2, :], preferred_element_type=f32),
        jnp.dot(jnp.concatenate([t00, t01, t10, t11], axis=-1),
                w2_ref[5 * ci2:9 * ci2, :], preferred_element_type=f32),
    ]
    y2 = jnp.concatenate(ph, axis=0) + p2_ref[0:1, :]               # (4HW, Ch)
    y2 = _gn_lrelu(y2, p2_ref[1:2, :], p2_ref[2:3, :])

    # ---- dec1: 3x3 conv on cat([dec2, skip1]) + GN + LeakyReLU --------------
    # Stay phase-separated: per input phase k = py*2+px, store
    # (dec2_phase | skip1_phase) into a zero-bordered VMEM tile, then gather
    # the 9 conv taps phase-aware (no strided interleave anywhere).
    cc = 2 * ch
    pad1_s[...] = jnp.zeros(pad1_s.shape, pad1_s.dtype)
    for k in range(4):
        blk = jnp.concatenate(
            [y2[k * hw:(k + 1) * hw, :].reshape(h, w, ch),
             skip1p_ref[0, k * h:(k + 1) * h, :, :]], axis=-1)
        pad1_s[k, 1:h + 1, 1:w + 1, :] = blk

    # Only 16 distinct shifted taps exist across the 4 output phases; slice
    # each one exactly once (was 36 slice materializations before).
    tap = {}
    for ty in range(-1, 3):
        for tx in range(-1, 3):
            kin = (ty % 2) * 2 + (tx % 2)
            dy, dx = ty // 2, tx // 2            # floor div (can be -1)
            tap[(ty, tx)] = pad1_s[kin, 1 + dy:1 + dy + h,
                                   1 + dx:1 + dx + w, :].reshape(hw, cc)

    # One big im2col matmul for all 4 output phases: the shared weight is
    # pushed to the MXU once and M is 4x larger (better MXU utilization).
    patches = []
    for qy in range(2):
        for qx in range(2):
            patches.append(jnp.concatenate(
                [tap[(qy + ky - 1, qx + kx - 1)]
                 for ky in range(3) for kx in range(3)], axis=-1))
    y1 = jnp.dot(jnp.concatenate(patches, axis=0), w1_ref[...],
                 preferred_element_type=f32) + p1_ref[0:1, :]       # (4HW, Ch)
    y1 = _gn_lrelu(y1, p1_ref[1:2, :], p1_ref[2:3, :])

    # ---- fused 1x1 readouts (+ sigmoid on the mask column) ------------------
    r = jnp.dot(y1, wr_ref[...], preferred_element_type=f32) + br_ref[...]
    colr = lax.broadcasted_iota(jnp.int32, r.shape, 1)
    r = jnp.where(colr == c_in, jax.nn.sigmoid(r), r)
    out_ref[0] = r.astype(out_ref.dtype)        # rows ordered (qy, qx, m, n)


def _decoder_pallas(params, hid, skip0, skip1_ph, c_in):
    b, h, w, c2 = hid.shape
    ch = c2 // 2
    ro_pad = params["wr"].shape[1]
    kernel = functools.partial(_decoder_kernel, c_in)
    return pl.pallas_call(
        kernel,
        out_shape=jax.ShapeDtypeStruct((b, 4 * h * w, ro_pad), jnp.float32),
        grid=(b,),
        in_specs=[
            pl.BlockSpec((1, h, w, c2), lambda i: (i, 0, 0, 0)),        # hid
            pl.BlockSpec((1, h, w, c2), lambda i: (i, 0, 0, 0)),        # skip0
            pl.BlockSpec((1, 4 * h, w, ch), lambda i: (i, 0, 0, 0)),    # skip1 phases
            pl.BlockSpec((9 * c2, c2), lambda i: (0, 0)),               # w3
            pl.BlockSpec((3, c2), lambda i: (0, 0)),                    # bias/gamma/beta
            pl.BlockSpec((18 * c2, ch), lambda i: (0, 0)),              # w2 (phase-packed)
            pl.BlockSpec((3, ch), lambda i: (0, 0)),
            pl.BlockSpec((9 * c2, ch), lambda i: (0, 0)),               # w1
            pl.BlockSpec((3, ch), lambda i: (0, 0)),
            pl.BlockSpec((ch, ro_pad), lambda i: (0, 0)),               # fused readout W
            pl.BlockSpec((1, ro_pad), lambda i: (0, 0)),                # fused readout b
        ],
        out_specs=pl.BlockSpec((1, 4 * h * w, ro_pad), lambda i: (i, 0, 0)),
        scratch_shapes=[
            pltpu.VMEM((h + 2, w + 2, c2), jnp.float32),                # dec3 halo
            pltpu.VMEM((h + 1, w + 1, 2 * c2), jnp.float32),            # dec2 halo
            pltpu.VMEM((4, h + 2, w + 2, 2 * ch), jnp.float32),         # dec1 phase halos
        ],
        compiler_params=pltpu.CompilerParams(
            dimension_semantics=("parallel",),          # shard batch over v7x cores
            vmem_limit_bytes=32 * 1024 * 1024),
    )(hid, skip0, skip1_ph,
      params["w3"], params["p3"], params["w2"], params["p2"],
      params["w1"], params["p1"], params["wr"], params["br"])


# -----------------------------------------------------------------------------
# Public forward (NCHW in / NCHW out, matching the PyTorch module)
# -----------------------------------------------------------------------------
@functools.partial(jax.jit, static_argnames=("c_in",))
def decoder_shallow_forward(params, hid_nchw, skip0_nchw, skip1_nchw, *, c_in):
    b = hid_nchw.shape[0]
    ch = skip1_nchw.shape[1]
    hh, ww = skip1_nchw.shape[2] // 2, skip1_nchw.shape[3] // 2

    # NCHW -> NHWC once per input (tiny); everything else stays inside the kernel.
    hid = jnp.transpose(hid_nchw, (0, 2, 3, 1))
    skip0 = jnp.transpose(skip0_nchw, (0, 2, 3, 1))
    # skip1: NCHW -> sub-pixel phases ((py,px,m), n, c) in a single transpose.
    skip1_ph = jnp.transpose(
        skip1_nchw.reshape(b, ch, hh, 2, ww, 2), (0, 3, 5, 2, 4, 1)
    ).reshape(b, 4 * hh, ww, ch)

    out = _decoder_pallas(params, hid, skip0, skip1_ph, c_in)
    ro_pad = out.shape[-1]
    # rows are (qy, qx, m, n); one small XLA transpose de-phases to NCHW.
    img = jnp.transpose(out.reshape(b, 2, 2, hh, ww, ro_pad),
                        (0, 5, 3, 1, 4, 2)).reshape(b, ro_pad, 2 * hh, 2 * ww)
    return img[:, :c_in], img[:, c_in:c_in + 1]


# -----------------------------------------------------------------------------
# Parameters: synthetic torch-layout weights + host-side packing for the kernel
# -----------------------------------------------------------------------------
def init_torch_params(key, c_in, c_hid):
    c2 = 2 * c_hid
    ks = jax.random.split(key, 16)
    n = lambda k, s: 0.1 * jax.random.normal(k, s, jnp.float32)
    return {
        # dec3: Conv2d(2C, 2C, 3, s=1, p=1) + GroupNorm(2) + LeakyReLU(0.2)
        "w3": n(ks[0], (c2, c2, 3, 3)), "b3": n(ks[1], (c2,)),
        "g3": 1.0 + n(ks[2], (c2,)), "bt3": n(ks[3], (c2,)),
        # dec2: ConvTranspose2d(4C, C, 3, s=2, p=1, op=1) + GN(2) + LReLU
        "w2": n(ks[4], (2 * c2, c_hid, 3, 3)), "b2": n(ks[5], (c_hid,)),
        "g2": 1.0 + n(ks[6], (c_hid,)), "bt2": n(ks[7], (c_hid,)),
        # dec1: Conv2d(2C, C, 3, s=1, p=1) + GN(2) + LReLU
        "w1": n(ks[8], (c_hid, c2, 3, 3)), "b1": n(ks[9], (c_hid,)),
        "g1": 1.0 + n(ks[10], (c_hid,)), "bt1": n(ks[11], (c_hid,)),
        # readout_f: Conv2d(C, C_in, 1);  readout_m: Conv2d(C, 1, 1)
        "wf": n(ks[12], (c_in, c_hid, 1, 1)), "bf": n(ks[13], (c_in,)),
        "wm": n(ks[14], (1, c_hid, 1, 1)), "bm": n(ks[15], (1,)),
    }


def pack_params(tp):
    """Torch layouts -> kernel layouts (im2col / sub-pixel-phase packed)."""
    def im2col(w_oihw):                         # (O, I, 3, 3) -> (9*I, O)
        return jnp.transpose(w_oihw, (2, 3, 1, 0)).reshape(-1, w_oihw.shape[0])

    wt = tp["w2"]                               # ConvTranspose2d: (C_in, C_out, 3, 3)
    w2 = jnp.concatenate([
        wt[:, :, 1, 1],                                            # phase (0,0)
        jnp.concatenate([wt[:, :, 1, 2], wt[:, :, 1, 0]], 0),      # phase (0,1)
        jnp.concatenate([wt[:, :, 2, 1], wt[:, :, 0, 1]], 0),      # phase (1,0)
        jnp.concatenate([wt[:, :, 2, 2], wt[:, :, 2, 0],
                         wt[:, :, 0, 2], wt[:, :, 0, 0]], 0),      # phase (1,1)
    ], axis=0)

    c_hid = tp["w1"].shape[0]
    c_in = tp["wf"].shape[0]
    ro_pad = ((c_in + 1 + 7) // 8) * 8
    wr = jnp.concatenate(
        [tp["wf"][:, :, 0, 0].T, tp["wm"][:, :, 0, 0].T,
         jnp.zeros((c_hid, ro_pad - c_in - 1), jnp.float32)], axis=1)
    br = jnp.concatenate(
        [tp["bf"], tp["bm"], jnp.zeros((ro_pad - c_in - 1,), jnp.float32)])
    return {
        "w3": im2col(tp["w3"]), "p3": jnp.stack([tp["b3"], tp["g3"], tp["bt3"]]),
        "w2": w2, "p2": jnp.stack([tp["b2"], tp["g2"], tp["bt2"]]),
        "w1": im2col(tp["w1"]), "p1": jnp.stack([tp["b1"], tp["g1"], tp["bt1"]]),
        "wr": wr, "br": br.reshape(1, -1),
    }


# -----------------------------------------------------------------------------
# Pure-JAX (XLA) reference of the PyTorch forward, for correctness checking
# -----------------------------------------------------------------------------
def reference_forward(tp, hid, skip0, skip1):
    def gn_lrelu(x, g, bt):
        b, c, hh, ww = x.shape
        xg = x.reshape(b, _GROUPS, c // _GROUPS, hh, ww)
        mu = jnp.mean(xg, axis=(2, 3, 4), keepdims=True)
        var = jnp.mean(jnp.square(xg - mu), axis=(2, 3, 4), keepdims=True)
        xn = ((xg - mu) * lax.rsqrt(var + _EPS)).reshape(b, c, hh, ww)
        xn = xn * g.reshape(1, -1, 1, 1) + bt.reshape(1, -1, 1, 1)
        return jnp.where(xn > 0, xn, _SLOPE * xn)

    def conv3(x, w_oihw, bias):
        y = lax.conv_general_dilated(x, w_oihw, (1, 1), ((1, 1), (1, 1)),
                                     dimension_numbers=("NCHW", "OIHW", "NCHW"))
        return y + bias.reshape(1, -1, 1, 1)

    def convT(x, w_iohw, bias):   # ConvTranspose2d(k=3, s=2, p=1, op=1)
        w_eq = jnp.transpose(w_iohw, (1, 0, 2, 3))[:, :, ::-1, ::-1]
        y = lax.conv_general_dilated(x, w_eq, (1, 1), ((1, 2), (1, 2)),
                                     lhs_dilation=(2, 2),
                                     dimension_numbers=("NCHW", "OIHW", "NCHW"))
        return y + bias.reshape(1, -1, 1, 1)

    dec3 = gn_lrelu(conv3(hid, tp["w3"], tp["b3"]), tp["g3"], tp["bt3"])
    dec2 = gn_lrelu(convT(jnp.concatenate([dec3, skip0], 1), tp["w2"], tp["b2"]),
                    tp["g2"], tp["bt2"])
    dec1 = gn_lrelu(conv3(jnp.concatenate([dec2, skip1], 1), tp["w1"], tp["b1"]),
                    tp["g1"], tp["bt1"])
    y_f = jnp.einsum("bchw,oc->bohw", dec1, tp["wf"][:, :, 0, 0]) \
        + tp["bf"].reshape(1, -1, 1, 1)
    mask = jax.nn.sigmoid(jnp.einsum("bchw,oc->bohw", dec1, tp["wm"][:, :, 0, 0])
                          + tp["bm"].reshape(1, -1, 1, 1))
    return y_f, mask


if __name__ == "__main__":
    B, C_in, C_hid, H, W = 2, 4, 8, 8, 8

    key = jax.random.PRNGKey(0)
    kp, k1, k2, k3 = jax.random.split(key, 4)
    torch_params = init_torch_params(kp, C_in, C_hid)
    params = pack_params(torch_params)

    hid = jax.random.normal(k1, (B, 2 * C_hid, H, W), jnp.float32)        # NCHW
    skip0 = jax.random.normal(k2, (B, 2 * C_hid, H, W), jnp.float32)      # NCHW
    skip1 = jax.random.normal(k3, (B, C_hid, 2 * H, 2 * W), jnp.float32)  # NCHW

    y_f, mask = decoder_shallow_forward(params, hid, skip0, skip1, c_in=C_in)
    jax.block_until_ready((y_f, mask))

    assert y_f.shape == (B, C_in, 2 * H, 2 * W), y_f.shape
    assert mask.shape == (B, 1, 2 * H, 2 * W), mask.shape

    # Cross-check the fused Pallas kernel against the pure-JAX reference.
    y_ref, m_ref = reference_forward(torch_params, hid, skip0, skip1)
    err = max(float(jnp.max(jnp.abs(y_f - y_ref))),
              float(jnp.max(jnp.abs(mask - m_ref))))
    assert err < 2e-3, f"mismatch vs reference: {err}"
    print("KERNEL_OK")
</pallas_src>

<mosaic_0001>
module attributes {stable_mosaic.version = 11 : i64} {
  func.func @_decoder_kernel(%arg0: i32, %arg1: memref<1x8x8x16xf32, #tpu.memory_space<vmem>>, %arg2: memref<1x8x8x16xf32, #tpu.memory_space<vmem>>, %arg3: memref<1x32x8x8xf32, #tpu.memory_space<vmem>>, %arg4: memref<144x16xf32, #tpu.memory_space<vmem>>, %arg5: memref<3x16xf32, #tpu.memory_space<vmem>>, %arg6: memref<288x8xf32, #tpu.memory_space<vmem>>, %arg7: memref<3x8xf32, #tpu.memory_space<vmem>>, %arg8: memref<144x8xf32, #tpu.memory_space<vmem>>, %arg9: memref<3x8xf32, #tpu.memory_space<vmem>>, %arg10: memref<8x8xf32, #tpu.memory_space<vmem>>, %arg11: memref<1x8xf32, #tpu.memory_space<vmem>>, %arg12: memref<1x256x8xf32, #tpu.memory_space<vmem>>, %arg13: memref<10x10x16xf32, #tpu.memory_space<vmem>>, %arg14: memref<9x9x32xf32, #tpu.memory_space<vmem>>, %arg15: memref<4x10x10x16xf32, #tpu.memory_space<vmem>>) attributes {dimension_semantics = [#tpu.dimension_semantics<parallel>], iteration_bounds = array<i64: 2>, scalar_prefetch = 0 : i64, scratch_operands = 3 : i64, tpu.core_type = #tpu.core_type<tc>, window_params = [{transform_indices = @transform_0, window_bounds = array<i64: 1, 8, 8, 16>}, {transform_indices = @transform_1, window_bounds = array<i64: 1, 8, 8, 16>}, {transform_indices = @transform_2, window_bounds = array<i64: 1, 32, 8, 8>}, {pipeline_mode = #tpu.pipeline_mode<synchronous>, transform_indices = @transform_3, window_bounds = array<i64: 144, 16>}, {pipeline_mode = #tpu.pipeline_mode<synchronous>, transform_indices = @transform_4, window_bounds = array<i64: 3, 16>}, {pipeline_mode = #tpu.pipeline_mode<synchronous>, transform_indices = @transform_5, window_bounds = array<i64: 288, 8>}, {pipeline_mode = #tpu.pipeline_mode<synchronous>, transform_indices = @transform_6, window_bounds = array<i64: 3, 8>}, {pipeline_mode = #tpu.pipeline_mode<synchronous>, transform_indices = @transform_7, window_bounds = array<i64: 144, 8>}, {pipeline_mode = #tpu.pipeline_mode<synchronous>, transform_indices = @transform_8, window_bounds = array<i64: 3, 8>}, {pipeline_mode = #tpu.pipeline_mode<synchronous>, transform_indices = @transform_9, window_bounds = array<i64: 8, 8>}, {pipeline_mode = #tpu.pipeline_mode<synchronous>, transform_indices = @transform_10, window_bounds = array<i64: 1, 8>}, {transform_indices = @transform_11, window_bounds = array<i64: 1, 256, 8>}]} {
    %cst = arith.constant 0.000000e+00 : f32
    %0 = vector.broadcast %cst : f32 to vector<10x10x16xf32>
    %c0 = arith.constant 0 : index
    %c0_0 = arith.constant 0 : index
    %c0_1 = arith.constant 0 : index
    %1 = vector.load %arg13[%c0, %c0_0, %c0_1] : memref<10x10x16xf32, #tpu.memory_space<vmem>>, vector<10x10x16xf32>
    tpu.vector_store %arg13[%c0, %c0_0, %c0_1], %0 {strides = array<i32>} : memref<10x10x16xf32, #tpu.memory_space<vmem>>, vector<10x10x16xf32>,
    %c0_2 = arith.constant 0 : index
    %c0_3 = arith.constant 0 : index
    %c0_4 = arith.constant 0 : index
    %c0_5 = arith.constant 0 : index
    %2 = vector.load %arg1[%c0_2, %c0_3, %c0_4, %c0_5] : memref<1x8x8x16xf32, #tpu.memory_space<vmem>>, vector<1x8x8x16xf32>
    %3 = vector.shape_cast %2 : vector<1x8x8x16xf32> to vector<8x8x16xf32>
    %c1 = arith.constant 1 : index
    %c1_6 = arith.constant 1 : index
    %c0_7 = arith.constant 0 : index
    %4 = vector.load %arg13[%c1, %c1_6, %c0_7] : memref<10x10x16xf32, #tpu.memory_space<vmem>>, vector<8x8x16xf32>
    tpu.vector_store %arg13[%c1, %c1_6, %c0_7], %3 {strides = array<i32>} : memref<10x10x16xf32, #tpu.memory_space<vmem>>, vector<8x8x16xf32>,
    %c0_8 = arith.constant 0 : index
    %c0_9 = arith.constant 0 : index
    %c0_10 = arith.constant 0 : index
    %5 = vector.load %arg13[%c0_8, %c0_9, %c0_10] : memref<10x10x16xf32, #tpu.memory_space<vmem>>, vector<8x8x16xf32>
    %6 = vector.shape_cast %5 : vector<8x8x16xf32> to vector<64x16xf32>
    %c0_11 = arith.constant 0 : index
    %c1_12 = arith.constant 1 : index
    %c0_13 = arith.constant 0 : index
    %7 = vector.load %arg13[%c0_11, %c1_12, %c0_13] : memref<10x10x16xf32, #tpu.memory_space<vmem>>, vector<8x8x16xf32>
    %8 = vector.shape_cast %7 : vector<8x8x16xf32> to vector<64x16xf32>
    %c0_14 = arith.constant 0 : index
    %c2 = arith.constant 2 : index
    %c0_15 = arith.constant 0 : index
    %9 = vector.load %arg13[%c0_14, %c2, %c0_15] : memref<10x10x16xf32, #tpu.memory_space<vmem>>, vector<8x8x16xf32>
    %10 = vector.shape_cast %9 : vector<8x8x16xf32> to vector<64x16xf32>
    %c1_16 = arith.constant 1 : index
    %c0_17 = arith.constant 0 : index
    %c0_18 = arith.constant 0 : index
    %11 = vector.load %arg13[%c1_16, %c0_17, %c0_18] : memref<10x10x16xf32, #tpu.memory_space<vmem>>, vector<8x8x16xf32>
    %12 = vector.shape_cast %11 : vector<8x8x16xf32> to vector<64x16xf32>
    %c1_19 = arith.constant 1 : index
    %c1_20 = arith.constant 1 : index
    %c0_21 = arith.constant 0 : index
    %13 = vector.load %arg13[%c1_19, %c1_20, %c0_21] : memref<10x10x16xf32, #tpu.memory_space<vmem>>, vector<8x8x16xf32>
    %14 = vector.shape_cast %13 : vector<8x8x16xf32> to vector<64x16xf32>
    %c1_22 = arith.constant 1 : index
    %c2_23 = arith.constant 2 : index
    %c0_24 = arith.constant 0 : index
    %15 = vector.load %arg13[%c1_22, %c2_23, %c0_24] : memref<10x10x16xf32, #tpu.memory_space<vmem>>, vector<8x8x16xf32>
    %16 = vector.shape_cast %15 : vector<8x8x16xf32> to vector<64x16xf32>
    %c2_25 = arith.constant 2 : index
    %c0_26 = arith.constant 0 : index
    %c0_27 = arith.constant 0 : index
    %17 = vector.load %arg13[%c2_25, %c0_26, %c0_27] : memref<10x10x16xf32, #tpu.memory_space<vmem>>, vector<8x8x16xf32>
    %18 = vector.shape_cast %17 : vector<8x8x16xf32> to vector<64x16xf32>
    %c2_28 = arith.constant 2 : index
    %c1_29 = arith.constant 1 : index
    %c0_30 = arith.constant 0 : index
    %19 = vector.load %arg13[%c2_28, %c1_29, %c0_30] : memref<10x10x16xf32, #tpu.memory_space<vmem>>, vector<8x8x16xf32>
    %20 = vector.shape_cast %19 : vector<8x8x16xf32> to vector<64x16xf32>
    %c2_31 = arith.constant 2 : index
    %c2_32 = arith.constant 2 : index
    %c0_33 = arith.constant 0 : index
    %21 = vector.load %arg13[%c2_31, %c2_32, %c0_33] : memref<10x10x16xf32, #tpu.memory_space<vmem>>, vector<8x8x16xf32>
    %22 = vector.shape_cast %21 : vector<8x8x16xf32> to vector<64x16xf32>
    %23 = tpu.concatenate %6, %8, %10, %12, %14, %16, %18, %20, %22 in 1 : vector<64x16xf32>, vector<64x16xf32>, vector<64x16xf32>, vector<64x16xf32>, vector<64x16xf32>, vector<64x16xf32>, vector<64x16xf32>, vector<64x16xf32>, vector<64x16xf32> -> vector<64x144xf32>
    %c0_34 = arith.constant 0 : index
    %c0_35 = arith.constant 0 : index
    %24 = vector.load %arg4[%c0_34, %c0_35] : memref<144x16xf32, #tpu.memory_space<vmem>>, vector<144x16xf32>
    %cst_36 = arith.constant dense<0.000000e+00> : vector<64x16xf32>
    %25 = tpu.matmul %23, %24, %cst_36 {dimension_numbers = #tpu.dot_dimension_numbers<[1], [0], [0], [1], [0, 0, 1, 1], [], []>} : vector<64x144xf32>, vector<144x16xf32>, vector<64x16xf32> -> vector<64x16xf32>
    %c0_37 = arith.constant 0 : index
    %c0_38 = arith.constant 0 : index
    %26 = vector.load %arg5[%c0_37, %c0_38] : memref<3x16xf32, #tpu.memory_space<vmem>>, vector<1x16xf32>
    %27 = vector.broadcast %26 : vector<1x16xf32> to vector<64x16xf32>
    %28 = arith.addf %25, %27 : vector<64x16xf32>
    %c1_39 = arith.constant 1 : index
    %c0_40 = arith.constant 0 : index
    %29 = vector.load %arg5[%c1_39, %c0_40] : memref<3x16xf32, #tpu.memory_space<vmem>>, vector<1x16xf32>
    %c2_41 = arith.constant 2 : index
    %c0_42 = arith.constant 0 : index
    %30 = vector.load %arg5[%c2_41, %c0_42] : memref<3x16xf32, #tpu.memory_space<vmem>>, vector<1x16xf32>
    %31 = tpu.iota {dimensions = array<i32: 1>} : vector<1x16xi32>
    %cst_43 = arith.constant dense<0.000000e+00> : vector<16xf32>
    %32 = vector.multi_reduction <add>, %28, %cst_43 [0] : vector<64x16xf32> to vector<16xf32>
    %33 = vector.shape_cast %32 : vector<16xf32> to vector<1x16xf32>
    %cst_44 = arith.constant 0.000000e+00 : f32
    %34 = vector.broadcast %cst_44 : f32 to vector<1x16xf32>
    %c0_i32 = arith.constant 0 : i32
    %35 = vector.broadcast %c0_i32 : i32 to vector<1x16xi32>
    %36 = arith.cmpi sge, %31, %35 : vector<1x16xi32>
    %c8_i32 = arith.constant 8 : i32
    %37 = vector.broadcast %c8_i32 : i32 to vector<1x16xi32>
    %38 = arith.cmpi slt, %31, %37 : vector<1x16xi32>
    %39 = arith.andi %36, %38 : vector<1x16xi1>
    %cst_45 = arith.constant 0.000000e+00 : f32
    %40 = vector.broadcast %cst_45 : f32 to vector<1x16xf32>
    %41 = arith.select %39, %33, %40 : vector<1x16xi1>, vector<1x16xf32>
    %42 = vector.shape_cast %41 : vector<1x16xf32> to vector<1x1x16xf32>
    %cst_46 = arith.constant dense<0.000000e+00> : vector<1xf32>
    %43 = vector.multi_reduction <add>, %42, %cst_46 [1, 2] : vector<1x1x16xf32> to vector<1xf32>
    %44 = vector.shape_cast %43 : vector<1xf32> to vector<1x1x1xf32>
    %45 = vector.extract %44[0, 0, 0] : f32 from vector<1x1x1xf32>
    %cst_47 = arith.constant 5.120000e+02 : f32
    %46 = arith.divf %45, %cst_47 : f32
    %47 = vector.broadcast %46 : f32 to vector<1x16xf32>
    %48 = arith.select %39, %47, %34 : vector<1x16xi1>, vector<1x16xf32>
    %c8_i32_48 = arith.constant 8 : i32
    %49 = vector.broadcast %c8_i32_48 : i32 to vector<1x16xi32>
    %50 = arith.cmpi sge, %31, %49 : vector<1x16xi32>
    %c16_i32 = arith.constant 16 : i32
    %51 = vector.broadcast %c16_i32 : i32 to vector<1x16xi32>
    %52 = arith.cmpi slt, %31, %51 : vector<1x16xi32>
    %53 = arith.andi %50, %52 : vector<1x16xi1>
    %cst_49 = arith.constant 0.000000e+00 : f32
    %54 = vector.broadcast %cst_49 : f32 to vector<1x16xf32>
    %55 = arith.select %53, %33, %54 : vector<1x16xi1>, vector<1x16xf32>
    %56 = vector.shape_cast %55 : vector<1x16xf32> to vector<1x1x16xf32>
    %cst_50 = arith.constant dense<0.000000e+00> : vector<1xf32>
    %57 = vector.multi_reduction <add>, %56, %cst_50 [1, 2] : vector<1x1x16xf32> to vector<1xf32>
    %58 = vector.shape_cast %57 : vector<1xf32> to vector<1x1x1xf32>
    %59 = vector.extract %58[0, 0, 0] : f32 from vector<1x1x1xf32>
    %cst_51 = arith.constant 5.120000e+02 : f32
    %60 = arith.divf %59, %cst_51 : f32
    %61 = vector.broadcast %60 : f32 to vector<1x16xf32>
    %62 = arith.select %53, %61, %48 : vector<1x16xi1>, vector<1x16xf32>
    %63 = vector.broadcast %62 : vector<1x16xf32> to vector<64x16xf32>
    %64 = arith.subf %28, %63 : vector<64x16xf32>
    %65 = arith.mulf %64, %64 : vector<64x16xf32>
    %cst_52 = arith.constant dense<0.000000e+00> : vector<16xf32>
    %66 = vector.multi_reduction <add>, %65, %cst_52 [0] : vector<64x16xf32> to vector<16xf32>
    %67 = vector.shape_cast %66 : vector<16xf32> to vector<1x16xf32>
    %cst_53 = arith.constant 0.000000e+00 : f32
    %68 = vector.broadcast %cst_53 : f32 to vector<1x16xf32>
    %c0_i32_54 = arith.constant 0 : i32
    %69 = vector.broadcast %c0_i32_54 : i32 to vector<1x16xi32>
    %70 = arith.cmpi sge, %31, %69 : vector<1x16xi32>
    %c8_i32_55 = arith.constant 8 : i32
    %71 = vector.broadcast %c8_i32_55 : i32 to vector<1x16xi32>
    %72 = arith.cmpi slt, %31, %71 : vector<1x16xi32>
    %73 = arith.andi %70, %72 : vector<1x16xi1>
    %cst_56 = arith.constant 0.000000e+00 : f32
    %74 = vector.broadcast %cst_56 : f32 to vector<1x16xf32>
    %75 = arith.select %73, %67, %74 : vector<1x16xi1>, vector<1x16xf32>
    %76 = vector.shape_cast %75 : vector<1x16xf32> to vector<1x1x16xf32>
    %cst_57 = arith.constant dense<0.000000e+00> : vector<1xf32>
    %77 = vector.multi_reduction <add>, %76, %cst_57 [1, 2] : vector<1x1x16xf32> to vector<1xf32>
    %78 = vector.shape_cast %77 : vector<1xf32> to vector<1x1x1xf32>
    %79 = vector.extract %78[0, 0, 0] : f32 from vector<1x1x1xf32>
    %cst_58 = arith.constant 5.120000e+02 : f32
    %80 = arith.divf %79, %cst_58 : f32
    %81 = vector.broadcast %80 : f32 to vector<1x16xf32>
    %82 = arith.select %73, %81, %68 : vector<1x16xi1>, vector<1x16xf32>
    %c8_i32_59 = arith.constant 8 : i32
    %83 = vector.broadcast %c8_i32_59 : i32 to vector<1x16xi32>
    %84 = arith.cmpi sge, %31, %83 : vector<1x16xi32>
    %c16_i32_60 = arith.constant 16 : i32
    %85 = vector.broadcast %c16_i32_60 : i32 to vector<1x16xi32>
    %86 = arith.cmpi slt, %31, %85 : vector<1x16xi32>
    %87 = arith.andi %84, %86 : vector<1x16xi1>
    %cst_61 = arith.constant 0.000000e+00 : f32
    %88 = vector.broadcast %cst_61 : f32 to vector<1x16xf32>
    %89 = arith.select %87, %67, %88 : vector<1x16xi1>, vector<1x16xf32>
    %90 = vector.shape_cast %89 : vector<1x16xf32> to vector<1x1x16xf32>
    %cst_62 = arith.constant dense<0.000000e+00> : vector<1xf32>
    %91 = vector.multi_reduction <add>, %90, %cst_62 [1, 2] : vector<1x1x16xf32> to vector<1xf32>
    %92 = vector.shape_cast %91 : vector<1xf32> to vector<1x1x1xf32>
    %93 = vector.extract %92[0, 0, 0] : f32 from vector<1x1x1xf32>
    %cst_63 = arith.constant 5.120000e+02 : f32
    %94 = arith.divf %93, %cst_63 : f32
    %95 = vector.broadcast %94 : f32 to vector<1x16xf32>
    %96 = arith.select %87, %95, %82 : vector<1x16xi1>, vector<1x16xf32>
    %cst_64 = arith.constant 9.99999974E-6 : f32
    %97 = vector.broadcast %cst_64 : f32 to vector<1x16xf32>
    %98 = arith.addf %96, %97 : vector<1x16xf32>
    %99 = math.rsqrt %98 : vector<1x16xf32>
    %100 = vector.broadcast %99 : vector<1x16xf32> to vector<64x16xf32>
    %101 = arith.mulf %64, %100 : vector<64x16xf32>
    %102 = vector.broadcast %29 : vector<1x16xf32> to vector<64x16xf32>
    %103 = arith.mulf %101, %102 : vector<64x16xf32>
    %104 = vector.broadcast %30 : vector<1x16xf32> to vector<64x16xf32>
    %105 = arith.addf %103, %104 : vector<64x16xf32>
    %cst_65 = arith.constant 0.000000e+00 : f32
    %106 = vector.broadcast %cst_65 : f32 to vector<64x16xf32>
    %107 = arith.cmpf ogt, %105, %106 : vector<64x16xf32>
    %cst_66 = arith.constant 2.000000e-01 : f32
    %108 = vector.broadcast %cst_66 : f32 to vector<64x16xf32>
    %109 = arith.mulf %108, %105 : vector<64x16xf32>
    %110 = arith.select %107, %105, %109 : vector<64x16xi1>, vector<64x16xf32>
    %111 = vector.shape_cast %110 : vector<64x16xf32> to vector<8x8x16xf32>
    %c0_67 = arith.constant 0 : index
    %c0_68 = arith.constant 0 : index
    %c0_69 = arith.constant 0 : index
    %c0_70 = arith.constant 0 : index
    %112 = vector.load %arg2[%c0_67, %c0_68, %c0_69, %c0_70] : memref<1x8x8x16xf32, #tpu.memory_space<vmem>>, vector<1x8x8x16xf32>
    %113 = vector.shape_cast %112 : vector<1x8x8x16xf32> to vector<8x8x16xf32>
    %114 = tpu.concatenate %111, %113 in 2 : vector<8x8x16xf32>, vector<8x8x16xf32> -> vector<8x8x32xf32>
    %cst_71 = arith.constant 0.000000e+00 : f32
    %115 = vector.broadcast %cst_71 : f32 to vector<9x9x32xf32>
    %c0_72 = arith.constant 0 : index
    %c0_73 = arith.constant 0 : index
    %c0_74 = arith.constant 0 : index
    %116 = vector.load %arg14[%c0_72, %c0_73, %c0_74] : memref<9x9x32xf32, #tpu.memory_space<vmem>>, vector<9x9x32xf32>
    tpu.vector_store %arg14[%c0_72, %c0_73, %c0_74], %115 {strides = array<i32>} : memref<9x9x32xf32, #tpu.memory_space<vmem>>, vector<9x9x32xf32>,
    %c0_75 = arith.constant 0 : index
    %c0_76 = arith.constant 0 : index
    %c0_77 = arith.constant 0 : index
    %117 = vector.load %arg14[%c0_75, %c0_76, %c0_77] : memref<9x9x32xf32, #tpu.memory_space<vmem>>, vector<8x8x32xf32>
    tpu.vector_store %arg14[%c0_75, %c0_76, %c0_77], %114 {strides = array<i32>} : memref<9x9x32xf32, #tpu.memory_space<vmem>>, vector<8x8x32xf32>,
    %118 = vector.shape_cast %114 : vector<8x8x32xf32> to vector<64x32xf32>
    %c0_78 = arith.constant 0 : index
    %c1_79 = arith.constant 1 : index
    %c0_80 = arith.constant 0 : index
    %119 = vector.load %arg14[%c0_78, %c1_79, %c0_80] : memref<9x9x32xf32, #tpu.memory_space<vmem>>, vector<8x8x32xf32>
    %120 = vector.shape_cast %119 : vector<8x8x32xf32> to vector<64x32xf32>
    %c1_81 = arith.constant 1 : index
    %c0_82 = arith.constant 0 : index
    %c0_83 = arith.constant 0 : index
    %121 = vector.load %arg14[%c1_81, %c0_82, %c0_83] : memref<9x9x32xf32, #tpu.memory_space<vmem>>, vector<8x8x32xf32>
    %122 = vector.shape_cast %121 : vector<8x8x32xf32> to vector<64x32xf32>
    %c1_84 = arith.constant 1 : index
    %c1_85 = arith.constant 1 : index
    %c0_86 = arith.constant 0 : index
    %123 = vector.load %arg14[%c1_84, %c1_85, %c0_86] : memref<9x9x32xf32, #tpu.memory_space<vmem>>, vector<8x8x32xf32>
    %124 = vector.shape_cast %123 : vector<8x8x32xf32> to vector<64x32xf32>
    %c0_87 = arith.constant 0 : index
    %c0_88 = arith.constant 0 : index
    %125 = vector.load %arg6[%c0_87, %c0_88] : memref<288x8xf32, #tpu.memory_space<vmem>>, vector<32x8xf32>
    %cst_89 = arith.constant dense<0.000000e+00> : vector<64x8xf32>
    %126 = tpu.matmul %118, %125, %cst_89 {dimension_numbers = #tpu.dot_dimension_numbers<[1], [0], [0], [1], [0, 0, 1, 1], [], []>} : vector<64x32xf32>, vector<32x8xf32>, vector<64x8xf32> -> vector<64x8xf32>
    %127 = tpu.concatenate %118, %120 in 1 : vector<64x32xf32>, vector<64x32xf32> -> vector<64x64xf32>
    %c32 = arith.constant 32 : index
    %c0_90 = arith.constant 0 : index
    %128 = vector.load %arg6[%c32, %c0_90] : memref<288x8xf32, #tpu.memory_space<vmem>>, vector<64x8xf32>
    %cst_91 = arith.constant dense<0.000000e+00> : vector<64x8xf32>
    %129 = tpu.matmul %127, %128, %cst_91 {dimension_numbers = #tpu.dot_dimension_numbers<[1], [0], [0], [1], [0, 0, 1, 1], [], []>} : vector<64x64xf32>, vector<64x8xf32>, vector<64x8xf32> -> vector<64x8xf32>
    %130 = tpu.concatenate %118, %122 in 1 : vector<64x32xf32>, vector<64x32xf32> -> vector<64x64xf32>
    %c96 = arith.constant 96 : index
    %c0_92 = arith.constant 0 : index
    %131 = vector.load %arg6[%c96, %c0_92] : memref<288x8xf32, #tpu.memory_space<vmem>>, vector<64x8xf32>
    %cst_93 = arith.constant dense<0.000000e+00> : vector<64x8xf32>
    %132 = tpu.matmul %130, %131, %cst_93 {dimension_numbers = #tpu.dot_dimension_numbers<[1], [0], [0], [1], [0, 0, 1, 1], [], []>} : vector<64x64xf32>, vector<64x8xf32>, vector<64x8xf32> -> vector<64x8xf32>
    %133 = tpu.concatenate %118, %120, %122, %124 in 1 : vector<64x32xf32>, vector<64x32xf32>, vector<64x32xf32>, vector<64x32xf32> -> vector<64x128xf32>
    %c160 = arith.constant 160 : index
    %c0_94 = arith.constant 0 : index
    %134 = vector.load %arg6[%c160, %c0_94] : memref<288x8xf32, #tpu.memory_space<vmem>>, vector<128x8xf32>
    %cst_95 = arith.constant dense<0.000000e+00> : vector<64x8xf32>
    %135 = tpu.matmul %133, %134, %cst_95 {dimension_numbers = #tpu.dot_dimension_numbers<[1], [0], [0], [1], [0, 0, 1, 1], [], []>} : vector<64x128xf32>, vector<128x8xf32>, vector<64x8xf32> -> vector<64x8xf32>
    %136 = tpu.concatenate %126, %129, %132, %135 in 0 : vector<64x8xf32>, vector<64x8xf32>, vector<64x8xf32>, vector<64x8xf32> -> vector<256x8xf32>
    %c0_96 = arith.constant 0 : index
    %c0_97 = arith.constant 0 : index
    %137 = vector.load %arg7[%c0_96, %c0_97] : memref<3x8xf32, #tpu.memory_space<vmem>>, vector<1x8xf32>
    %138 = vector.broadcast %137 : vector<1x8xf32> to vector<256x8xf32>
    %139 = arith.addf %136, %138 : vector<256x8xf32>
    %c1_98 = arith.constant 1 : index
    %c0_99 = arith.constant 0 : index
    %140 = vector.load %arg7[%c1_98, %c0_99] : memref<3x8xf32, #tpu.memory_space<vmem>>, vector<1x8xf32>
    %c2_100 = arith.constant 2 : index
    %c0_101 = arith.constant 0 : index
    %141 = vector.load %arg7[%c2_100, %c0_101] : memref<3x8xf32, #tpu.memory_space<vmem>>, vector<1x8xf32>
    %142 = tpu.iota {dimensions = array<i32: 1>} : vector<1x8xi32>
    %cst_102 = arith.constant dense<0.000000e+00> : vector<8xf32>
    %143 = vector.multi_reduction <add>, %139, %cst_102 [0] : vector<256x8xf32> to vector<8xf32>
    %144 = vector.shape_cast %143 : vector<8xf32> to vector<1x8xf32>
    %cst_103 = arith.constant 0.000000e+00 : f32
    %145 = vector.broadcast %cst_103 : f32 to vector<1x8xf32>
    %c0_i32_104 = arith.constant 0 : i32
    %146 = vector.broadcast %c0_i32_104 : i32 to vector<1x8xi32>
    %147 = arith.cmpi sge, %142, %146 : vector<1x8xi32>
    %c4_i32 = arith.constant 4 : i32
    %148 = vector.broadcast %c4_i32 : i32 to vector<1x8xi32>
    %149 = arith.cmpi slt, %142, %148 : vector<1x8xi32>
    %150 = arith.andi %147, %149 : vector<1x8xi1>
    %cst_105 = arith.constant 0.000000e+00 : f32
    %151 = vector.broadcast %cst_105 : f32 to vector<1x8xf32>
    %152 = arith.select %150, %144, %151 : vector<1x8xi1>, vector<1x8xf32>
    %153 = vector.shape_cast %152 : vector<1x8xf32> to vector<1x1x8xf32>
    %cst_106 = arith.constant dense<0.000000e+00> : vector<1xf32>
    %154 = vector.multi_reduction <add>, %153, %cst_106 [1, 2] : vector<1x1x8xf32> to vector<1xf32>
    %155 = vector.shape_cast %154 : vector<1xf32> to vector<1x1x1xf32>
    %156 = vector.extract %155[0, 0, 0] : f32 from vector<1x1x1xf32>
    %cst_107 = arith.constant 1.024000e+03 : f32
    %157 = arith.divf %156, %cst_107 : f32
    %158 = vector.broadcast %157 : f32 to vector<1x8xf32>
    %159 = arith.select %150, %158, %145 : vector<1x8xi1>, vector<1x8xf32>
    %c4_i32_108 = arith.constant 4 : i32
    %160 = vector.broadcast %c4_i32_108 : i32 to vector<1x8xi32>
    %161 = arith.cmpi sge, %142, %160 : vector<1x8xi32>
    %c8_i32_109 = arith.constant 8 : i32
    %162 = vector.broadcast %c8_i32_109 : i32 to vector<1x8xi32>
    %163 = arith.cmpi slt, %142, %162 : vector<1x8xi32>
    %164 = arith.andi %161, %163 : vector<1x8xi1>
    %cst_110 = arith.constant 0.000000e+00 : f32
    %165 = vector.broadcast %cst_110 : f32 to vector<1x8xf32>
    %166 = arith.select %164, %144, %165 : vector<1x8xi1>, vector<1x8xf32>
    %167 = vector.shape_cast %166 : vector<1x8xf32> to vector<1x1x8xf32>
    %cst_111 = arith.constant dense<0.000000e+00> : vector<1xf32>
    %168 = vector.multi_reduction <add>, %167, %cst_111 [1, 2] : vector<1x1x8xf32> to vector<1xf32>
    %169 = vector.shape_cast %168 : vector<1xf32> to vector<1x1x1xf32>
    %170 = vector.extract %169[0, 0, 0] : f32 from vector<1x1x1xf32>
    %cst_112 = arith.constant 1.024000e+03 : f32
    %171 = arith.divf %170, %cst_112 : f32
    %172 = vector.broadcast %171 : f32 to vector<1x8xf32>
    %173 = arith.select %164, %172, %159 : vector<1x8xi1>, vector<1x8xf32>
    %174 = vector.broadcast %173 : vector<1x8xf32> to vector<256x8xf32>
    %175 = arith.subf %139, %174 : vector<256x8xf32>
    %176 = arith.mulf %175, %175 : vector<256x8xf32>
    %cst_113 = arith.constant dense<0.000000e+00> : vector<8xf32>
    %177 = vector.multi_reduction <add>, %176, %cst_113 [0] : vector<256x8xf32> to vector<8xf32>
    %178 = vector.shape_cast %177 : vector<8xf32> to vector<1x8xf32>
    %cst_114 = arith.constant 0.000000e+00 : f32
    %179 = vector.broadcast %cst_114 : f32 to vector<1x8xf32>
    %c0_i32_115 = arith.constant 0 : i32
    %180 = vector.broadcast %c0_i32_115 : i32 to vector<1x8xi32>
    %181 = arith.cmpi sge, %142, %180 : vector<1x8xi32>
    %c4_i32_116 = arith.constant 4 : i32
    %182 = vector.broadcast %c4_i32_116 : i32 to vector<1x8xi32>
    %183 = arith.cmpi slt, %142, %182 : vector<1x8xi32>
    %184 = arith.andi %181, %183 : vector<1x8xi1>
    %cst_117 = arith.constant 0.000000e+00 : f32
    %185 = vector.broadcast %cst_117 : f32 to vector<1x8xf32>
    %186 = arith.select %184, %178, %185 : vector<1x8xi1>, vector<1x8xf32>
    %187 = vector.shape_cast %186 : vector<1x8xf32> to vector<1x1x8xf32>
    %cst_118 = arith.constant dense<0.000000e+00> : vector<1xf32>
    %188 = vector.multi_reduction <add>, %187, %cst_118 [1, 2] : vector<1x1x8xf32> to vector<1xf32>
    %189 = vector.shape_cast %188 : vector<1xf32> to vector<1x1x1xf32>
    %190 = vector.extract %189[0, 0, 0] : f32 from vector<1x1x1xf32>
    %cst_119 = arith.constant 1.024000e+03 : f32
    %191 = arith.divf %190, %cst_119 : f32
    %192 = vector.broadcast %191 : f32 to vector<1x8xf32>
    %193 = arith.select %184, %192, %179 : vector<1x8xi1>, vector<1x8xf32>
    %c4_i32_120 = arith.constant 4 : i32
    %194 = vector.broadcast %c4_i32_120 : i32 to vector<1x8xi32>
    %195 = arith.cmpi sge, %142, %194 : vector<1x8xi32>
    %c8_i32_121 = arith.constant 8 : i32
    %196 = vector.broadcast %c8_i32_121 : i32 to vector<1x8xi32>
    %197 = arith.cmpi slt, %142, %196 : vector<1x8xi32>
    %198 = arith.andi %195, %197 : vector<1x8xi1>
    %cst_122 = arith.constant 0.000000e+00 : f32
    %199 = vector.broadcast %cst_122 : f32 to vector<1x8xf32>
    %200 = arith.select %198, %178, %199 : vector<1x8xi1>, vector<1x8xf32>
    %201 = vector.shape_cast %200 : vector<1x8xf32> to vector<1x1x8xf32>
    %cst_123 = arith.constant dense<0.000000e+00> : vector<1xf32>
    %202 = vector.multi_reduction <add>, %201, %cst_123 [1, 2] : vector<1x1x8xf32> to vector<1xf32>
    %203 = vector.shape_cast %202 : vector<1xf32> to vector<1x1x1xf32>
    %204 = vector.extract %203[0, 0, 0] : f32 from vector<1x1x1xf32>
    %cst_124 = arith.constant 1.024000e+03 : f32
    %205 = arith.divf %204, %cst_124 : f32
    %206 = vector.broadcast %205 : f32 to vector<1x8xf32>
    %207 = arith.select %198, %206, %193 : vector<1x8xi1>, vector<1x8xf32>
    %cst_125 = arith.constant 9.99999974E-6 : f32
    %208 = vector.broadcast %cst_125 : f32 to vector<1x8xf32>
    %209 = arith.addf %207, %208 : vector<1x8xf32>
    %210 = math.rsqrt %209 : vector<1x8xf32>
    %211 = vector.broadcast %210 : vector<1x8xf32> to vector<256x8xf32>
    %212 = arith.mulf %175, %211 : vector<256x8xf32>
    %213 = vector.broadcast %140 : vector<1x8xf32> to vector<256x8xf32>
    %214 = arith.mulf %212, %213 : vector<256x8xf32>
    %215 = vector.broadcast %141 : vector<1x8xf32> to vector<256x8xf32>
    %216 = arith.addf %214, %215 : vector<256x8xf32>
    %cst_126 = arith.constant 0.000000e+00 : f32
    %217 = vector.broadcast %cst_126 : f32 to vector<256x8xf32>
    %218 = arith.cmpf ogt, %216, %217 : vector<256x8xf32>
    %cst_127 = arith.constant 2.000000e-01 : f32
    %219 = vector.broadcast %cst_127 : f32 to vector<256x8xf32>
    %220 = arith.mulf %219, %216 : vector<256x8xf32>
    %221 = arith.select %218, %216, %220 : vector<256x8xi1>, vector<256x8xf32>
    %cst_128 = arith.constant 0.000000e+00 : f32
    %222 = vector.broadcast %cst_128 : f32 to vector<4x10x10x16xf32>
    %c0_129 = arith.constant 0 : index
    %c0_130 = arith.constant 0 : index
    %c0_131 = arith.constant 0 : index
    %c0_132 = arith.constant 0 : index
    %223 = vector.load %arg15[%c0_129, %c0_130, %c0_131, %c0_132] : memref<4x10x10x16xf32, #tpu.memory_space<vmem>>, vector<4x10x10x16xf32>
    tpu.vector_store %arg15[%c0_129, %c0_130, %c0_131, %c0_132], %222 {strides = array<i32>} : memref<4x10x10x16xf32, #tpu.memory_space<vmem>>, vector<4x10x10x16xf32>,
    %224 = vector.extract_strided_slice %221 {offsets = [0, 0], sizes = [64, 8], strides = [1, 1]} : vector<256x8xf32> to vector<64x8xf32>
    %225 = vector.shape_cast %224 : vector<64x8xf32> to vector<8x8x8xf32>
    %c0_133 = arith.constant 0 : index
    %c0_134 = arith.constant 0 : index
    %c0_135 = arith.constant 0 : index
    %c0_136 = arith.constant 0 : index
    %226 = vector.load %arg3[%c0_133, %c0_134, %c0_135, %c0_136] : memref<1x32x8x8xf32, #tpu.memory_space<vmem>>, vector<1x8x8x8xf32>
    %227 = vector.shape_cast %226 : vector<1x8x8x8xf32> to vector<8x8x8xf32>
    %228 = tpu.concatenate %225, %227 in 2 : vector<8x8x8xf32>, vector<8x8x8xf32> -> vector<8x8x16xf32>
    %c0_137 = arith.constant 0 : index
    %c1_138 = arith.constant 1 : index
    %c1_139 = arith.constant 1 : index
    %c0_140 = arith.constant 0 : index
    %229 = vector.load %arg15[%c0_137, %c1_138, %c1_139, %c0_140] : memref<4x10x10x16xf32, #tpu.memory_space<vmem>>, vector<1x8x8x16xf32>
    %230 = vector.shape_cast %229 : vector<1x8x8x16xf32> to vector<8x8x16xf32>
    %231 = vector.shape_cast %228 : vector<8x8x16xf32> to vector<1x8x8x16xf32>
    tpu.vector_store %arg15[%c0_137, %c1_138, %c1_139, %c0_140], %231 {strides = array<i32>} : memref<4x10x10x16xf32, #tpu.memory_space<vmem>>, vector<1x8x8x16xf32>,
    %232 = vector.extract_strided_slice %221 {offsets = [64, 0], sizes = [64, 8], strides = [1, 1]} : vector<256x8xf32> to vector<64x8xf32>
    %233 = vector.shape_cast %232 : vector<64x8xf32> to vector<8x8x8xf32>
    %c0_141 = arith.constant 0 : index
    %c8 = arith.constant 8 : index
    %c0_142 = arith.constant 0 : index
    %c0_143 = arith.constant 0 : index
    %234 = vector.load %arg3[%c0_141, %c8, %c0_142, %c0_143] : memref<1x32x8x8xf32, #tpu.memory_space<vmem>>, vector<1x8x8x8xf32>
    %235 = vector.shape_cast %234 : vector<1x8x8x8xf32> to vector<8x8x8xf32>
    %236 = tpu.concatenate %233, %235 in 2 : vector<8x8x8xf32>, vector<8x8x8xf32> -> vector<8x8x16xf32>
    %c1_144 = arith.constant 1 : index
    %c1_145 = arith.constant 1 : index
    %c1_146 = arith.constant 1 : index
    %c0_147 = arith.constant 0 : index
    %237 = vector.load %arg15[%c1_144, %c1_145, %c1_146, %c0_147] : memref<4x10x10x16xf32, #tpu.memory_space<vmem>>, vector<1x8x8x16xf32>
    %238 = vector.shape_cast %237 : vector<1x8x8x16xf32> to vector<8x8x16xf32>
    %239 = vector.shape_cast %236 : vector<8x8x16xf32> to vector<1x8x8x16xf32>
    tpu.vector_store %arg15[%c1_144, %c1_145, %c1_146, %c0_147], %239 {strides = array<i32>} : memref<4x10x10x16xf32, #tpu.memory_space<vmem>>, vector<1x8x8x16xf32>,
    %240 = vector.extract_strided_slice %221 {offsets = [128, 0], sizes = [64, 8], strides = [1, 1]} : vector<256x8xf32> to vector<64x8xf32>
    %241 = vector.shape_cast %240 : vector<64x8xf32> to vector<8x8x8xf32>
    %c0_148 = arith.constant 0 : index
    %c16 = arith.constant 16 : index
    %c0_149 = arith.constant 0 : index
    %c0_150 = arith.constant 0 : index
    %242 = vector.load %arg3[%c0_148, %c16, %c0_149, %c0_150] : memref<1x32x8x8xf32, #tpu.memory_space<vmem>>, vector<1x8x8x8xf32>
    %243 = vector.shape_cast %242 : vector<1x8x8x8xf32> to vector<8x8x8xf32>
    %244 = tpu.concatenate %241, %243 in 2 : vector<8x8x8xf32>, vector<8x8x8xf32> -> vector<8x8x16xf32>
    %c2_151 = arith.constant 2 : index
    %c1_152 = arith.constant 1 : index
    %c1_153 = arith.constant 1 : index
    %c0_154 = arith.constant 0 : index
    %245 = vector.load %arg15[%c2_151, %c1_152, %c1_153, %c0_154] : memref<4x10x10x16xf32, #tpu.memory_space<vmem>>, vector<1x8x8x16xf32>
    %246 = vector.shape_cast %245 : vector<1x8x8x16xf32> to vector<8x8x16xf32>
    %247 = vector.shape_cast %244 : vector<8x8x16xf32> to vector<1x8x8x16xf32>
    tpu.vector_store %arg15[%c2_151, %c1_152, %c1_153, %c0_154], %247 {strides = array<i32>} : memref<4x10x10x16xf32, #tpu.memory_space<vmem>>, vector<1x8x8x16xf32>,
    %248 = vector.extract_strided_slice %221 {offsets = [192, 0], sizes = [64, 8], strides = [1, 1]} : vector<256x8xf32> to vector<64x8xf32>
    %249 = vector.shape_cast %248 : vector<64x8xf32> to vector<8x8x8xf32>
    %c0_155 = arith.constant 0 : index
    %c24 = arith.constant 24 : index
    %c0_156 = arith.constant 0 : index
    %c0_157 = arith.constant 0 : index
    %250 = vector.load %arg3[%c0_155, %c24, %c0_156, %c0_157] : memref<1x32x8x8xf32, #tpu.memory_space<vmem>>, vector<1x8x8x8xf32>
    %251 = vector.shape_cast %250 : vector<1x8x8x8xf32> to vector<8x8x8xf32>
    %252 = tpu.concatenate %249, %251 in 2 : vector<8x8x8xf32>, vector<8x8x8xf32> -> vector<8x8x16xf32>
    %c3 = arith.constant 3 : index
    %c1_158 = arith.constant 1 : index
    %c1_159 = arith.constant 1 : index
    %c0_160 = arith.constant 0 : index
    %253 = vector.load %arg15[%c3, %c1_158, %c1_159, %c0_160] : memref<4x10x10x16xf32, #tpu.memory_space<vmem>>, vector<1x8x8x16xf32>
    %254 = vector.shape_cast %253 : vector<1x8x8x16xf32> to vector<8x8x16xf32>
    %255 = vector.shape_cast %252 : vector<8x8x16xf32> to vector<1x8x8x16xf32>
    tpu.vector_store %arg15[%c3, %c1_158, %c1_159, %c0_160], %255 {strides = array<i32>} : memref<4x10x10x16xf32, #tpu.memory_space<vmem>>, vector<1x8x8x16xf32>,
    %c3_161 = arith.constant 3 : index
    %c0_162 = arith.constant 0 : index
    %c0_163 = arith.constant 0 : index
    %c0_164 = arith.constant 0 : index
    %256 = vector.load %arg15[%c3_161, %c0_162, %c0_163, %c0_164] : memref<4x10x10x16xf32, #tpu.memory_space<vmem>>, vector<1x8x8x16xf32>
    %257 = vector.shape_cast %256 : vector<1x8x8x16xf32> to vector<8x8x16xf32>
    %258 = vector.shape_cast %257 : vector<8x8x16xf32> to vector<64x16xf32>
    %c2_165 = arith.constant 2 : index
    %c0_166 = arith.constant 0 : index
    %c1_167 = arith.constant 1 : index
    %c0_168 = arith.constant 0 : index
    %259 = vector.load %arg15[%c2_165, %c0_166, %c1_167, %c0_168] : memref<4x10x10x16xf32, #tpu.memory_space<vmem>>, vector<1x8x8x16xf32>
    %260 = vector.shape_cast %259 : vector<1x8x8x16xf32> to vector<8x8x16xf32>
    %261 = vector.shape_cast %260 : vector<8x8x16xf32> to vector<64x16xf32>
    %c3_169 = arith.constant 3 : index
    %c0_170 = arith.constant 0 : index
    %c1_171 = arith.constant 1 : index
    %c0_172 = arith.constant 0 : index
    %262 = vector.load %arg15[%c3_169, %c0_170, %c1_171, %c0_172] : memref<4x10x10x16xf32, #tpu.memory_space<vmem>>, vector<1x8x8x16xf32>
    %263 = vector.shape_cast %262 : vector<1x8x8x16xf32> to vector<8x8x16xf32>
    %264 = vector.shape_cast %263 : vector<8x8x16xf32> to vector<64x16xf32>
    %c2_173 = arith.constant 2 : index
    %c0_174 = arith.constant 0 : index
    %c2_175 = arith.constant 2 : index
    %c0_176 = arith.constant 0 : index
    %265 = vector.load %arg15[%c2_173, %c0_174, %c2_175, %c0_176] : memref<4x10x10x16xf32, #tpu.memory_space<vmem>>, vector<1x8x8x16xf32>
    %266 = vector.shape_cast %265 : vector<1x8x8x16xf32> to vector<8x8x16xf32>
    %267 = vector.shape_cast %266 : vector<8x8x16xf32> to vector<64x16xf32>
    %c1_177 = arith.constant 1 : index
    %c1_178 = arith.constant 1 : index
    %c0_179 = arith.constant 0 : index
    %c0_180 = arith.constant 0 : index
    %268 = vector.load %arg15[%c1_177, %c1_178, %c0_179, %c0_180] : memref<4x10x10x16xf32, #tpu.memory_space<vmem>>, vector<1x8x8x16xf32>
    %269 = vector.shape_cast %268 : vector<1x8x8x16xf32> to vector<8x8x16xf32>
    %270 = vector.shape_cast %269 : vector<8x8x16xf32> to vector<64x16xf32>
    %c0_181 = arith.constant 0 : index
    %c1_182 = arith.constant 1 : index
    %c1_183 = arith.constant 1 : index
    %c0_184 = arith.constant 0 : index
    %271 = vector.load %arg15[%c0_181, %c1_182, %c1_183, %c0_184] : memref<4x10x10x16xf32, #tpu.memory_space<vmem>>, vector<1x8x8x16xf32>
    %272 = vector.shape_cast %271 : vector<1x8x8x16xf32> to vector<8x8x16xf32>
    %273 = vector.shape_cast %272 : vector<8x8x16xf32> to vector<64x16xf32>
    %c1_185 = arith.constant 1 : index
    %c1_186 = arith.constant 1 : index
    %c1_187 = arith.constant 1 : index
    %c0_188 = arith.constant 0 : index
    %274 = vector.load %arg15[%c1_185, %c1_186, %c1_187, %c0_188] : memref<4x10x10x16xf32, #tpu.memory_space<vmem>>, vector<1x8x8x16xf32>
    %275 = vector.shape_cast %274 : vector<1x8x8x16xf32> to vector<8x8x16xf32>
    %276 = vector.shape_cast %275 : vector<8x8x16xf32> to vector<64x16xf32>
    %c0_189 = arith.constant 0 : index
    %c1_190 = arith.constant 1 : index
    %c2_191 = arith.constant 2 : index
    %c0_192 = arith.constant 0 : index
    %277 = vector.load %arg15[%c0_189, %c1_190, %c2_191, %c0_192] : memref<4x10x10x16xf32, #tpu.memory_space<vmem>>, vector<1x8x8x16xf32>
    %278 = vector.shape_cast %277 : vector<1x8x8x16xf32> to vector<8x8x16xf32>
    %279 = vector.shape_cast %278 : vector<8x8x16xf32> to vector<64x16xf32>
    %c3_193 = arith.constant 3 : index
    %c1_194 = arith.constant 1 : index
    %c0_195 = arith.constant 0 : index
    %c0_196 = arith.constant 0 : index
    %280 = vector.load %arg15[%c3_193, %c1_194, %c0_195, %c0_196] : memref<4x10x10x16xf32, #tpu.memory_space<vmem>>, vector<1x8x8x16xf32>
    %281 = vector.shape_cast %280 : vector<1x8x8x16xf32> to vector<8x8x16xf32>
    %282 = vector.shape_cast %281 : vector<8x8x16xf32> to vector<64x16xf32>
    %c2_197 = arith.constant 2 : index
    %c1_198 = arith.constant 1 : index
    %c1_199 = arith.constant 1 : index
    %c0_200 = arith.constant 0 : index
    %283 = vector.load %arg15[%c2_197, %c1_198, %c1_199, %c0_200] : memref<4x10x10x16xf32, #tpu.memory_space<vmem>>, vector<1x8x8x16xf32>
    %284 = vector.shape_cast %283 : vector<1x8x8x16xf32> to vector<8x8x16xf32>
    %285 = vector.shape_cast %284 : vector<8x8x16xf32> to vector<64x16xf32>
    %c3_201 = arith.constant 3 : index
    %c1_202 = arith.constant 1 : index
    %c1_203 = arith.constant 1 : index
    %c0_204 = arith.constant 0 : index
    %286 = vector.load %arg15[%c3_201, %c1_202, %c1_203, %c0_204] : memref<4x10x10x16xf32, #tpu.memory_space<vmem>>, vector<1x8x8x16xf32>
    %287 = vector.shape_cast %286 : vector<1x8x8x16xf32> to vector<8x8x16xf32>
    %288 = vector.shape_cast %287 : vector<8x8x16xf32> to vector<64x16xf32>
    %c2_205 = arith.constant 2 : index
    %c1_206 = arith.constant 1 : index
    %c2_207 = arith.constant 2 : index
    %c0_208 = arith.constant 0 : index
    %289 = vector.load %arg15[%c2_205, %c1_206, %c2_207, %c0_208] : memref<4x10x10x16xf32, #tpu.memory_space<vmem>>, vector<1x8x8x16xf32>
    %290 = vector.shape_cast %289 : vector<1x8x8x16xf32> to vector<8x8x16xf32>
    %291 = vector.shape_cast %290 : vector<8x8x16xf32> to vector<64x16xf32>
    %c1_209 = arith.constant 1 : index
    %c2_210 = arith.constant 2 : index
    %c0_211 = arith.constant 0 : index
    %c0_212 = arith.constant 0 : index
    %292 = vector.load %arg15[%c1_209, %c2_210, %c0_211, %c0_212] : memref<4x10x10x16xf32, #tpu.memory_space<vmem>>, vector<1x8x8x16xf32>
    %293 = vector.shape_cast %292 : vector<1x8x8x16xf32> to vector<8x8x16xf32>
    %294 = vector.shape_cast %293 : vector<8x8x16xf32> to vector<64x16xf32>
    %c0_213 = arith.constant 0 : index
    %c2_214 = arith.constant 2 : index
    %c1_215 = arith.constant 1 : index
    %c0_216 = arith.constant 0 : index
    %295 = vector.load %arg15[%c0_213, %c2_214, %c1_215, %c0_216] : memref<4x10x10x16xf32, #tpu.memory_space<vmem>>, vector<1x8x8x16xf32>
    %296 = vector.shape_cast %295 : vector<1x8x8x16xf32> to vector<8x8x16xf32>
    %297 = vector.shape_cast %296 : vector<8x8x16xf32> to vector<64x16xf32>
    %c1_217 = arith.constant 1 : index
    %c2_218 = arith.constant 2 : index
    %c1_219 = arith.constant 1 : index
    %c0_220 = arith.constant 0 : index
    %298 = vector.load %arg15[%c1_217, %c2_218, %c1_219, %c0_220] : memref<4x10x10x16xf32, #tpu.memory_space<vmem>>, vector<1x8x8x16xf32>
    %299 = vector.shape_cast %298 : vector<1x8x8x16xf32> to vector<8x8x16xf32>
    %300 = vector.shape_cast %299 : vector<8x8x16xf32> to vector<64x16xf32>
    %c0_221 = arith.constant 0 : index
    %c2_222 = arith.constant 2 : index
    %c2_223 = arith.constant 2 : index
    %c0_224 = arith.constant 0 : index
    %301 = vector.load %arg15[%c0_221, %c2_222, %c2_223, %c0_224] : memref<4x10x10x16xf32, #tpu.memory_space<vmem>>, vector<1x8x8x16xf32>
    %302 = vector.shape_cast %301 : vector<1x8x8x16xf32> to vector<8x8x16xf32>
    %303 = vector.shape_cast %302 : vector<8x8x16xf32> to vector<64x16xf32>
    %304 = tpu.concatenate %258, %261, %264, %270, %273, %276, %282, %285, %288 in 1 : vector<64x16xf32>, vector<64x16xf32>, vector<64x16xf32>, vector<64x16xf32>, vector<64x16xf32>, vector<64x16xf32>, vector<64x16xf32>, vector<64x16xf32>, vector<64x16xf32> -> vector<64x144xf32>
    %305 = tpu.concatenate %261, %264, %267, %273, %276, %279, %285, %288, %291 in 1 : vector<64x16xf32>, vector<64x16xf32>, vector<64x16xf32>, vector<64x16xf32>, vector<64x16xf32>, vector<64x16xf32>, vector<64x16xf32>, vector<64x16xf32>, vector<64x16xf32> -> vector<64x144xf32>
    %306 = tpu.concatenate %270, %273, %276, %282, %285, %288, %294, %297, %300 in 1 : vector<64x16xf32>, vector<64x16xf32>, vector<64x16xf32>, vector<64x16xf32>, vector<64x16xf32>, vector<64x16xf32>, vector<64x16xf32>, vector<64x16xf32>, vector<64x16xf32> -> vector<64x144xf32>
    %307 = tpu.concatenate %273, %276, %279, %285, %288, %291, %297, %300, %303 in 1 : vector<64x16xf32>, vector<64x16xf32>, vector<64x16xf32>, vector<64x16xf32>, vector<64x16xf32>, vector<64x16xf32>, vector<64x16xf32>, vector<64x16xf32>, vector<64x16xf32> -> vector<64x144xf32>
    %308 = tpu.concatenate %304, %305, %306, %307 in 0 : vector<64x144xf32>, vector<64x144xf32>, vector<64x144xf32>, vector<64x144xf32> -> vector<256x144xf32>
    %c0_225 = arith.constant 0 : index
    %c0_226 = arith.constant 0 : index
    %309 = vector.load %arg8[%c0_225, %c0_226] : memref<144x8xf32, #tpu.memory_space<vmem>>, vector<144x8xf32>
    %cst_227 = arith.constant dense<0.000000e+00> : vector<256x8xf32>
    %310 = tpu.matmul %308, %309, %cst_227 {dimension_numbers = #tpu.dot_dimension_numbers<[1], [0], [0], [1], [0, 0, 1, 1], [], []>} : vector<256x144xf32>, vector<144x8xf32>, vector<256x8xf32> -> vector<256x8xf32>
    %c0_228 = arith.constant 0 : index
    %c0_229 = arith.constant 0 : index
    %311 = vector.load %arg9[%c0_228, %c0_229] : memref<3x8xf32, #tpu.memory_space<vmem>>, vector<1x8xf32>
    %312 = vector.broadcast %311 : vector<1x8xf32> to vector<256x8xf32>
    %313 = arith.addf %310, %312 : vector<256x8xf32>
    %c1_230 = arith.constant 1 : index
    %c0_231 = arith.constant 0 : index
    %314 = vector.load %arg9[%c1_230, %c0_231] : memref<3x8xf32, #tpu.memory_space<vmem>>, vector<1x8xf32>
    %c2_232 = arith.constant 2 : index
    %c0_233 = arith.constant 0 : index
    %315 = vector.load %arg9[%c2_232, %c0_233] : memref<3x8xf32, #tpu.memory_space<vmem>>, vector<1x8xf32>
    %316 = tpu.iota {dimensions = array<i32: 1>} : vector<1x8xi32>
    %cst_234 = arith.constant dense<0.000000e+00> : vector<8xf32>
    %317 = vector.multi_reduction <add>, %313, %cst_234 [0] : vector<256x8xf32> to vector<8xf32>
    %318 = vector.shape_cast %317 : vector<8xf32> to vector<1x8xf32>
    %cst_235 = arith.constant 0.000000e+00 : f32
    %319 = vector.broadcast %cst_235 : f32 to vector<1x8xf32>
    %c0_i32_236 = arith.constant 0 : i32
    %320 = vector.broadcast %c0_i32_236 : i32 to vector<1x8xi32>
    %321 = arith.cmpi sge, %316, %320 : vector<1x8xi32>
    %c4_i32_237 = arith.constant 4 : i32
    %322 = vector.broadcast %c4_i32_237 : i32 to vector<1x8xi32>
    %323 = arith.cmpi slt, %316, %322 : vector<1x8xi32>
    %324 = arith.andi %321, %323 : vector<1x8xi1>
    %cst_238 = arith.constant 0.000000e+00 : f32
    %325 = vector.broadcast %cst_238 : f32 to vector<1x8xf32>
    %326 = arith.select %324, %318, %325 : vector<1x8xi1>, vector<1x8xf32>
    %327 = vector.shape_cast %326 : vector<1x8xf32> to vector<1x1x8xf32>
    %cst_239 = arith.constant dense<0.000000e+00> : vector<1xf32>
    %328 = vector.multi_reduction <add>, %327, %cst_239 [1, 2] : vector<1x1x8xf32> to vector<1xf32>
    %329 = vector.shape_cast %328 : vector<1xf32> to vector<1x1x1xf32>
    %330 = vector.extract %329[0, 0, 0] : f32 from vector<1x1x1xf32>
    %cst_240 = arith.constant 1.024000e+03 : f32
    %331 = arith.divf %330, %cst_240 : f32
    %332 = vector.broadcast %331 : f32 to vector<1x8xf32>
    %333 = arith.select %324, %332, %319 : vector<1x8xi1>, vector<1x8xf32>
    %c4_i32_241 = arith.constant 4 : i32
    %334 = vector.broadcast %c4_i32_241 : i32 to vector<1x8xi32>
    %335 = arith.cmpi sge, %316, %334 : vector<1x8xi32>
    %c8_i32_242 = arith.constant 8 : i32
    %336 = vector.broadcast %c8_i32_242 : i32 to vector<1x8xi32>
    %337 = arith.cmpi slt, %316, %336 : vector<1x8xi32>
    %338 = arith.andi %335, %337 : vector<1x8xi1>
    %cst_243 = arith.constant 0.000000e+00 : f32
    %339 = vector.broadcast %cst_243 : f32 to vector<1x8xf32>
    %340 = arith.select %338, %318, %339 : vector<1x8xi1>, vector<1x8xf32>
    %341 = vector.shape_cast %340 : vector<1x8xf32> to vector<1x1x8xf32>
    %cst_244 = arith.constant dense<0.000000e+00> : vector<1xf32>
    %342 = vector.multi_reduction <add>, %341, %cst_244 [1, 2] : vector<1x1x8xf32> to vector<1xf32>
    %343 = vector.shape_cast %342 : vector<1xf32> to vector<1x1x1xf32>
    %344 = vector.extract %343[0, 0, 0] : f32 from vector<1x1x1xf32>
    %cst_245 = arith.constant 1.024000e+03 : f32
    %345 = arith.divf %344, %cst_245 : f32
    %346 = vector.broadcast %345 : f32 to vector<1x8xf32>
    %347 = arith.select %338, %346, %333 : vector<1x8xi1>, vector<1x8xf32>
    %348 = vector.broadcast %347 : vector<1x8xf32> to vector<256x8xf32>
    %349 = arith.subf %313, %348 : vector<256x8xf32>
    %350 = arith.mulf %349, %349 : vector<256x8xf32>
    %cst_246 = arith.constant dense<0.000000e+00> : vector<8xf32>
    %351 = vector.multi_reduction <add>, %350, %cst_246 [0] : vector<256x8xf32> to vector<8xf32>
    %352 = vector.shape_cast %351 : vector<8xf32> to vector<1x8xf32>
    %cst_247 = arith.constant 0.000000e+00 : f32
    %353 = vector.broadcast %cst_247 : f32 to vector<1x8xf32>
    %c0_i32_248 = arith.constant 0 : i32
    %354 = vector.broadcast %c0_i32_248 : i32 to vector<1x8xi32>
    %355 = arith.cmpi sge, %316, %354 : vector<1x8xi32>
    %c4_i32_249 = arith.constant 4 : i32
    %356 = vector.broadcast %c4_i32_249 : i32 to vector<1x8xi32>
    %357 = arith.cmpi slt, %316, %356 : vector<1x8xi32>
    %358 = arith.andi %355, %357 : vector<1x8xi1>
    %cst_250 = arith.constant 0.000000e+00 : f32
    %359 = vector.broadcast %cst_250 : f32 to vector<1x8xf32>
    %360 = arith.select %358, %352, %359 : vector<1x8xi1>, vector<1x8xf32>
    %361 = vector.shape_cast %360 : vector<1x8xf32> to vector<1x1x8xf32>
    %cst_251 = arith.constant dense<0.000000e+00> : vector<1xf32>
    %362 = vector.multi_reduction <add>, %361, %cst_251 [1, 2] : vector<1x1x8xf32> to vector<1xf32>
    %363 = vector.shape_cast %362 : vector<1xf32> to vector<1x1x1xf32>
    %364 = vector.extract %363[0, 0, 0] : f32 from vector<1x1x1xf32>
    %cst_252 = arith.constant 1.024000e+03 : f32
    %365 = arith.divf %364, %cst_252 : f32
    %366 = vector.broadcast %365 : f32 to vector<1x8xf32>
    %367 = arith.select %358, %366, %353 : vector<1x8xi1>, vector<1x8xf32>
    %c4_i32_253 = arith.constant 4 : i32
    %368 = vector.broadcast %c4_i32_253 : i32 to vector<1x8xi32>
    %369 = arith.cmpi sge, %316, %368 : vector<1x8xi32>
    %c8_i32_254 = arith.constant 8 : i32
    %370 = vector.broadcast %c8_i32_254 : i32 to vector<1x8xi32>
    %371 = arith.cmpi slt, %316, %370 : vector<1x8xi32>
    %372 = arith.andi %369, %371 : vector<1x8xi1>
    %cst_255 = arith.constant 0.000000e+00 : f32
    %373 = vector.broadcast %cst_255 : f32 to vector<1x8xf32>
    %374 = arith.select %372, %352, %373 : vector<1x8xi1>, vector<1x8xf32>
    %375 = vector.shape_cast %374 : vector<1x8xf32> to vector<1x1x8xf32>
    %cst_256 = arith.constant dense<0.000000e+00> : vector<1xf32>
    %376 = vector.multi_reduction <add>, %375, %cst_256 [1, 2] : vector<1x1x8xf32> to vector<1xf32>
    %377 = vector.shape_cast %376 : vector<1xf32> to vector<1x1x1xf32>
    %378 = vector.extract %377[0, 0, 0] : f32 from vector<1x1x1xf32>
    %cst_257 = arith.constant 1.024000e+03 : f32
    %379 = arith.divf %378, %cst_257 : f32
    %380 = vector.broadcast %379 : f32 to vector<1x8xf32>
    %381 = arith.select %372, %380, %367 : vector<1x8xi1>, vector<1x8xf32>
    %cst_258 = arith.constant 9.99999974E-6 : f32
    %382 = vector.broadcast %cst_258 : f32 to vector<1x8xf32>
    %383 = arith.addf %381, %382 : vector<1x8xf32>
    %384 = math.rsqrt %383 : vector<1x8xf32>
    %385 = vector.broadcast %384 : vector<1x8xf32> to vector<256x8xf32>
    %386 = arith.mulf %349, %385 : vector<256x8xf32>
    %387 = vector.broadcast %314 : vector<1x8xf32> to vector<256x8xf32>
    %388 = arith.mulf %386, %387 : vector<256x8xf32>
    %389 = vector.broadcast %315 : vector<1x8xf32> to vector<256x8xf32>
    %390 = arith.addf %388, %389 : vector<256x8xf32>
    %cst_259 = arith.constant 0.000000e+00 : f32
    %391 = vector.broadcast %cst_259 : f32 to vector<256x8xf32>
    %392 = arith.cmpf ogt, %390, %391 : vector<256x8xf32>
    %cst_260 = arith.constant 2.000000e-01 : f32
    %393 = vector.broadcast %cst_260 : f32 to vector<256x8xf32>
    %394 = arith.mulf %393, %390 : vector<256x8xf32>
    %395 = arith.select %392, %390, %394 : vector<256x8xi1>, vector<256x8xf32>
    %c0_261 = arith.constant 0 : index
    %c0_262 = arith.constant 0 : index
    %396 = vector.load %arg10[%c0_261, %c0_262] : memref<8x8xf32, #tpu.memory_space<vmem>>, vector<8x8xf32>
    %cst_263 = arith.constant dense<0.000000e+00> : vector<256x8xf32>
    %397 = tpu.matmul %395, %396, %cst_263 {dimension_numbers = #tpu.dot_dimension_numbers<[1], [0], [0], [1], [0, 0, 1, 1], [], []>} : vector<256x8xf32>, vector<8x8xf32>, vector<256x8xf32> -> vector<256x8xf32>
    %c0_264 = arith.constant 0 : index
    %c0_265 = arith.constant 0 : index
    %398 = vector.load %arg11[%c0_264, %c0_265] : memref<1x8xf32, #tpu.memory_space<vmem>>, vector<1x8xf32>
    %399 = vector.broadcast %398 : vector<1x8xf32> to vector<256x8xf32>
    %400 = arith.addf %397, %399 : vector<256x8xf32>
    %401 = tpu.iota {dimensions = array<i32: 1>} : vector<256x8xi32>
    %c4_i32_266 = arith.constant 4 : i32
    %402 = vector.broadcast %c4_i32_266 : i32 to vector<256x8xi32>
    %403 = arith.cmpi eq, %401, %402 : vector<256x8xi32>
    %404 = arith.negf %400 : vector<256x8xf32>
    %405 = math.exp %404 : vector<256x8xf32>
    %cst_267 = arith.constant 1.000000e+00 : f32
    %406 = vector.broadcast %cst_267 : f32 to vector<256x8xf32>
    %407 = arith.addf %406, %405 : vector<256x8xf32>
    %408 = arith.divf %406, %407 : vector<256x8xf32>
    %409 = arith.select %403, %408, %400 : vector<256x8xi1>, vector<256x8xf32>
    %c0_268 = arith.constant 0 : index
    %c0_269 = arith.constant 0 : index
    %c0_270 = arith.constant 0 : index
    %410 = vector.load %arg12[%c0_268, %c0_269, %c0_270] : memref<1x256x8xf32, #tpu.memory_space<vmem>>, vector<1x256x8xf32>
    %411 = vector.shape_cast %410 : vector<1x256x8xf32> to vector<256x8xf32>
    %412 = vector.shape_cast %409 : vector<256x8xf32> to vector<1x256x8xf32>
    tpu.vector_store %arg12[%c0_268, %c0_269, %c0_270], %412 {strides = array<i32>} : memref<1x256x8xf32, #tpu.memory_space<vmem>>, vector<1x256x8xf32>,
    return
  }
  func.func @transform_0(%arg0: i32) -> (i32, i32, i32, i32) {
    %c0_i32 = arith.constant 0 : i32
    %c0_i32_0 = arith.constant 0 : i32
    %c0_i32_1 = arith.constant 0 : i32
    %c0_i32_2 = arith.constant 0 : i32
    return %arg0, %c0_i32, %c0_i32_0, %c0_i32_1 : i32, i32, i32, i32
  }
  func.func @transform_1(%arg0: i32) -> (i32, i32, i32, i32) {
    %c0_i32 = arith.constant 0 : i32
    %c0_i32_0 = arith.constant 0 : i32
    %c0_i32_1 = arith.constant 0 : i32
    %c0_i32_2 = arith.constant 0 : i32
    return %arg0, %c0_i32, %c0_i32_0, %c0_i32_1 : i32, i32, i32, i32
  }
  func.func @transform_2(%arg0: i32) -> (i32, i32, i32, i32) {
    %c0_i32 = arith.constant 0 : i32
    %c0_i32_0 = arith.constant 0 : i32
    %c0_i32_1 = arith.constant 0 : i32
    %c0_i32_2 = arith.constant 0 : i32
    return %arg0, %c0_i32, %c0_i32_0, %c0_i32_1 : i32, i32, i32, i32
  }
  func.func @transform_3(%arg0: i32) -> (i32, i32) {
    %c0_i32 = arith.constant 0 : i32
    %c0_i32_0 = arith.constant 0 : i32
    %c0_i32_1 = arith.constant 0 : i32
    return %c0_i32, %c0_i32_0 : i32, i32
  }
  func.func @transform_4(%arg0: i32) -> (i32, i32) {
    %c0_i32 = arith.constant 0 : i32
    %c0_i32_0 = arith.constant 0 : i32
    %c0_i32_1 = arith.constant 0 : i32
    return %c0_i32, %c0_i32_0 : i32, i32
  }
  func.func @transform_5(%arg0: i32) -> (i32, i32) {
    %c0_i32 = arith.constant 0 : i32
    %c0_i32_0 = arith.constant 0 : i32
    %c0_i32_1 = arith.constant 0 : i32
    return %c0_i32, %c0_i32_0 : i32, i32
  }
  func.func @transform_6(%arg0: i32) -> (i32, i32) {
    %c0_i32 = arith.constant 0 : i32
    %c0_i32_0 = arith.constant 0 : i32
    %c0_i32_1 = arith.constant 0 : i32
    return %c0_i32, %c0_i32_0 : i32, i32
  }
  func.func @transform_7(%arg0: i32) -> (i32, i32) {
    %c0_i32 = arith.constant 0 : i32
    %c0_i32_0 = arith.constant 0 : i32
    %c0_i32_1 = arith.constant 0 : i32
    return %c0_i32, %c0_i32_0 : i32, i32
  }
  func.func @transform_8(%arg0: i32) -> (i32, i32) {
    %c0_i32 = arith.constant 0 : i32
    %c0_i32_0 = arith.constant 0 : i32
    %c0_i32_1 = arith.constant 0 : i32
    return %c0_i32, %c0_i32_0 : i32, i32
  }
  func.func @transform_9(%arg0: i32) -> (i32, i32) {
    %c0_i32 = arith.constant 0 : i32
    %c0_i32_0 = arith.constant 0 : i32
    %c0_i32_1 = arith.constant 0 : i32
    return %c0_i32, %c0_i32_0 : i32, i32
  }
  func.func @transform_10(%arg0: i32) -> (i32, i32) {
    %c0_i32 = arith.constant 0 : i32
    %c0_i32_0 = arith.constant 0 : i32
    %c0_i32_1 = arith.constant 0 : i32
    return %c0_i32, %c0_i32_0 : i32, i32
  }
  func.func @transform_11(%arg0: i32) -> (i32, i32, i32) {
    %c0_i32 = arith.constant 0 : i32
    %c0_i32_0 = arith.constant 0 : i32
    %c0_i32_1 = arith.constant 0 : i32
    return %arg0, %c0_i32, %c0_i32_0 : i32, i32, i32
  }
}

</mosaic_0001>

<llo_original>
// kernel: decoder_shallow_forward.1
$region0: #{decoder_shallow_forward.1}
  #allocation0 [shape = 'u32[]', space=smem, size = 0x4, offset = 0x4, fixed_abs, tag = 'smem constant byte address 0x4 - core index']
  #allocation1 [shape = 'u32[72,128]{1,0:T(1,128)}', space=vmem, size = 0x9000, scoped, tag = 'internal scratch']
  #allocation2 [shape = 'f32[10,10,16]{2,1,0:T(8,128)}', space=vmem, size = 0x14000, scoped, tag = 'scratch operand']
  #allocation3 [shape = 'f32[9,9,32]{2,1,0:T(8,128)}', space=vmem, size = 0x12000, scoped, tag = 'scratch operand']
  #allocation4 [shape = 'f32[4,10,10,16]{3,2,1,0:T(8,128)}', space=vmem, size = 0x50000, scoped, tag = 'scratch operand']
  %s0 = inlined_call_operand.vmem [shape: f32[2,8,8,16], index: 0, kind: input, shape index: {}]
  %s1 = inlined_call_operand.vmem [shape: f32[2,8,8,16], index: 1, kind: input, shape index: {}]
  %s2 = inlined_call_operand.vmem [shape: f32[2,32,8,8], index: 2, kind: input, shape index: {}]
  %s3 = inlined_call_operand.vmem [shape: f32[144,16], index: 3, kind: input, shape index: {}]
  %s4 = inlined_call_operand.vmem [shape: f32[3,16], index: 4, kind: input, shape index: {}]
  %s5 = inlined_call_operand.vmem [shape: f32[288,8], index: 5, kind: input, shape index: {}]
  %s6 = inlined_call_operand.vmem [shape: f32[3,8], index: 6, kind: input, shape index: {}]
  %s7 = inlined_call_operand.vmem [shape: f32[144,8], index: 7, kind: input, shape index: {}]
  %s8 = inlined_call_operand.vmem [shape: f32[3,8], index: 8, kind: input, shape index: {}]
  %s9 = inlined_call_operand.vmem [shape: f32[8,8], index: 9, kind: input, shape index: {}]
  %s10 = inlined_call_operand.vmem [shape: f32[1,8], index: 10, kind: input, shape index: {}]
  %s11 = inlined_call_operand.vmem [shape: f32[2,256,8], index: 11, kind: output, shape index: {}]
  %s12 = sld [smem:[#allocation0]]
  $region77: #{decoder_shallow_forward.1} parent=0
    _
  %s14 = ssub.s32 1, %s12
  %s15 = scalar_select 0, %s14, %s12
  loop: start=0, step=1, limit=4
  $region2: #{decoder_shallow_forward.1} parent=0 // loop_pre_header
    _
  $region3: #{decoder_shallow_forward.1} parent=0 // loop_header
    %s17 = sphi 0, %s21
    %p18 = scmp.ge.s32.totalorder %s17, 4
    %s27 = sphi 0, %s29
    %s30 = sphi 0, %s27
    %s31 = sphi 0, %s30
    %s47 = sphi 0, %s31
    %s53 = sphi 0, %s55
    %s56 = sphi 0, %s53
    %s57 = sphi 0, %s56
    %s73 = sphi 0, %s57
    %s79 = sphi 0, %s81
    %s82 = sphi 0, %s79
    %s83 = sphi 0, %s82
    %s99 = sphi 0, %s83
    %s103 = sphi 0, %s103
    %s105 = sphi 0, %s103
    %s106 = sphi 0, %s105
    %s120 = sphi 0, %s106
    %s124 = sphi 0, %s124
    %s126 = sphi 0, %s124
    %s127 = sphi 0, %s126
    %s141 = sphi 0, %s127
    %s145 = sphi 0, %s145
    %s147 = sphi 0, %s145
    %s148 = sphi 0, %s147
    %s162 = sphi 0, %s148
    %s166 = sphi 0, %s166
    %s168 = sphi 0, %s166
    %s169 = sphi 0, %s168
    %s183 = sphi 0, %s169
    %s187 = sphi 0, %s187
    %s189 = sphi 0, %s187
    %s190 = sphi 0, %s189
    %s204 = sphi 0, %s190
    %s208 = sphi 0, %s208
    %s210 = sphi 0, %s208
    %s211 = sphi 0, %s210
    %s225 = sphi 0, %s211
    %s229 = sphi 0, %s229
    %s231 = sphi 0, %s229
    %s232 = sphi 0, %s231
    %s246 = sphi 0, %s232
    %s250 = sphi 0, %s250
    %s252 = sphi 0, %s250
    %s253 = sphi 0, %s252
    %s267 = sphi 0, %s253
    %s273 = sphi 0, %s275
    %s276 = sphi 0, %s273
    %s277 = sphi 0, %s276
    %s293 = sphi 0, %s277
  $region4: #{decoder_shallow_forward.1} parent=0 // loop_header_branch
    %20 = sbr.rel (%p18) target = $region8
  $region5: #{decoder_shallow_forward.1} parent=0 // loop_body
    %s22 = ssub.s32 %s17, 1
    %s23 = ssub.s32 %s17, 2
    %s24 = sadd.s32 %s17, 1
    %s25 = ssub.s32 %s17, %s24
    %p26 = scmp.eq.s32.totalorder %s25, 0
    %s28 = sadd.s32 %s27, 1
    %s29 = scalar_select %p26, %s27, %s28
    %p32 = pneg %p26
    %p33 = scmp.eq.s32.totalorder %s17, 1
    %p34 = por %p32, %p33
    %p35 = scmp.ne.s32.totalorder %s27, %s30
    %p36 = scmp.eq.s32.totalorder %s17, 0
    %p37 = por %p35, %p36
    %p38 = scmp.ne.s32.totalorder %s27, %s30
    %p39 = scmp.eq.s32.totalorder %s22, 1
    %p40 = por %p38, %p39
    %p41 = scmp.ne.s32.totalorder %s30, %s31
    %p42 = scmp.eq.s32.totalorder %s22, 0
    %p43 = por %p41, %p42
    %p44 = scmp.ne.s32.totalorder %s30, %s31
    %p45 = scmp.eq.s32.totalorder %s23, 1
    %p46 = por %p44, %p45
    %p48 = scmp.ne.s32.totalorder %s31, %s47
    %p49 = scmp.eq.s32.totalorder %s23, 0
    %p50 = por %p48, %p49
    %s51 = ssub.s32 %s17, %s24
    %p52 = scmp.eq.s32.totalorder %s51, 0
    %s54 = sadd.s32 %s53, 1
    %s55 = scalar_select %p52, %s53, %s54
    %p58 = pneg %p52
    %p59 = scmp.eq.s32.totalorder %s17, 1
    %p60 = por %p58, %p59
    %p61 = scmp.ne.s32.totalorder %s53, %s56
    %p62 = scmp.eq.s32.totalorder %s17, 0
    %p63 = por %p61, %p62
    %p64 = scmp.ne.s32.totalorder %s53, %s56
    %p65 = scmp.eq.s32.totalorder %s22, 1
    %p66 = por %p64, %p65
    %p67 = scmp.ne.s32.totalorder %s56, %s57
    %p68 = scmp.eq.s32.totalorder %s22, 0
    %p69 = por %p67, %p68
    %p70 = scmp.ne.s32.totalorder %s56, %s57
    %p71 = scmp.eq.s32.totalorder %s23, 1
    %p72 = por %p70, %p71
    %p74 = scmp.ne.s32.totalorder %s57, %s73
    %p75 = scmp.eq.s32.totalorder %s23, 0
    %p76 = por %p74, %p75
    %s77 = ssub.s32 %s17, %s24
    %p78 = scmp.eq.s32.totalorder %s77, 0
    %s80 = sadd.s32 %s79, 1
    %s81 = scalar_select %p78, %s79, %s80
    %p84 = pneg %p78
    %p85 = scmp.eq.s32.totalorder %s17, 1
    %p86 = por %p84, %p85
    %p87 = scmp.ne.s32.totalorder %s79, %s82
    %p88 = scmp.eq.s32.totalorder %s17, 0
    %p89 = por %p87, %p88
    %p90 = scmp.ne.s32.totalorder %s79, %s82
    %p91 = scmp.eq.s32.totalorder %s22, 1
    %p92 = por %p90, %p91
    %p93 = scmp.ne.s32.totalorder %s82, %s83
    %p94 = scmp.eq.s32.totalorder %s22, 0
    %p95 = por %p93, %p94
    %p96 = scmp.ne.s32.totalorder %s82, %s83
    %p97 = scmp.eq.s32.totalorder %s23, 1
    %p98 = por %p96, %p97
    %p100 = scmp.ne.s32.totalorder %s83, %s99
    %p101 = scmp.eq.s32.totalorder %s23, 0
    %p102 = por %p100, %p101
    %s104 = sadd.s32 %s103, 1
    %p107 = scmp.eq.s32.totalorder %s17, 1
    %p108 = scmp.ne.s32.totalorder %s103, %s105
    %p109 = scmp.eq.s32.totalorder %s17, 0
    %p110 = por %p108, %p109
    %p111 = scmp.ne.s32.totalorder %s103, %s105
    %p112 = scmp.eq.s32.totalorder %s22, 1
    %p113 = por %p111, %p112
    %p114 = scmp.ne.s32.totalorder %s105, %s106
    %p115 = scmp.eq.s32.totalorder %s22, 0
    %p116 = por %p114, %p115
    %p117 = scmp.ne.s32.totalorder %s105, %s106
    %p118 = scmp.eq.s32.totalorder %s23, 1
    %p119 = por %p117, %p118
    %p121 = scmp.ne.s32.totalorder %s106, %s120
    %p122 = scmp.eq.s32.totalorder %s23, 0
    %p123 = por %p121, %p122
    %s125 = sadd.s32 %s124, 1
    %p128 = scmp.eq.s32.totalorder %s17, 1
    %p129 = scmp.ne.s32.totalorder %s124, %s126
    %p130 = scmp.eq.s32.totalorder %s17, 0
    %p131 = por %p129, %p130
    %p132 = scmp.ne.s32.totalorder %s124, %s126
    %p133 = scmp.eq.s32.totalorder %s22, 1
    %p134 = por %p132, %p133
    %p135 = scmp.ne.s32.totalorder %s126, %s127
    %p136 = scmp.eq.s32.totalorder %s22, 0
    %p137 = por %p135, %p136
    %p138 = scmp.ne.s32.totalorder %s126, %s127
    %p139 = scmp.eq.s32.totalorder %s23, 1
    %p140 = por %p138, %p139
    %p142 = scmp.ne.s32.totalorder %s127, %s141
    %p143 = scmp.eq.s32.totalorder %s23, 0
    %p144 = por %p142, %p143
    %s146 = sadd.s32 %s145, 1
    %p149 = scmp.eq.s32.totalorder %s17, 1
    %p150 = scmp.ne.s32.totalorder %s145, %s147
    %p151 = scmp.eq.s32.totalorder %s17, 0
    %p152 = por %p150, %p151
    %p153 = scmp.ne.s32.totalorder %s145, %s147
    %p154 = scmp.eq.s32.totalorder %s22, 1
    %p155 = por %p153, %p154
    %p156 = scmp.ne.s32.totalorder %s147, %s148
    %p157 = scmp.eq.s32.totalorder %s22, 0
    %p158 = por %p156, %p157
    %p159 = scmp.ne.s32.totalorder %s147, %s148
    %p160 = scmp.eq.s32.totalorder %s23, 1
    %p161 = por %p159, %p160
    %p163 = scmp.ne.s32.totalorder %s148, %s162
    %p164 = scmp.eq.s32.totalorder %s23, 0
    %p165 = por %p163, %p164
    %s167 = sadd.s32 %s166, 1
    %p170 = scmp.eq.s32.totalorder %s17, 1
    %p171 = scmp.ne.s32.totalorder %s166, %s168
    %p172 = scmp.eq.s32.totalorder %s17, 0
    %p173 = por %p171, %p172
    %p174 = scmp.ne.s32.totalorder %s166, %s168
    %p175 = scmp.eq.s32.totalorder %s22, 1
    %p176 = por %p174, %p175
    %p177 = scmp.ne.s32.totalorder %s168, %s169
    %p178 = scmp.eq.s32.totalorder %s22, 0
    %p179 = por %p177, %p178
    %p180 = scmp.ne.s32.totalorder %s168, %s169
    %p181 = scmp.eq.s32.totalorder %s23, 1
    %p182 = por %p180, %p181
    %p184 = scmp.ne.s32.totalorder %s169, %s183
    %p185 = scmp.eq.s32.totalorder %s23, 0
    %p186 = por %p184, %p185
    %s188 = sadd.s32 %s187, 1
    %p191 = scmp.eq.s32.totalorder %s17, 1
    %p192 = scmp.ne.s32.totalorder %s187, %s189
    %p193 = scmp.eq.s32.totalorder %s17, 0
    %p194 = por %p192, %p193
    %p195 = scmp.ne.s32.totalorder %s187, %s189
    %p196 = scmp.eq.s32.totalorder %s22, 1
    %p197 = por %p195, %p196
    %p198 = scmp.ne.s32.totalorder %s189, %s190
    %p199 = scmp.eq.s32.totalorder %s22, 0
    %p200 = por %p198, %p199
    %p201 = scmp.ne.s32.totalorder %s189, %s190
    %p202 = scmp.eq.s32.totalorder %s23, 1
    %p203 = por %p201, %p202
    %p205 = scmp.ne.s32.totalorder %s190, %s204
    %p206 = scmp.eq.s32.totalorder %s23, 0
    %p207 = por %p205, %p206
    %s209 = sadd.s32 %s208, 1
    %p212 = scmp.eq.s32.totalorder %s17, 1
    %p213 = scmp.ne.s32.totalorder %s208, %s210
    %p214 = scmp.eq.s32.totalorder %s17, 0
    %p215 = por %p213, %p214
    %p216 = scmp.ne.s32.totalorder %s208, %s210
    %p217 = scmp.eq.s32.totalorder %s22, 1
    %p218 = por %p216, %p217
    %p219 = scmp.ne.s32.totalorder %s210, %s211
    %p220 = scmp.eq.s32.totalorder %s22, 0
    %p221 = por %p219, %p220
    %p222 = scmp.ne.s32.totalorder %s210, %s211
    %p223 = scmp.eq.s32.totalorder %s23, 1
    %p224 = por %p222, %p223
    %p226 = scmp.ne.s32.totalorder %s211, %s225
    %p227 = scmp.eq.s32.totalorder %s23, 0
    %p228 = por %p226, %p227
    %s230 = sadd.s32 %s229, 1
    %p233 = scmp.eq.s32.totalorder %s17, 1
    %p234 = scmp.ne.s32.totalorder %s229, %s231
    %p235 = scmp.eq.s32.totalorder %s17, 0
    %p236 = por %p234, %p235
    %p237 = scmp.ne.s32.totalorder %s229, %s231
    %p238 = scmp.eq.s32.totalorder %s22, 1
    %p239 = por %p237, %p238
    %p240 = scmp.ne.s32.totalorder %s231, %s232
    %p241 = scmp.eq.s32.totalorder %s22, 0
    %p242 = por %p240, %p241
    %p243 = scmp.ne.s32.totalorder %s231, %s232
    %p244 = scmp.eq.s32.totalorder %s23, 1
    %p245 = por %p243, %p244
    %p247 = scmp.ne.s32.totalorder %s232, %s246
    %p248 = scmp.eq.s32.totalorder %s23, 0
    %p249 = por %p247, %p248
    %s251 = sadd.s32 %s250, 1
    %p254 = scmp.eq.s32.totalorder %s17, 1
    %p255 = scmp.ne.s32.totalorder %s250, %s252
    %p256 = scmp.eq.s32.totalorder %s17, 0
    %p257 = por %p255, %p256
    %p258 = scmp.ne.s32.totalorder %s250, %s252
    %p259 = scmp.eq.s32.totalorder %s22, 1
    %p260 = por %p258, %p259
    %p261 = scmp.ne.s32.totalorder %s252, %s253
    %p262 = scmp.eq.s32.totalorder %s22, 0
    %p263 = por %p261, %p262
    %p264 = scmp.ne.s32.totalorder %s252, %s253
    %p265 = scmp.eq.s32.totalorder %s23, 1
    %p266 = por %p264, %p265
    %p268 = scmp.ne.s32.totalorder %s253, %s267
    %p269 = scmp.eq.s32.totalorder %s23, 0
    %p270 = por %p268, %p269
    %s271 = ssub.s32 %s17, %s24
    %p272 = scmp.eq.s32.totalorder %s271, 0
    %s274 = sadd.s32 %s273, 1
    %s275 = scalar_select %p272, %s273, %s274
    %p278 = pneg %p272
    %p279 = scmp.eq.s32.totalorder %s17, 1
    %p280 = por %p278, %p279
    %p281 = scmp.ne.s32.totalorder %s273, %s276
    %p282 = scmp.eq.s32.totalorder %s17, 0
    %p283 = por %p281, %p282
    %p284 = scmp.ne.s32.totalorder %s273, %s276
    %p285 = scmp.eq.s32.totalorder %s22, 1
    %p286 = por %p284, %p285
    %p287 = scmp.ne.s32.totalorder %s276, %s277
    %p288 = scmp.eq.s32.totalorder %s22, 0
    %p289 = por %p287, %p288
    %p290 = scmp.ne.s32.totalorder %s276, %s277
    %p291 = scmp.eq.s32.totalorder %s23, 1
    %p292 = por %p290, %p291
    %p294 = scmp.ne.s32.totalorder %s277, %s293
    %p295 = scmp.eq.s32.totalorder %s23, 0
    %p296 = por %p294, %p295
    %p297 = scmp.le.s32.totalorder 1, %s17
    %p298 = scmp.lt.s32.totalorder %s17, 3
    %p299 = pnand %p297, %p298
    %p300 = pneg %p299
    // Predicated region
    $region9: #{decoder_shallow_forward.1} parent=5 // pred_check
      _
    $region10: #{decoder_shallow_forward.1} parent=5 // pred_check_branch
      %302 = sbr.rel (%p299) target = $region12
    $region11: #{decoder_shallow_forward.1} parent=5 // pred_region
      %s303 = ssub.s32 %s17, 1
      // Predicated region
      $region13: #{decoder_shallow_forward.1} parent=11 // pred_check
        %p304 = pneg %p116
      $region14: #{decoder_shallow_forward.1} parent=11 // pred_check_branch
        %306 = sbr.rel (%p304) target = $region16
      $region15: #{decoder_shallow_forward.1} parent=11 // pred_region
        _
      $region16: #{decoder_shallow_forward.1} parent=11 // pred_fallthru
        _
      // Predicated region
      $region17: #{decoder_shallow_forward.1} parent=11 // pred_check
        %p307 = pneg %p137
      $region18: #{decoder_shallow_forward.1} parent=11 // pred_check_branch
        %309 = sbr.rel (%p307) target = $region20
      $region19: #{decoder_shallow_forward.1} parent=11 // pred_region
        _
      $region20: #{decoder_shallow_forward.1} parent=11 // pred_fallthru
        _
      // Predicated region
      $region21: #{decoder_shallow_forward.1} parent=11 // pred_check
        %p310 = pneg %p158
      $region22: #{decoder_shallow_forward.1} parent=11 // pred_check_branch
        %312 = sbr.rel (%p310) target = $region24
      $region23: #{decoder_shallow_forward.1} parent=11 // pred_region
        _
      $region24: #{decoder_shallow_forward.1} parent=11 // pred_fallthru
        _
      // Predicated region
      $region25: #{decoder_shallow_forward.1} parent=11 // pred_check
        %p313 = pneg %p179
      $region26: #{decoder_shallow_forward.1} parent=11 // pred_check_branch
        %315 = sbr.rel (%p313) target = $region28
      $region27: #{decoder_shallow_forward.1} parent=11 // pred_region
        _
      $region28: #{decoder_shallow_forward.1} parent=11 // pred_fallthru
        _
      // Predicated region
      $region29: #{decoder_shallow_forward.1} parent=11 // pred_check
        %p316 = pneg %p200
      $region30: #{decoder_shallow_forward.1} parent=11 // pred_check_branch
        %318 = sbr.rel (%p316) target = $region32
      $region31: #{decoder_shallow_forward.1} parent=11 // pred_region
        _
      $region32: #{decoder_shallow_forward.1} parent=11 // pred_fallthru
        _
      // Predicated region
      $region33: #{decoder_shallow_forward.1} parent=11 // pred_check
        %p319 = pneg %p221
      $region34: #{decoder_shallow_forward.1} parent=11 // pred_check_branch
        %321 = sbr.rel (%p319) target = $region36
      $region35: #{decoder_shallow_forward.1} parent=11 // pred_region
        _
      $region36: #{decoder_shallow_forward.1} parent=11 // pred_fallthru
        _
      // Predicated region
      $region37: #{decoder_shallow_forward.1} parent=11 // pred_check
        %p322 = pneg %p242
      $region38: #{decoder_shallow_forward.1} parent=11 // pred_check_branch
        %324 = sbr.rel (%p322) target = $region40
      $region39: #{decoder_shallow_forward.1} parent=11 // pred_region
        _
      $region40: #{decoder_shallow_forward.1} parent=11 // pred_fallthru
        _
      // Predicated region
      $region41: #{decoder_shallow_forward.1} parent=11 // pred_check
        %p325 = pneg %p263
      $region42: #{decoder_shallow_forward.1} parent=11 // pred_check_branch
        %327 = sbr.rel (%p325) target = $region44
      $region43: #{decoder_shallow_forward.1} parent=11 // pred_region
        _
      $region44: #{decoder_shallow_forward.1} parent=11 // pred_fallthru
        _
    $region12: #{decoder_shallow_forward.1} parent=5 // pred_fallthru
      _
    %p328 = scmp.lt.s32.totalorder %s17, 2
    // Predicated region
    $region45: #{decoder_shallow_forward.1} parent=5 // pred_check
      %p329 = pneg %p328
    $region46: #{decoder_shallow_forward.1} parent=5 // pred_check_branch
      %331 = sbr.rel (%p329) target = $region48
    $region47: #{decoder_shallow_forward.1} parent=5 // pred_region
      // Predicated region
      $region49: #{decoder_shallow_forward.1} parent=47 // pred_check
        %p332 = pneg %p37
      $region50: #{decoder_shallow_forward.1} parent=47 // pred_check_branch
        %334 = sbr.rel (%p332) target = $region52
      $region51: #{decoder_shallow_forward.1} parent=47 // pred_region
        %p335 = scmp.lt.s32.totalorder %s17, 1
        %s336 = scalar_select %p335, %s17, 1
        %s337 = smul.addr %s336, 8
        %s338 = smul.addr %s337, 8
        %s339 = scalar_lea.vmem %s0, %s338
      $region52: #{decoder_shallow_forward.1} parent=47 // pred_fallthru
        _
      // Predicated region
      $region53: #{decoder_shallow_forward.1} parent=47 // pred_check
        %p340 = pneg %p63
      $region54: #{decoder_shallow_forward.1} parent=47 // pred_check_branch
        %342 = sbr.rel (%p340) target = $region56
      $region55: #{decoder_shallow_forward.1} parent=47 // pred_region
        %p343 = scmp.lt.s32.totalorder %s17, 1
        %s344 = scalar_select %p343, %s17, 1
        %s345 = smul.addr %s344, 8
        %s346 = smul.addr %s345, 8
        %s347 = scalar_lea.vmem %s1, %s346
      $region56: #{decoder_shallow_forward.1} parent=47 // pred_fallthru
        _
      // Predicated region
      $region57: #{decoder_shallow_forward.1} parent=47 // pred_check
        %p348 = pneg %p89
      $region58: #{decoder_shallow_forward.1} parent=47 // pred_check_branch
        %350 = sbr.rel (%p348) target = $region60
      $region59: #{decoder_shallow_forward.1} parent=47 // pred_region
        %p351 = scmp.lt.s32.totalorder %s17, 1
        %s352 = scalar_select %p351, %s17, 1
        %s353 = smul.addr %s352, 32
        %s354 = smul.addr %s353, 8
        %s355 = scalar_lea.vmem %s2, %s354
      $region60: #{decoder_shallow_forward.1} parent=47 // pred_fallthru
        _
    $region48: #{decoder_shallow_forward.1} parent=5 // pred_fallthru
      _
    %p356 = scmp.le.s32.totalorder 1, %s17
    %p357 = scmp.lt.s32.totalorder %s17, 3
    %p358 = pnand %p356, %p357
    %p359 = pneg %p358
    // Predicated region
    $region61: #{decoder_shallow_forward.1} parent=5 // pred_check
      _
    $region62: #{decoder_shallow_forward.1} parent=5 // pred_check_branch
      %361 = sbr.rel (%p358) target = $region64
    $region63: #{decoder_shallow_forward.1} parent=5 // pred_region
      %s362 = ssub.s32 %s17, 1
      %p363 = scmp.lt.s32.totalorder %s22, 1
      %s364 = scalar_select %p363, %s22, 1
      %s365 = smul.addr %s364, 8
      %s366 = smul.addr %s365, 8
      %s367 = scalar_lea.vmem %s0, %s366
      %p368 = pneg %p43
      %p369 = pneg %p40
      %p370 = scmp.lt.s32.totalorder %s22, 1
      %s371 = scalar_select %p370, %s22, 1
      %s372 = smul.addr %s371, 8
      %s373 = smul.addr %s372, 8
      %s374 = scalar_lea.vmem %s1, %s373
      %p375 = pneg %p69
      %p376 = pneg %p66
      %p377 = scmp.lt.s32.totalorder %s22, 1
      %s378 = scalar_select %p377, %s22, 1
      %s379 = smul.addr %s378, 32
      %s380 = smul.addr %s379, 8
      %s381 = scalar_lea.vmem %s2, %s380
      %p382 = pneg %p95
      %p383 = pneg %p92
      %p384 = pneg %p116
      %p385 = pneg %p113
      %p386 = pneg %p137
      %p387 = pneg %p134
      %p388 = pneg %p158
      %p389 = pneg %p155
      %p390 = pneg %p179
      %p391 = pneg %p176
      %p392 = pneg %p200
      %p393 = pneg %p197
      %p394 = pneg %p221
      %p395 = pneg %p218
      %p396 = pneg %p242
      %p397 = pneg %p239
      %p398 = pneg %p263
      %p399 = pneg %p260
      %p400 = pneg %p289
      %p401 = pneg %p286
      %p402 = scmp.lt.s32.totalorder %s22, 1
      %s403 = scalar_select %p402, %s22, 1
      %s404 = smul.addr %s403, 32
      %s405 = smul.addr %s404, 8
      %s406 = scalar_lea.vmem %s11, %s405
      %p407 = scmp.lt.s32.totalorder %s22, 1
      %s408 = scalar_select %p407, %s22, 1
      %s409 = smul.addr %s408, 8
      %s410 = smul.addr %s409, 8
      %s411 = scalar_lea.vmem %s0, %s410
      %p412 = scmp.lt.s32.totalorder %s22, 1
      %s413 = scalar_select %p412, %s22, 1
      %s414 = smul.addr %s413, 8
      %s415 = smul.addr %s414, 8
      %s416 = scalar_lea.vmem %s1, %s415
      %p417 = scmp.lt.s32.totalorder %s22, 1
      %s418 = scalar_select %p417, %s22, 1
      %s419 = smul.addr %s418, 32
      %s420 = smul.addr %s419, 8
      %s421 = scalar_lea.vmem %s2, %s420
      %p422 = scmp.lt.s32.totalorder %s22, 1
      %s423 = scalar_select %p422, %s22, 1
      %s424 = smul.addr %s423, 32
      %s425 = smul.addr %s424, 8
      %s426 = scalar_lea.vmem %s11, %s425
      %vm427 = vcmask 130048
      %428 = vst.msk [vmem:[#allocation2] sm:$0xff] %vm427, 0.0
      %vm429 = vcmask 123904
      %430 = vst.msk [vmem:[#allocation2 + $0x8] sm:$0x3] %vm429, 0.0
      %431 = vst.msk [vmem:[#allocation2 + $0x10] sm:$0xff] %vm427, 0.0
      %432 = vst.msk [vmem:[#allocation2 + $0x18] sm:$0x3] %vm429, 0.0
      %433 = vst.msk [vmem:[#allocation2 + $0x20] sm:$0xff] %vm427, 0.0
      %434 = vst.msk [vmem:[#allocation2 + $0x28] sm:$0x3] %vm429, 0.0
      %435 = vst.msk [vmem:[#allocation2 + $0x30] sm:$0xff] %vm427, 0.0
      %436 = vst.msk [vmem:[#allocation2 + $0x38] sm:$0x3] %vm429, 0.0
      %437 = vst.msk [vmem:[#allocation2 + $0x40] sm:$0xff] %vm427, 0.0
      %438 = vst.msk [vmem:[#allocation2 + $0x48] sm:$0x3] %vm429, 0.0
      %439 = vst.msk [vmem:[#allocation2 + $0x50] sm:$0xff] %vm427, 0.0
      %440 = vst.msk [vmem:[#allocation2 + $0x58] sm:$0x3] %vm429, 0.0
      %441 = vst.msk [vmem:[#allocation2 + $0x60] sm:$0xff] %vm427, 0.0
      %442 = vst.msk [vmem:[#allocation2 + $0x68] sm:$0x3] %vm429, 0.0
      %443 = vst.msk [vmem:[#allocation2 + $0x70] sm:$0xff] %vm427, 0.0
      %444 = vst.msk [vmem:[#allocation2 + $0x78] sm:$0x3] %vm429, 0.0
      %445 = vst.msk [vmem:[#allocation2 + $0x80] sm:$0xff] %vm427, 0.0
      %446 = vst.msk [vmem:[#allocation2 + $0x88] sm:$0x3] %vm429, 0.0
      %447 = vst.msk [vmem:[#allocation2 + $0x90] sm:$0xff] %vm427, 0.0
      %448 = vst.msk [vmem:[#allocation2 + $0x98] sm:$0x3] %vm429, 0.0
      %v449 = vld [vmem:[%s411] sm:$0xff]
      %v450 = vld [vmem:[%s411 + $0x8] sm:$0xff]
      %v451 = vld [vmem:[%s411 + $0x10] sm:$0xff]
      %v452 = vld [vmem:[%s411 + $0x18] sm:$0xff]
      %v453 = vld [vmem:[%s411 + $0x20] sm:$0xff]
      %v454 = vld [vmem:[%s411 + $0x28] sm:$0xff]
      %v455 = vld [vmem:[%s411 + $0x30] sm:$0xff]
      %v456 = vld [vmem:[%s411 + $0x38] sm:$0xff]
      %s457 = scalar_lea.vmem [#allocation2], 16
      %458 = vst.msk [vmem:[%s457 + $0x1] sm:$0xff] %vm427, %v449
      %459 = vst.msk [vmem:[%s457 + $0x11] sm:$0xff] %vm427, %v450
      %460 = vst.msk [vmem:[%s457 + $0x21] sm:$0xff] %vm427, %v451
      %461 = vst.msk [vmem:[%s457 + $0x31] sm:$0xff] %vm427, %v452
      %462 = vst.msk [vmem:[%s457 + $0x41] sm:$0xff] %vm427, %v453
      %463 = vst.msk [vmem:[%s457 + $0x51] sm:$0xff] %vm427, %v454
      %464 = vst.msk [vmem:[%s457 + $0x61] sm:$0xff] %vm427, %v455
      %465 = vst.msk [vmem:[%s457 + $0x71] sm:$0xff] %vm427, %v456
      %v466 = vld [vmem:[#allocation2] sm:$0xff]
      %v467 = vld [vmem:[#allocation2 + $0x10] sm:$0xff]
      %v468 = vld [vmem:[#allocation2 + $0x20] sm:$0xff]
      %v469 = vld [vmem:[#allocation2 + $0x30] sm:$0xff]
      %v470 = vld [vmem:[#allocation2 + $0x40] sm:$0xff]
      %v471 = vld [vmem:[#allocation2 + $0x50] sm:$0xff]
      %v472 = vld [vmem:[#allocation2 + $0x60] sm:$0xff]
      %v473 = vld [vmem:[#allocation2 + $0x70] sm:$0xff]
      %v474 = vld [vmem:[#allocation2 + $0x1] sm:$0xff]
      %v475 = vld [vmem:[#allocation2 + $0x11] sm:$0xff]
      %v476 = vld [vmem:[#allocation2 + $0x21] sm:$0xff]
      %v477 = vld [vmem:[#allocation2 + $0x31] sm:$0xff]
      %v478 = vld [vmem:[#allocation2 + $0x41] sm:$0xff]
      %v479 = vld [vmem:[#allocation2 + $0x51] sm:$0xff]
      %v480 = vld [vmem:[#allocation2 + $0x61] sm:$0xff]
      %v481 = vld [vmem:[#allocation2 + $0x71] sm:$0xff]
      %v482 = vld [vmem:[#allocation2 + $0x2] sm:$0xff]
      %v483 = vld [vmem:[#allocation2 + $0x12] sm:$0xff]
      %v484 = vld [vmem:[#allocation2 + $0x22] sm:$0xff]
      %v485 = vld [vmem:[#allocation2 + $0x32] sm:$0xff]
      %v486 = vld [vmem:[#allocation2 + $0x42] sm:$0xff]
      %v487 = vld [vmem:[#allocation2 + $0x52] sm:$0xff]
      %v488 = vld [vmem:[#allocation2 + $0x62] sm:$0xff]
      %v489 = vld [vmem:[#allocation2 + $0x72] sm:$0xff]
      %v490 = vld [vmem:[%s457] sm:$0xff]
      %v491 = vld [vmem:[%s457 + $0x10] sm:$0xff]
      %v492 = vld [vmem:[%s457 + $0x20] sm:$0xff]
      %v493 = vld [vmem:[%s457 + $0x30] sm:$0xff]
      %v494 = vld [vmem:[%s457 + $0x40] sm:$0xff]
      %v495 = vld [vmem:[%s457 + $0x50] sm:$0xff]
      %v496 = vld [vmem:[%s457 + $0x60] sm:$0xff]
      %v497 = vld [vmem:[%s457 + $0x70] sm:$0xff]
      %v498 = vld [vmem:[%s457 + $0x1] sm:$0xff]
      %v499 = vld [vmem:[%s457 + $0x11] sm:$0xff]
      %v500 = vld [vmem:[%s457 + $0x21] sm:$0xff]
      %v501 = vld [vmem:[%s457 + $0x31] sm:$0xff]
      %v502 = vld [vmem:[%s457 + $0x41] sm:$0xff]
      %v503 = vld [vmem:[%s457 + $0x51] sm:$0xff]
      %v504 = vld [vmem:[%s457 + $0x61] sm:$0xff]
      %v505 = vld [vmem:[%s457 + $0x71] sm:$0xff]
      %v506 = vld [vmem:[%s457 + $0x2] sm:$0xff]
      %v507 = vld [vmem:[%s457 + $0x12] sm:$0xff]
      %v508 = vld [vmem:[%s457 + $0x22] sm:$0xff]
      %v509 = vld [vmem:[%s457 + $0x32] sm:$0xff]
      %v510 = vld [vmem:[%s457 + $0x42] sm:$0xff]
      %v511 = vld [vmem:[%s457 + $0x52] sm:$0xff]
      %v512 = vld [vmem:[%s457 + $0x62] sm:$0xff]
      %v513 = vld [vmem:[%s457 + $0x72] sm:$0xff]
      %s514 = scalar_lea.vmem [#allocation2], 32
      %v515 = vld [vmem:[%s514] sm:$0xff]
      %v516 = vld [vmem:[%s514 + $0x10] sm:$0xff]
      %v517 = vld [vmem:[%s514 + $0x20] sm:$0xff]
      %v518 = vld [vmem:[%s514 + $0x30] sm:$0xff]
      %v519 = vld [vmem:[%s514 + $0x40] sm:$0xff]
      %v520 = vld [vmem:[%s514 + $0x50] sm:$0xff]
      %v521 = vld [vmem:[%s514 + $0x60] sm:$0xff]
      %v522 = vld [vmem:[%s514 + $0x70] sm:$0xff]
      %v523 = vld [vmem:[%s514 + $0x1] sm:$0xff]
      %v524 = vld [vmem:[%s514 + $0x11] sm:$0xff]
      %v525 = vld [vmem:[%s514 + $0x21] sm:$0xff]
      %v526 = vld [vmem:[%s514 + $0x31] sm:$0xff]
      %v527 = vld [vmem:[%s514 + $0x41] sm:$0xff]
      %v528 = vld [vmem:[%s514 + $0x51] sm:$0xff]
      %v529 = vld [vmem:[%s514 + $0x61] sm:$0xff]
      %v530 = vld [vmem:[%s514 + $0x71] sm:$0xff]
      %v531 = vld [vmem:[%s514 + $0x2] sm:$0xff]
      %v532 = vld [vmem:[%s514 + $0x12] sm:$0xff]
      %v533 = vld [vmem:[%s514 + $0x22] sm:$0xff]
      %v534 = vld [vmem:[%s514 + $0x32] sm:$0xff]
      %v535 = vld [vmem:[%s514 + $0x42] sm:$0xff]
      %v536 = vld [vmem:[%s514 + $0x52] sm:$0xff]
      %v537 = vld [vmem:[%s514 + $0x62] sm:$0xff]
      %v538 = vld [vmem:[%s514 + $0x72] sm:$0xff]
      %547 = vrot.lane.b32.xlu0 %v474, 16
      %v548 = vpop.permute.xlu0 %547
      %549 = vrot.lane.b32.xlu0 %v475, 16
      %v550 = vpop.permute.xlu0 %549
      %551 = vrot.lane.b32.xlu0 %v476, 16
      %v552 = vpop.permute.xlu0 %551
      %553 = vrot.lane.b32.xlu0 %v477, 16
      %v554 = vpop.permute.xlu0 %553
      %555 = vrot.lane.b32.xlu0 %v478, 16
      %v556 = vpop.permute.xlu0 %555
      %557 = vrot.lane.b32.xlu0 %v479, 16
      %v558 = vpop.permute.xlu0 %557
      %559 = vrot.lane.b32.xlu0 %v480, 16
      %v560 = vpop.permute.xlu0 %559
      %561 = vrot.lane.b32.xlu0 %v481, 16
      %v562 = vpop.permute.xlu0 %561
      %579 = vrot.lane.b32.xlu0 %v482, 32
      %v580 = vpop.permute.xlu0 %579
      %581 = vrot.lane.b32.xlu0 %v483, 32
      %v582 = vpop.permute.xlu0 %581
      %583 = vrot.lane.b32.xlu0 %v484, 32
      %v584 = vpop.permute.xlu0 %583
      %585 = vrot.lane.b32.xlu0 %v485, 32
      %v586 = vpop.permute.xlu0 %585
      %587 = vrot.lane.b32.xlu0 %v486, 32
      %v588 = vpop.permute.xlu0 %587
      %589 = vrot.lane.b32.xlu0 %v487, 32
      %v590 = vpop.permute.xlu0 %589
      %591 = vrot.lane.b32.xlu0 %v488, 32
      %v592 = vpop.permute.xlu0 %591
      %593 = vrot.lane.b32.xlu0 %v489, 32
      %v594 = vpop.permute.xlu0 %593
      %611 = vrot.lane.b32.xlu0 %v490, 48
      %v612 = vpop.permute.xlu0 %611
      %613 = vrot.lane.b32.xlu0 %v491, 48
      %v614 = vpop.permute.xlu0 %613
      %615 = vrot.lane.b32.xlu0 %v492, 48
      %v616 = vpop.permute.xlu0 %615
      %617 = vrot.lane.b32.xlu0 %v493, 48
      %v618 = vpop.permute.xlu0 %617
      %619 = vrot.lane.b32.xlu0 %v494, 48
      %v620 = vpop.permute.xlu0 %619
      %621 = vrot.lane.b32.xlu0 %v495, 48
      %v622 = vpop.permute.xlu0 %621
      %623 = vrot.lane.b32.xlu0 %v496, 48
      %v624 = vpop.permute.xlu0 %623
      %625 = vrot.lane.b32.xlu0 %v497, 48
      %v626 = vpop.permute.xlu0 %625
      %643 = vrot.lane.b32.xlu0 %v498, 64
      %v644 = vpop.permute.xlu0 %643
      %645 = vrot.lane.b32.xlu0 %v499, 64
      %v646 = vpop.permute.xlu0 %645
      %647 = vrot.lane.b32.xlu0 %v500, 64
      %v648 = vpop.permute.xlu0 %647
      %649 = vrot.lane.b32.xlu0 %v501, 64
      %v650 = vpop.permute.xlu0 %649
      %651 = vrot.lane.b32.xlu0 %v502, 64
      %v652 = vpop.permute.xlu0 %651
      %653 = vrot.lane.b32.xlu0 %v503, 64
      %v654 = vpop.permute.xlu0 %653
      %655 = vrot.lane.b32.xlu0 %v504, 64
      %v656 = vpop.permute.xlu0 %655
      %657 = vrot.lane.b32.xlu0 %v505, 64
      %v658 = vpop.permute.xlu0 %657
      %675 = vrot.lane.b32.xlu0 %v506, 80
      %v676 = vpop.permute.xlu0 %675
      %677 = vrot.lane.b32.xlu0 %v507, 80
      %v678 = vpop.permute.xlu0 %677
      %679 = vrot.lane.b32.xlu0 %v508, 80
      %v680 = vpop.permute.xlu0 %679
      %681 = vrot.lane.b32.xlu0 %v509, 80
      %v682 = vpop.permute.xlu0 %681
      %683 = vrot.lane.b32.xlu0 %v510, 80
      %v684 = vpop.permute.xlu0 %683
      %685 = vrot.lane.b32.xlu0 %v511, 80
      %v686 = vpop.permute.xlu0 %685
      %687 = vrot.lane.b32.xlu0 %v512, 80
      %v688 = vpop.permute.xlu0 %687
      %689 = vrot.lane.b32.xlu0 %v513, 80
      %v690 = vpop.permute.xlu0 %689
      %707 = vrot.lane.b32.xlu0 %v515, 96
      %v708 = vpop.permute.xlu0 %707
      %709 = vrot.lane.b32.xlu0 %v516, 96
      %v710 = vpop.permute.xlu0 %709
      %711 = vrot.lane.b32.xlu0 %v517, 96
      %v712 = vpop.permute.xlu0 %711
      %713 = vrot.lane.b32.xlu0 %v518, 96
      %v714 = vpop.permute.xlu0 %713
      %715 = vrot.lane.b32.xlu0 %v519, 96
      %v716 = vpop.permute.xlu0 %715
      %717 = vrot.lane.b32.xlu0 %v520, 96
      %v718 = vpop.permute.xlu0 %717
      %719 = vrot.lane.b32.xlu0 %v521, 96
      %v720 = vpop.permute.xlu0 %719
      %721 = vrot.lane.b32.xlu0 %v522, 96
      %v722 = vpop.permute.xlu0 %721
      %739 = vrot.lane.b32.xlu0 %v523, 112
      %v740 = vpop.permute.xlu0 %739
      %741 = vrot.lane.b32.xlu0 %v524, 112
      %v742 = vpop.permute.xlu0 %741
      %743 = vrot.lane.b32.xlu0 %v525, 112
      %v744 = vpop.permute.xlu0 %743
      %745 = vrot.lane.b32.xlu0 %v526, 112
      %v746 = vpop.permute.xlu0 %745
      %747 = vrot.lane.b32.xlu0 %v527, 112
      %v748 = vpop.permute.xlu0 %747
      %749 = vrot.lane.b32.xlu0 %v528, 112
      %v750 = vpop.permute.xlu0 %749
      %751 = vrot.lane.b32.xlu0 %v529, 112
      %v752 = vpop.permute.xlu0 %751
      %753 = vrot.lane.b32.xlu0 %v530, 112
      %v754 = vpop.permute.xlu0 %753
      %v763 = vsel %vm427, %v466, %v548
      %v764 = vsel %vm427, %v467, %v550
      %v765 = vsel %vm427, %v468, %v552
      %v766 = vsel %vm427, %v469, %v554
      %v767 = vsel %vm427, %v470, %v556
      %v768 = vsel %vm427, %v471, %v558
      %v769 = vsel %vm427, %v472, %v560
      %v770 = vsel %vm427, %v473, %v562
      %vm771 = vcmask 261120
      %v772 = vsel %vm771, %v763, %v580
      %v773 = vsel %vm771, %v764, %v582
      %v774 = vsel %vm771, %v765, %v584
      %v775 = vsel %vm771, %v766, %v586
      %v776 = vsel %vm771, %v767, %v588
      %v777 = vsel %vm771, %v768, %v590
      %v778 = vsel %vm771, %v769, %v592
      %v779 = vsel %vm771, %v770, %v594
      %vm780 = vcmask 392192
      %v781 = vsel %vm780, %v772, %v612
      %v782 = vsel %vm780, %v773, %v614
      %v783 = vsel %vm780, %v774, %v616
      %v784 = vsel %vm780, %v775, %v618
      %v785 = vsel %vm780, %v776, %v620
      %v786 = vsel %vm780, %v777, %v622
      %v787 = vsel %vm780, %v778, %v624
      %v788 = vsel %vm780, %v779, %v626
      %vm789 = vcmask 523264
      %v790 = vsel %vm789, %v781, %v644
      %v791 = vsel %vm789, %v782, %v646
      %v792 = vsel %vm789, %v783, %v648
      %v793 = vsel %vm789, %v784, %v650
      %v794 = vsel %vm789, %v785, %v652
      %v795 = vsel %vm789, %v786, %v654
      %v796 = vsel %vm789, %v787, %v656
      %v797 = vsel %vm789, %v788, %v658
      %vm798 = vcmask 654336
      %v799 = vsel %vm798, %v790, %v676
      %v800 = vsel %vm798, %v791, %v678
      %v801 = vsel %vm798, %v792, %v680
      %v802 = vsel %vm798, %v793, %v682
      %v803 = vsel %vm798, %v794, %v684
      %v804 = vsel %vm798, %v795, %v686
      %v805 = vsel %vm798, %v796, %v688
      %v806 = vsel %vm798, %v797, %v690
      %vm807 = vcmask 785408
      %v808 = vsel %vm807, %v799, %v708
      %v809 = vsel %vm807, %v800, %v710
      %v810 = vsel %vm807, %v801, %v712
      %v811 = vsel %vm807, %v802, %v714
      %v812 = vsel %vm807, %v803, %v716
      %v813 = vsel %vm807, %v804, %v718
      %v814 = vsel %vm807, %v805, %v720
      %v815 = vsel %vm807, %v806, %v722
      %vm816 = vcmask 916480
      %v817 = vsel %vm816, %v808, %v740
      %v818 = vsel %vm816, %v809, %v742
      %v819 = vsel %vm816, %v810, %v744
      %v820 = vsel %vm816, %v811, %v746
      %v821 = vsel %vm816, %v812, %v748
      %v822 = vsel %vm816, %v813, %v750
      %v823 = vsel %vm816, %v814, %v752
      %v824 = vsel %vm816, %v815, %v754
      %v825 = vld [vmem:[%s3] sm:$0xff]
      %v826 = vld [vmem:[%s3 + $0x8] sm:$0xff]
      %v827 = vld [vmem:[%s3 + $0x10] sm:$0xff]
      %v828 = vld [vmem:[%s3 + $0x18] sm:$0xff]
      %v829 = vld [vmem:[%s3 + $0x20] sm:$0xff]
      %v830 = vld [vmem:[%s3 + $0x28] sm:$0xff]
      %v831 = vld [vmem:[%s3 + $0x30] sm:$0xff]
      %v832 = vld [vmem:[%s3 + $0x38] sm:$0xff]
      %v833 = vld [vmem:[%s3 + $0x40] sm:$0xff]
      %v834 = vld [vmem:[%s3 + $0x48] sm:$0xff]
      %v835 = vld [vmem:[%s3 + $0x50] sm:$0xff]
      %v836 = vld [vmem:[%s3 + $0x58] sm:$0xff]
      %v837 = vld [vmem:[%s3 + $0x60] sm:$0xff]
      %v838 = vld [vmem:[%s3 + $0x68] sm:$0xff]
      %v839 = vld [vmem:[%s3 + $0x70] sm:$0xff]
      %v840 = vld [vmem:[%s3 + $0x78] sm:$0xff]
      %v841 = vld [vmem:[%s3 + $0x80] sm:$0xff]
      %v842 = vld [vmem:[%s3 + $0x88] sm:$0xff]
      %v843 = vld [vmem:[%s4] sm:$0x1]
      %v844 = vperm.slane %v843, 0
      %v846 = vsel %vm427, %v531, 0
      %v849 = vsel %vm427, %v532, 0
      %v852 = vsel %vm427, %v533, 0
      %v855 = vsel %vm427, %v534, 0
      %v858 = vsel %vm427, %v535, 0
      %v861 = vsel %vm427, %v536, 0
      %v864 = vsel %vm427, %v537, 0
      %v867 = vsel %vm427, %v538, 0
      %869 = vmatpush.msra.mxu0 %v840
      %870 = vmatpush.msra.mxu0 %v839
      %871 = vmatpush.msra.mxu0 %v838
      %872 = vmatpush.msra.mxu0 %v837
      %873 = vmatpush.msra.mxu0 %v836
      %874 = vmatpush.msra.mxu0 %v835
      %875 = vmatpush.msra.mxu0 %v834
      %876 = vmatpush.msra.mxu0 %v833
      %877 = vmatpush.msra.mxu0 %v832
      %878 = vmatpush.msra.mxu0 %v831
      %879 = vmatpush.msra.mxu0 %v830
      %880 = vmatpush.msra.mxu0 %v829
      %881 = vmatpush.msra.mxu0 %v828
      %882 = vmatpush.msra.mxu0 %v827
      %883 = vmatpush.msra.mxu0 %v826
      %884 = vmatpush.msra.mxu0 %v825
      %885 = vmatmul.f32.gmra.mxu0 %v817
      %v886 = vpop.f32.mrf.mxu0
      %v887 = vadd.f32 %v844, %v886
      %888 = vmatmul.f32.gmra.mxu0 %v818
      %v889 = vpop.f32.mrf.mxu0
      %v890 = vadd.f32 %v844, %v889
      %891 = vmatmul.f32.gmra.mxu0 %v819
      %v892 = vpop.f32.mrf.mxu0
      %v893 = vadd.f32 %v844, %v892
      %894 = vmatmul.f32.gmra.mxu0 %v820
      %v895 = vpop.f32.mrf.mxu0
      %v896 = vadd.f32 %v844, %v895
      %897 = vmatmul.f32.gmra.mxu0 %v821
      %v898 = vpop.f32.mrf.mxu0
      %v899 = vadd.f32 %v844, %v898
      %900 = vmatmul.f32.gmra.mxu0 %v822
      %v901 = vpop.f32.mrf.mxu0
      %v902 = vadd.f32 %v844, %v901
      %903 = vmatmul.f32.gmra.mxu0 %v823
      %v904 = vpop.f32.mrf.mxu0
      %v905 = vadd.f32 %v844, %v904
      %906 = vmatmul.f32.gmra.mxu0 %v824
      %v907 = vpop.f32.mrf.mxu0
      %v908 = vadd.f32 %v844, %v907
      %909 = vdwg.mxu0
      %910 = vmatpush.msra.mxu0 0.0
      %911 = vmatpush.msra.mxu0 0.0
      %912 = vmatpush.msra.mxu0 0.0
      %913 = vmatpush.msra.mxu0 0.0
      %914 = vmatpush.msra.mxu0 0.0
      %915 = vmatpush.msra.mxu0 0.0
      %916 = vmatpush.msra.mxu0 0.0
      %917 = vmatpush.msra.mxu0 0.0
      %918 = vmatpush.msra.mxu0 0.0
      %919 = vmatpush.msra.mxu0 0.0
      %920 = vmatpush.msra.mxu0 0.0
      %921 = vmatpush.msra.mxu0 0.0
      %922 = vmatpush.msra.mxu0 0.0
      %923 = vmatpush.msra.mxu0 0.0
      %924 = vmatpush.msra.mxu0 %v842
      %925 = vmatpush.msra.mxu0 %v841
      %926 = vmatmul.f32.gmra.mxu0 %v846
      %v927 = vpop.f32.mrf.mxu0
      %v928 = vadd.f32 %v887, %v927
      %929 = vmatmul.f32.gmra.mxu0 %v849
      %v930 = vpop.f32.mrf.mxu0
      %v931 = vadd.f32 %v890, %v930
      %932 = vmatmul.f32.gmra.mxu0 %v852
      %v933 = vpop.f32.mrf.mxu0
      %v934 = vadd.f32 %v893, %v933
      %935 = vmatmul.f32.gmra.mxu0 %v855
      %v936 = vpop.f32.mrf.mxu0
      %v937 = vadd.f32 %v896, %v936
      %938 = vmatmul.f32.gmra.mxu0 %v858
      %v939 = vpop.f32.mrf.mxu0
      %v940 = vadd.f32 %v899, %v939
      %941 = vmatmul.f32.gmra.mxu0 %v861
      %v942 = vpop.f32.mrf.mxu0
      %v943 = vadd.f32 %v902, %v942
      %944 = vmatmul.f32.gmra.mxu0 %v864
      %v945 = vpop.f32.mrf.mxu0
      %v946 = vadd.f32 %v905, %v945
      %947 = vmatmul.f32.gmra.mxu0 %v867
      %v948 = vpop.f32.mrf.mxu0
      %v949 = vadd.f32 %v908, %v948
      %950 = vdwg.mxu0
      %v951 = vld [vmem:[%s4 + $0x1] sm:$0x1]
      %v952 = vld [vmem:[%s4 + $0x2] sm:$0x1]
      %v953 = vlaneseq
      %v954 = vand.u32 %v953, 127
      %v955 = vsel %vm427, %v928, 0.0
      %v956 = vsel %vm427, %v931, 0.0
      %v957 = vadd.f32 %v955, %v956
      %v958 = vsel %vm427, %v934, 0.0
      %v959 = vadd.f32 %v957, %v958
      %v960 = vsel %vm427, %v937, 0.0
      %v961 = vadd.f32 %v959, %v960
      %v962 = vsel %vm427, %v940, 0.0
      %v963 = vadd.f32 %v961, %v962
      %v964 = vsel %vm427, %v943, 0.0
      %v965 = vadd.f32 %v963, %v964
      %v966 = vsel %vm427, %v946, 0.0
      %v967 = vadd.f32 %v965, %v966
      %v968 = vsel %vm427, %v949, 0.0
      %v969 = vadd.f32 %v967, %v968
      %v970 = vrot.slane %v969, 4
      %v971 = vadd.f32 %v969, %v970
      %v972 = vrot.slane %v971, 2
      %v973 = vadd.f32 %v971, %v972
      %v974 = vrot.slane %v973, 1
      %v975 = vadd.f32 %v973, %v974
      %vm976 = vcmp.ge.s32.totalorder %v954, 0
      %vm977 = vcmp.lt.s32.totalorder %v954, 8
      %vm978 = vmand %vm976, %vm977
      %v979 = vsel %vm978, %v975, 0.0
      %vm980 = vcmask 122880
      %v981 = vsel %vm980, %v979, 0.0
      %982 = vadd.xlane.f32.xlu0 %v981
      %v983 = vpop.xlane.xlu0 %982
      %v984 = vrot.slane %v983, 4
      %v985 = vadd.f32 %v983, %v984
      %v986 = vrot.slane %v985, 2
      %v987 = vadd.f32 %v985, %v986
      %v988 = vrot.slane %v987, 1
      %v989 = vadd.f32 %v987, %v988
      %s990 = vtos %v989
      %v991 = vrcp.pop 512.0
      %v992 = vmul.f32 512.0, %v991
      %v993 = vsub.f32 1.0, %v992
      %v994 = vmul.f32 %v991, %v993
      %v995 = vadd.f32 %v991, %v994
      %vm996 = vweird.f32 %v991
      %v997 = vsel %vm996, %v991, %v995
      %s998 = vtos %v997
      %s999 = smul.f32 %s990, %s998
      %v1000 = vstv %s999
      %v1001 = vsel %vm978, %v1000, 0.0
      %vm1002 = vcmp.ge.s32.totalorder %v954, 8
      %vm1003 = vcmp.lt.s32.totalorder %v954, 16
      %vm1004 = vmand %vm1002, %vm1003
      %v1005 = vsel %vm1004, %v975, 0.0
      %v1006 = vsel %vm980, %v1005, 0.0
      %1007 = vadd.xlane.f32.xlu0 %v1006
      %v1008 = vpop.xlane.xlu0 %1007
      %v1009 = vrot.slane %v1008, 4
      %v1010 = vadd.f32 %v1008, %v1009
      %v1011 = vrot.slane %v1010, 2
      %v1012 = vadd.f32 %v1010, %v1011
      %v1013 = vrot.slane %v1012, 1
      %v1014 = vadd.f32 %v1012, %v1013
      %s1015 = vtos %v1014
      %v1016 = vrcp.pop 512.0
      %v1017 = vmul.f32 512.0, %v1016
      %v1018 = vsub.f32 1.0, %v1017
      %v1019 = vmul.f32 %v1016, %v1018
      %v1020 = vadd.f32 %v1016, %v1019
      %vm1021 = vweird.f32 %v1016
      %v1022 = vsel %vm1021, %v1016, %v1020
      %s1023 = vtos %v1022
      %s1024 = smul.f32 %s1015, %s1023
      %v1025 = vstv %s1024
      %v1026 = vsel %vm1004, %v1025, %v1001
      %v1027 = vsub.f32 %v928, %v1026
      %v1028 = vsub.f32 %v931, %v1026
      %v1029 = vsub.f32 %v934, %v1026
      %v1030 = vsub.f32 %v937, %v1026
      %v1031 = vsub.f32 %v940, %v1026
      %v1032 = vsub.f32 %v943, %v1026
      %v1033 = vsub.f32 %v946, %v1026
      %v1034 = vsub.f32 %v949, %v1026
      %v1035 = vmul.f32 %v1027, %v1027
      %v1036 = vmul.f32 %v1028, %v1028
      %v1037 = vmul.f32 %v1029, %v1029
      %v1038 = vmul.f32 %v1030, %v1030
      %v1039 = vmul.f32 %v1031, %v1031
      %v1040 = vmul.f32 %v1032, %v1032
      %v1041 = vmul.f32 %v1033, %v1033
      %v1042 = vmul.f32 %v1034, %v1034
      %v1043 = vsel %vm427, %v1035, 0.0
      %v1044 = vsel %vm427, %v1036, 0.0
      %v1045 = vadd.f32 %v1043, %v1044
      %v1046 = vsel %vm427, %v1037, 0.0
      %v1047 = vadd.f32 %v1045, %v1046
      %v1048 = vsel %vm427, %v1038, 0.0
      %v1049 = vadd.f32 %v1047, %v1048
      %v1050 = vsel %vm427, %v1039, 0.0
      %v1051 = vadd.f32 %v1049, %v1050
      %v1052 = vsel %vm427, %v1040, 0.0
      %v1053 = vadd.f32 %v1051, %v1052
      %v1054 = vsel %vm427, %v1041, 0.0
      %v1055 = vadd.f32 %v1053, %v1054
      %v1056 = vsel %vm427, %v1042, 0.0
      %v1057 = vadd.f32 %v1055, %v1056
      %v1058 = vrot.slane %v1057, 4
      %v1059 = vadd.f32 %v1057, %v1058
      %v1060 = vrot.slane %v1059, 2
      %v1061 = vadd.f32 %v1059, %v1060
      %v1062 = vrot.slane %v1061, 1
      %v1063 = vadd.f32 %v1061, %v1062
      %v1064 = vsel %vm978, %v1063, 0.0
      %v1065 = vsel %vm980, %v1064, 0.0
      %1066 = vadd.xlane.f32.xlu0 %v1065
      %v1067 = vpop.xlane.xlu0 %1066
      %v1068 = vrot.slane %v1067, 4
      %v1069 = vadd.f32 %v1067, %v1068
      %v1070 = vrot.slane %v1069, 2
      %v1071 = vadd.f32 %v1069, %v1070
      %v1072 = vrot.slane %v1071, 1
      %v1073 = vadd.f32 %v1071, %v1072
      %s1074 = vtos %v1073
      %v1075 = vrcp.pop 512.0
      %v1076 = vmul.f32 512.0, %v1075
      %v1077 = vsub.f32 1.0, %v1076
      %v1078 = vmul.f32 %v1075, %v1077
      %v1079 = vadd.f32 %v1075, %v1078
      %vm1080 = vweird.f32 %v1075
      %v1081 = vsel %vm1080, %v1075, %v1079
      %s1082 = vtos %v1081
      %s1083 = smul.f32 %s1074, %s1082
      %v1084 = vstv %s1083
      %v1085 = vsel %vm978, %v1084, 0.0
      %v1086 = vsel %vm1004, %v1063, 0.0
      %v1087 = vsel %vm980, %v1086, 0.0
      %1088 = vadd.xlane.f32.xlu0 %v1087
      %v1089 = vpop.xlane.xlu0 %1088
      %v1090 = vrot.slane %v1089, 4
      %v1091 = vadd.f32 %v1089, %v1090
      %v1092 = vrot.slane %v1091, 2
      %v1093 = vadd.f32 %v1091, %v1092
      %v1094 = vrot.slane %v1093, 1
      %v1095 = vadd.f32 %v1093, %v1094
      %s1096 = vtos %v1095
      %v1097 = vrcp.pop 512.0
      %v1098 = vmul.f32 512.0, %v1097
      %v1099 = vsub.f32 1.0, %v1098
      %v1100 = vmul.f32 %v1097, %v1099
      %v1101 = vadd.f32 %v1097, %v1100
      %vm1102 = vweird.f32 %v1097
      %v1103 = vsel %vm1102, %v1097, %v1101
      %s1104 = vtos %v1103
      %s1105 = smul.f32 %s1096, %s1104
      %v1106 = vstv %s1105
      %v1107 = vsel %vm1004, %v1106, %v1085
      %v1108 = vadd.f32 %v1107, 1e-05
      %v1109 = vrsqrt.pop %v1108
      %v1110 = vmul.f32 %v1109, %v1108
      %v1111 = vmul.f32 %v1110, %v1109
      %v1112 = vmul.f32 0.5, %v1111
      %v1113 = vsub.f32 1.5, %v1112
      %v1114 = vmul.f32 %v1109, %v1113
      %vm1115 = vweird.f32 %v1108
      %vm1116 = vweird.f32 %v1109
      %vm1117 = vmor %vm1115, %vm1116
      %v1118 = vsel %vm1117, %v1109, %v1114
      %v1119 = vmul.f32 %v1027, %v1118
      %v1120 = vmul.f32 %v1028, %v1118
      %v1121 = vmul.f32 %v1029, %v1118
      %v1122 = vmul.f32 %v1030, %v1118
      %v1123 = vmul.f32 %v1031, %v1118
      %v1124 = vmul.f32 %v1032, %v1118
      %v1125 = vmul.f32 %v1033, %v1118
      %v1126 = vmul.f32 %v1034, %v1118
      %v1127 = vperm.slane %v951, 0
      %v1128 = vmul.f32 %v1119, %v1127
      %v1129 = vmul.f32 %v1120, %v1127
      %v1130 = vmul.f32 %v1121, %v1127
      %v1131 = vmul.f32 %v1122, %v1127
      %v1132 = vmul.f32 %v1123, %v1127
      %v1133 = vmul.f32 %v1124, %v1127
      %v1134 = vmul.f32 %v1125, %v1127
      %v1135 = vmul.f32 %v1126, %v1127
      %v1136 = vperm.slane %v952, 0
      %v1137 = vadd.f32 %v1128, %v1136
      %v1138 = vadd.f32 %v1129, %v1136
      %v1139 = vadd.f32 %v1130, %v1136
      %v1140 = vadd.f32 %v1131, %v1136
      %v1141 = vadd.f32 %v1132, %v1136
      %v1142 = vadd.f32 %v1133, %v1136
      %v1143 = vadd.f32 %v1134, %v1136
      %v1144 = vadd.f32 %v1135, %v1136
      %vm1145 = vcmp.gt.f32.partialorder %v1137, 0.0
      %vm1146 = vcmp.gt.f32.partialorder %v1138, 0.0
      %vm1147 = vcmp.gt.f32.partialorder %v1139, 0.0
      %vm1148 = vcmp.gt.f32.partialorder %v1140, 0.0
      %vm1149 = vcmp.gt.f32.partialorder %v1141, 0.0
      %vm1150 = vcmp.gt.f32.partialorder %v1142, 0.0
      %vm1151 = vcmp.gt.f32.partialorder %v1143, 0.0
      %vm1152 = vcmp.gt.f32.partialorder %v1144, 0.0
      %v1153 = vmul.f32 %v1137, 0.2
      %v1154 = vmul.f32 %v1138, 0.2
      %v1155 = vmul.f32 %v1139, 0.2
      %v1156 = vmul.f32 %v1140, 0.2
      %v1157 = vmul.f32 %v1141, 0.2
      %v1158 = vmul.f32 %v1142, 0.2
      %v1159 = vmul.f32 %v1143, 0.2
      %v1160 = vmul.f32 %v1144, 0.2
      %v1161 = vsel %vm1145, %v1137, %v1153
      %v1162 = vsel %vm1146, %v1138, %v1154
      %v1163 = vsel %vm1147, %v1139, %v1155
      %v1164 = vsel %vm1148, %v1140, %v1156
      %v1165 = vsel %vm1149, %v1141, %v1157
      %v1166 = vsel %vm1150, %v1142, %v1158
      %v1167 = vsel %vm1151, %v1143, %v1159
      %v1168 = vsel %vm1152, %v1144, %v1160
      %v1169 = vld [vmem:[%s416] sm:$0xff]
      %v1170 = vld [vmem:[%s416 + $0x8] sm:$0xff]
      %v1171 = vld [vmem:[%s416 + $0x10] sm:$0xff]
      %v1172 = vld [vmem:[%s416 + $0x18] sm:$0xff]
      %v1173 = vld [vmem:[%s416 + $0x20] sm:$0xff]
      %v1174 = vld [vmem:[%s416 + $0x28] sm:$0xff]
      %v1175 = vld [vmem:[%s416 + $0x30] sm:$0xff]
      %v1176 = vld [vmem:[%s416 + $0x38] sm:$0xff]
      %1185 = vrot.lane.b32.xlu0 %v1169, 16
      %v1186 = vpop.permute.xlu0 %1185
      %1187 = vrot.lane.b32.xlu0 %v1170, 16
      %v1188 = vpop.permute.xlu0 %1187
      %1189 = vrot.lane.b32.xlu0 %v1171, 16
      %v1190 = vpop.permute.xlu0 %1189
      %1191 = vrot.lane.b32.xlu0 %v1172, 16
      %v1192 = vpop.permute.xlu0 %1191
      %1193 = vrot.lane.b32.xlu0 %v1173, 16
      %v1194 = vpop.permute.xlu0 %1193
      %1195 = vrot.lane.b32.xlu0 %v1174, 16
      %v1196 = vpop.permute.xlu0 %1195
      %1197 = vrot.lane.b32.xlu0 %v1175, 16
      %v1198 = vpop.permute.xlu0 %1197
      %1199 = vrot.lane.b32.xlu0 %v1176, 16
      %v1200 = vpop.permute.xlu0 %1199
      %v1209 = vsel %vm427, %v1161, %v1186
      %v1210 = vsel %vm427, %v1162, %v1188
      %v1211 = vsel %vm427, %v1163, %v1190
      %v1212 = vsel %vm427, %v1164, %v1192
      %v1213 = vsel %vm427, %v1165, %v1194
      %v1214 = vsel %vm427, %v1166, %v1196
      %v1215 = vsel %vm427, %v1167, %v1198
      %v1216 = vsel %vm427, %v1168, %v1200
      %1217 = vst.msk [vmem:[#allocation3] sm:$0xff] %vm771, 0.0
      %vm1218 = vcmask 253952
      %1219 = vst.msk [vmem:[#allocation3 + $0x8] sm:$0x1] %vm1218, 0.0
      %1220 = vst.msk [vmem:[#allocation3 + $0x10] sm:$0xff] %vm771, 0.0
      %1221 = vst.msk [vmem:[#allocation3 + $0x18] sm:$0x1] %vm1218, 0.0
      %1222 = vst.msk [vmem:[#allocation3 + $0x20] sm:$0xff] %vm771, 0.0
      %1223 = vst.msk [vmem:[#allocation3 + $0x28] sm:$0x1] %vm1218, 0.0
      %1224 = vst.msk [vmem:[#allocation3 + $0x30] sm:$0xff] %vm771, 0.0
      %1225 = vst.msk [vmem:[#allocation3 + $0x38] sm:$0x1] %vm1218, 0.0
      %1226 = vst.msk [vmem:[#allocation3 + $0x40] sm:$0xff] %vm771, 0.0
      %1227 = vst.msk [vmem:[#allocation3 + $0x48] sm:$0x1] %vm1218, 0.0
      %1228 = vst.msk [vmem:[#allocation3 + $0x50] sm:$0xff] %vm771, 0.0
      %1229 = vst.msk [vmem:[#allocation3 + $0x58] sm:$0x1] %vm1218, 0.0
      %1230 = vst.msk [vmem:[#allocation3 + $0x60] sm:$0xff] %vm771, 0.0
      %1231 = vst.msk [vmem:[#allocation3 + $0x68] sm:$0x1] %vm1218, 0.0
      %1232 = vst.msk [vmem:[#allocation3 + $0x70] sm:$0xff] %vm771, 0.0
      %1233 = vst.msk [vmem:[#allocation3 + $0x78] sm:$0x1] %vm1218, 0.0
      %1234 = vst.msk [vmem:[#allocation3 + $0x80] sm:$0xff] %vm771, 0.0
      %1235 = vst.msk [vmem:[#allocation3 + $0x88] sm:$0x1] %vm1218, 0.0
      %1236 = vst.msk [vmem:[#allocation3] sm:$0xff] %vm771, %v1209
      %1237 = vst.msk [vmem:[#allocation3 + $0x10] sm:$0xff] %vm771, %v1210
      %1238 = vst.msk [vmem:[#allocation3 + $0x20] sm:$0xff] %vm771, %v1211
      %1239 = vst.msk [vmem:[#allocation3 + $0x30] sm:$0xff] %vm771, %v1212
      %1240 = vst.msk [vmem:[#allocation3 + $0x40] sm:$0xff] %vm771, %v1213
      %1241 = vst.msk [vmem:[#allocation3 + $0x50] sm:$0xff] %vm771, %v1214
      %1242 = vst.msk [vmem:[#allocation3 + $0x60] sm:$0xff] %vm771, %v1215
      %1243 = vst.msk [vmem:[#allocation3 + $0x70] sm:$0xff] %vm771, %v1216
      %v1244 = vld [vmem:[#allocation3 + $0x1] sm:$0xff]
      %v1245 = vld [vmem:[#allocation3 + $0x11] sm:$0xff]
      %v1246 = vld [vmem:[#allocation3 + $0x21] sm:$0xff]
      %v1247 = vld [vmem:[#allocation3 + $0x31] sm:$0xff]
      %v1248 = vld [vmem:[#allocation3 + $0x41] sm:$0xff]
      %v1249 = vld [vmem:[#allocation3 + $0x51] sm:$0xff]
      %v1250 = vld [vmem:[#allocation3 + $0x61] sm:$0xff]
      %v1251 = vld [vmem:[#allocation3 + $0x71] sm:$0xff]
      %s1252 = scalar_lea.vmem [#allocation3], 16
      %v1253 = vld [vmem:[%s1252] sm:$0xff]
      %v1254 = vld [vmem:[%s1252 + $0x10] sm:$0xff]
      %v1255 = vld [vmem:[%s1252 + $0x20] sm:$0xff]
      %v1256 = vld [vmem:[%s1252 + $0x30] sm:$0xff]
      %v1257 = vld [vmem:[%s1252 + $0x40] sm:$0xff]
      %v1258 = vld [vmem:[%s1252 + $0x50] sm:$0xff]
      %v1259 = vld [vmem:[%s1252 + $0x60] sm:$0xff]
      %v1260 = vld [vmem:[%s1252 + $0x70] sm:$0xff]
      %v1261 = vld [vmem:[%s1252 + $0x1] sm:$0xff]
      %v1262 = vld [vmem:[%s1252 + $0x11] sm:$0xff]
      %v1263 = vld [vmem:[%s1252 + $0x21] sm:$0xff]
      %v1264 = vld [vmem:[%s1252 + $0x31] sm:$0xff]
      %v1265 = vld [vmem:[%s1252 + $0x41] sm:$0xff]
      %v1266 = vld [vmem:[%s1252 + $0x51] sm:$0xff]
      %v1267 = vld [vmem:[%s1252 + $0x61] sm:$0xff]
      %v1268 = vld [vmem:[%s1252 + $0x71] sm:$0xff]
      %v1269 = vld [vmem:[%s5] sm:$0xff]
      %v1270 = vld [vmem:[%s5 + $0x8] sm:$0xff]
      %v1271 = vld [vmem:[%s5 + $0x10] sm:$0xff]
      %v1272 = vld [vmem:[%s5 + $0x18] sm:$0xff]
      %v1274 = vsel %vm771, %v1209, 0
      %v1277 = vsel %vm771, %v1210, 0
      %v1280 = vsel %vm771, %v1211, 0
      %v1283 = vsel %vm771, %v1212, 0
      %v1286 = vsel %vm771, %v1213, 0
      %v1289 = vsel %vm771, %v1214, 0
      %v1292 = vsel %vm771, %v1215, 0
      %v1295 = vsel %vm771, %v1216, 0
      %1297 = vmatpush.msra.mxu0 0.0
      %1298 = vmatpush.msra.mxu0 0.0
      %1299 = vmatpush.msra.mxu0 0.0
      %1300 = vmatpush.msra.mxu0 0.0
      %1301 = vmatpush.msra.mxu0 0.0
      %1302 = vmatpush.msra.mxu0 0.0
      %1303 = vmatpush.msra.mxu0 0.0
      %1304 = vmatpush.msra.mxu0 0.0
      %1305 = vmatpush.msra.mxu0 0.0
      %1306 = vmatpush.msra.mxu0 0.0
      %1307 = vmatpush.msra.mxu0 0.0
      %1308 = vmatpush.msra.mxu0 0.0
      %1309 = vmatpush.msra.mxu0 %v1272
      %1310 = vmatpush.msra.mxu0 %v1271
      %1311 = vmatpush.msra.mxu0 %v1270
      %1312 = vmatpush.msra.mxu0 %v1269
      %1313 = vmatmul.f32.gmra.mxu0 %v1274
      %v1314 = vpop.f32.mrf.mxu0
      %v1315 = vadd.f32 0.0, %v1314
      %1316 = vmatmul.f32.gmra.mxu0 %v1277
      %v1317 = vpop.f32.mrf.mxu0
      %v1318 = vadd.f32 0.0, %v1317
      %1319 = vmatmul.f32.gmra.mxu0 %v1280
      %v1320 = vpop.f32.mrf.mxu0
      %v1321 = vadd.f32 0.0, %v1320
      %1322 = vmatmul.f32.gmra.mxu0 %v1283
      %v1323 = vpop.f32.mrf.mxu0
      %v1324 = vadd.f32 0.0, %v1323
      %1325 = vmatmul.f32.gmra.mxu0 %v1286
      %v1326 = vpop.f32.mrf.mxu0
      %v1327 = vadd.f32 0.0, %v1326
      %1328 = vmatmul.f32.gmra.mxu0 %v1289
      %v1329 = vpop.f32.mrf.mxu0
      %v1330 = vadd.f32 0.0, %v1329
      %1331 = vmatmul.f32.gmra.mxu0 %v1292
      %v1332 = vpop.f32.mrf.mxu0
      %v1333 = vadd.f32 0.0, %v1332
      %1334 = vmatmul.f32.gmra.mxu0 %v1295
      %v1335 = vpop.f32.mrf.mxu0
      %v1336 = vadd.f32 0.0, %v1335
      %1337 = vdwg.mxu0
      %1346 = vrot.lane.b32.xlu0 %v1244, 32
      %v1347 = vpop.permute.xlu0 %1346
      %1348 = vrot.lane.b32.xlu0 %v1245, 32
      %v1349 = vpop.permute.xlu0 %1348
      %1350 = vrot.lane.b32.xlu0 %v1246, 32
      %v1351 = vpop.permute.xlu0 %1350
      %1352 = vrot.lane.b32.xlu0 %v1247, 32
      %v1353 = vpop.permute.xlu0 %1352
      %1354 = vrot.lane.b32.xlu0 %v1248, 32
      %v1355 = vpop.permute.xlu0 %1354
      %1356 = vrot.lane.b32.xlu0 %v1249, 32
      %v1357 = vpop.permute.xlu0 %1356
      %1358 = vrot.lane.b32.xlu0 %v1250, 32
      %v1359 = vpop.permute.xlu0 %1358
      %1360 = vrot.lane.b32.xlu0 %v1251, 32
      %v1361 = vpop.permute.xlu0 %1360
      %v1370 = vsel %vm771, %v1209, %v1347
      %v1371 = vsel %vm771, %v1210, %v1349
      %v1372 = vsel %vm771, %v1211, %v1351
      %v1373 = vsel %vm771, %v1212, %v1353
      %v1374 = vsel %vm771, %v1213, %v1355
      %v1375 = vsel %vm771, %v1214, %v1357
      %v1376 = vsel %vm771, %v1215, %v1359
      %v1377 = vsel %vm771, %v1216, %v1361
      %v1378 = vld [vmem:[%s5 + $0x20] sm:$0xff]
      %v1379 = vld [vmem:[%s5 + $0x28] sm:$0xff]
      %v1380 = vld [vmem:[%s5 + $0x30] sm:$0xff]
      %v1381 = vld [vmem:[%s5 + $0x38] sm:$0xff]
      %v1382 = vld [vmem:[%s5 + $0x40] sm:$0xff]
      %v1383 = vld [vmem:[%s5 + $0x48] sm:$0xff]
      %v1384 = vld [vmem:[%s5 + $0x50] sm:$0xff]
      %v1385 = vld [vmem:[%s5 + $0x58] sm:$0xff]
      %v1387 = vsel %vm789, %v1370, 0
      %v1390 = vsel %vm789, %v1371, 0
      %v1393 = vsel %vm789, %v1372, 0
      %v1396 = vsel %vm789, %v1373, 0
      %v1399 = vsel %vm789, %v1374, 0
      %v1402 = vsel %vm789, %v1375, 0
      %v1405 = vsel %vm789, %v1376, 0
      %v1408 = vsel %vm789, %v1377, 0
      %1410 = vmatpush.msra.mxu0 0.0
      %1411 = vmatpush.msra.mxu0 0.0
      %1412 = vmatpush.msra.mxu0 0.0
      %1413 = vmatpush.msra.mxu0 0.0
      %1414 = vmatpush.msra.mxu0 0.0
      %1415 = vmatpush.msra.mxu0 0.0
      %1416 = vmatpush.msra.mxu0 0.0
      %1417 = vmatpush.msra.mxu0 0.0
      %1418 = vmatpush.msra.mxu0 %v1385
      %1419 = vmatpush.msra.mxu0 %v1384
      %1420 = vmatpush.msra.mxu0 %v1383
      %1421 = vmatpush.msra.mxu0 %v1382
      %1422 = vmatpush.msra.mxu0 %v1381
      %1423 = vmatpush.msra.mxu0 %v1380
      %1424 = vmatpush.msra.mxu0 %v1379
      %1425 = vmatpush.msra.mxu0 %v1378
      %1426 = vmatmul.f32.gmra.mxu0 %v1387
      %v1427 = vpop.f32.mrf.mxu0
      %v1428 = vadd.f32 0.0, %v1427
      %1429 = vmatmul.f32.gmra.mxu0 %v1390
      %v1430 = vpop.f32.mrf.mxu0
      %v1431 = vadd.f32 0.0, %v1430
      %1432 = vmatmul.f32.gmra.mxu0 %v1393
      %v1433 = vpop.f32.mrf.mxu0
      %v1434 = vadd.f32 0.0, %v1433
      %1435 = vmatmul.f32.gmra.mxu0 %v1396
      %v1436 = vpop.f32.mrf.mxu0
      %v1437 = vadd.f32 0.0, %v1436
      %1438 = vmatmul.f32.gmra.mxu0 %v1399
      %v1439 = vpop.f32.mrf.mxu0
      %v1440 = vadd.f32 0.0, %v1439
      %1441 = vmatmul.f32.gmra.mxu0 %v1402
      %v1442 = vpop.f32.mrf.mxu0
      %v1443 = vadd.f32 0.0, %v1442
      %1444 = vmatmul.f32.gmra.mxu0 %v1405
      %v1445 = vpop.f32.mrf.mxu0
      %v1446 = vadd.f32 0.0, %v1445
      %1447 = vmatmul.f32.gmra.mxu0 %v1408
      %v1448 = vpop.f32.mrf.mxu0
      %v1449 = vadd.f32 0.0, %v1448
      %1450 = vdwg.mxu0
      %1459 = vrot.lane.b32.xlu0 %v1253, 32
      %v1460 = vpop.permute.xlu0 %1459
      %1461 = vrot.lane.b32.xlu0 %v1254, 32
      %v1462 = vpop.permute.xlu0 %1461
      %1463 = vrot.lane.b32.xlu0 %v1255, 32
      %v1464 = vpop.permute.xlu0 %1463
      %1465 = vrot.lane.b32.xlu0 %v1256, 32
      %v1466 = vpop.permute.xlu0 %1465
      %1467 = vrot.lane.b32.xlu0 %v1257, 32
      %v1468 = vpop.permute.xlu0 %1467
      %1469 = vrot.lane.b32.xlu0 %v1258, 32
      %v1470 = vpop.permute.xlu0 %1469
      %1471 = vrot.lane.b32.xlu0 %v1259, 32
      %v1472 = vpop.permute.xlu0 %1471
      %1473 = vrot.lane.b32.xlu0 %v1260, 32
      %v1474 = vpop.permute.xlu0 %1473
      %v1483 = vsel %vm771, %v1209, %v1460
      %v1484 = vsel %vm771, %v1210, %v1462
      %v1485 = vsel %vm771, %v1211, %v1464
      %v1486 = vsel %vm771, %v1212, %v1466
      %v1487 = vsel %vm771, %v1213, %v1468
      %v1488 = vsel %vm771, %v1214, %v1470
      %v1489 = vsel %vm771, %v1215, %v1472
      %v1490 = vsel %vm771, %v1216, %v1474
      %v1491 = vld [vmem:[%s5 + $0x60] sm:$0xff]
      %v1492 = vld [vmem:[%s5 + $0x68] sm:$0xff]
      %v1493 = vld [vmem:[%s5 + $0x70] sm:$0xff]
      %v1494 = vld [vmem:[%s5 + $0x78] sm:$0xff]
      %v1495 = vld [vmem:[%s5 + $0x80] sm:$0xff]
      %v1496 = vld [vmem:[%s5 + $0x88] sm:$0xff]
      %v1497 = vld [vmem:[%s5 + $0x90] sm:$0xff]
      %v1498 = vld [vmem:[%s5 + $0x98] sm:$0xff]
      %v1500 = vsel %vm789, %v1483, 0
      %v1503 = vsel %vm789, %v1484, 0
      %v1506 = vsel %vm789, %v1485, 0
      %v1509 = vsel %vm789, %v1486, 0
      %v1512 = vsel %vm789, %v1487, 0
      %v1515 = vsel %vm789, %v1488, 0
      %v1518 = vsel %vm789, %v1489, 0
      %v1521 = vsel %vm789, %v1490, 0
      %1523 = vmatpush.msra.mxu0 0.0
      %1524 = vmatpush.msra.mxu0 0.0
      %1525 = vmatpush.msra.mxu0 0.0
      %1526 = vmatpush.msra.mxu0 0.0
      %1527 = vmatpush.msra.mxu0 0.0
      %1528 = vmatpush.msra.mxu0 0.0
      %1529 = vmatpush.msra.mxu0 0.0
      %1530 = vmatpush.msra.mxu0 0.0
      %1531 = vmatpush.msra.mxu0 %v1498
      %1532 = vmatpush.msra.mxu0 %v1497
      %1533 = vmatpush.msra.mxu0 %v1496
      %1534 = vmatpush.msra.mxu0 %v1495
      %1535 = vmatpush.msra.mxu0 %v1494
      %1536 = vmatpush.msra.mxu0 %v1493
      %1537 = vmatpush.msra.mxu0 %v1492
      %1538 = vmatpush.msra.mxu0 %v1491
      %1539 = vmatmul.f32.gmra.mxu0 %v1500
      %v1540 = vpop.f32.mrf.mxu0
      %v1541 = vadd.f32 0.0, %v1540
      %1542 = vmatmul.f32.gmra.mxu0 %v1503
      %v1543 = vpop.f32.mrf.mxu0
      %v1544 = vadd.f32 0.0, %v1543
      %1545 = vmatmul.f32.gmra.mxu0 %v1506
      %v1546 = vpop.f32.mrf.mxu0
      %v1547 = vadd.f32 0.0, %v1546
      %1548 = vmatmul.f32.gmra.mxu0 %v1509
      %v1549 = vpop.f32.mrf.mxu0
      %v1550 = vadd.f32 0.0, %v1549
      %1551 = vmatmul.f32.gmra.mxu0 %v1512
      %v1552 = vpop.f32.mrf.mxu0
      %v1553 = vadd.f32 0.0, %v1552
      %1554 = vmatmul.f32.gmra.mxu0 %v1515
      %v1555 = vpop.f32.mrf.mxu0
      %v1556 = vadd.f32 0.0, %v1555
      %1557 = vmatmul.f32.gmra.mxu0 %v1518
      %v1558 = vpop.f32.mrf.mxu0
      %v1559 = vadd.f32 0.0, %v1558
      %1560 = vmatmul.f32.gmra.mxu0 %v1521
      %v1561 = vpop.f32.mrf.mxu0
      %v1562 = vadd.f32 0.0, %v1561
      %1563 = vdwg.mxu0
      %1564 = vrot.lane.b32.xlu0 %v1253, 64
      %v1565 = vpop.permute.xlu0 %1564
      %1566 = vrot.lane.b32.xlu0 %v1254, 64
      %v1567 = vpop.permute.xlu0 %1566
      %1568 = vrot.lane.b32.xlu0 %v1255, 64
      %v1569 = vpop.permute.xlu0 %1568
      %1570 = vrot.lane.b32.xlu0 %v1256, 64
      %v1571 = vpop.permute.xlu0 %1570
      %1572 = vrot.lane.b32.xlu0 %v1257, 64
      %v1573 = vpop.permute.xlu0 %1572
      %1574 = vrot.lane.b32.xlu0 %v1258, 64
      %v1575 = vpop.permute.xlu0 %1574
      %1576 = vrot.lane.b32.xlu0 %v1259, 64
      %v1577 = vpop.permute.xlu0 %1576
      %1578 = vrot.lane.b32.xlu0 %v1260, 64
      %v1579 = vpop.permute.xlu0 %1578
      %1596 = vrot.lane.b32.xlu0 %v1261, 96
      %v1597 = vpop.permute.xlu0 %1596
      %1598 = vrot.lane.b32.xlu0 %v1262, 96
      %v1599 = vpop.permute.xlu0 %1598
      %1600 = vrot.lane.b32.xlu0 %v1263, 96
      %v1601 = vpop.permute.xlu0 %1600
      %1602 = vrot.lane.b32.xlu0 %v1264, 96
      %v1603 = vpop.permute.xlu0 %1602
      %1604 = vrot.lane.b32.xlu0 %v1265, 96
      %v1605 = vpop.permute.xlu0 %1604
      %1606 = vrot.lane.b32.xlu0 %v1266, 96
      %v1607 = vpop.permute.xlu0 %1606
      %1608 = vrot.lane.b32.xlu0 %v1267, 96
      %v1609 = vpop.permute.xlu0 %1608
      %1610 = vrot.lane.b32.xlu0 %v1268, 96
      %v1611 = vpop.permute.xlu0 %1610
      %v1620 = vsel %vm789, %v1370, %v1565
      %v1621 = vsel %vm789, %v1371, %v1567
      %v1622 = vsel %vm789, %v1372, %v1569
      %v1623 = vsel %vm789, %v1373, %v1571
      %v1624 = vsel %vm789, %v1374, %v1573
      %v1625 = vsel %vm789, %v1375, %v1575
      %v1626 = vsel %vm789, %v1376, %v1577
      %v1627 = vsel %vm789, %v1377, %v1579
      %v1628 = vsel %vm807, %v1620, %v1597
      %v1629 = vsel %vm807, %v1621, %v1599
      %v1630 = vsel %vm807, %v1622, %v1601
      %v1631 = vsel %vm807, %v1623, %v1603
      %v1632 = vsel %vm807, %v1624, %v1605
      %v1633 = vsel %vm807, %v1625, %v1607
      %v1634 = vsel %vm807, %v1626, %v1609
      %v1635 = vsel %vm807, %v1627, %v1611
      %v1636 = vld [vmem:[%s5 + $0xa0] sm:$0xff]
      %v1637 = vld [vmem:[%s5 + $0xa8] sm:$0xff]
      %v1638 = vld [vmem:[%s5 + $0xb0] sm:$0xff]
      %v1639 = vld [vmem:[%s5 + $0xb8] sm:$0xff]
      %v1640 = vld [vmem:[%s5 + $0xc0] sm:$0xff]
      %v1641 = vld [vmem:[%s5 + $0xc8] sm:$0xff]
      %v1642 = vld [vmem:[%s5 + $0xd0] sm:$0xff]
      %v1643 = vld [vmem:[%s5 + $0xd8] sm:$0xff]
      %v1644 = vld [vmem:[%s5 + $0xe0] sm:$0xff]
      %v1645 = vld [vmem:[%s5 + $0xe8] sm:$0xff]
      %v1646 = vld [vmem:[%s5 + $0xf0] sm:$0xff]
      %v1647 = vld [vmem:[%s5 + $0xf8] sm:$0xff]
      %v1648 = vld [vmem:[%s5 + $0x100] sm:$0xff]
      %v1649 = vld [vmem:[%s5 + $0x108] sm:$0xff]
      %v1650 = vld [vmem:[%s5 + $0x110] sm:$0xff]
      %v1651 = vld [vmem:[%s5 + $0x118] sm:$0xff]
      %1652 = vmatpush.msra.mxu0 %v1651
      %1653 = vmatpush.msra.mxu0 %v1650
      %1654 = vmatpush.msra.mxu0 %v1649
      %1655 = vmatpush.msra.mxu0 %v1648
      %1656 = vmatpush.msra.mxu0 %v1647
      %1657 = vmatpush.msra.mxu0 %v1646
      %1658 = vmatpush.msra.mxu0 %v1645
      %1659 = vmatpush.msra.mxu0 %v1644
      %1660 = vmatpush.msra.mxu0 %v1643
      %1661 = vmatpush.msra.mxu0 %v1642
      %1662 = vmatpush.msra.mxu0 %v1641
      %1663 = vmatpush.msra.mxu0 %v1640
      %1664 = vmatpush.msra.mxu0 %v1639
      %1665 = vmatpush.msra.mxu0 %v1638
      %1666 = vmatpush.msra.mxu0 %v1637
      %1667 = vmatpush.msra.mxu0 %v1636
      %1668 = vmatmul.f32.gmra.mxu0 %v1628
      %v1669 = vpop.f32.mrf.mxu0
      %v1670 = vadd.f32 0.0, %v1669
      %1671 = vmatmul.f32.gmra.mxu0 %v1629
      %v1672 = vpop.f32.mrf.mxu0
      %v1673 = vadd.f32 0.0, %v1672
      %1674 = vmatmul.f32.gmra.mxu0 %v1630
      %v1675 = vpop.f32.mrf.mxu0
      %v1676 = vadd.f32 0.0, %v1675
      %1677 = vmatmul.f32.gmra.mxu0 %v1631
      %v1678 = vpop.f32.mrf.mxu0
      %v1679 = vadd.f32 0.0, %v1678
      %1680 = vmatmul.f32.gmra.mxu0 %v1632
      %v1681 = vpop.f32.mrf.mxu0
      %v1682 = vadd.f32 0.0, %v1681
      %1683 = vmatmul.f32.gmra.mxu0 %v1633
      %v1684 = vpop.f32.mrf.mxu0
      %v1685 = vadd.f32 0.0, %v1684
      %1686 = vmatmul.f32.gmra.mxu0 %v1634
      %v1687 = vpop.f32.mrf.mxu0
      %v1688 = vadd.f32 0.0, %v1687
      %1689 = vmatmul.f32.gmra.mxu0 %v1635
      %v1690 = vpop.f32.mrf.mxu0
      %v1691 = vadd.f32 0.0, %v1690
      %1692 = vdwg.mxu0
      %v1693 = vld [vmem:[%s6] sm:$0x1]
      %v1694 = vperm.slane %v1693, 0
      %v1695 = vadd.f32 %v1315, %v1694
      %v1696 = vadd.f32 %v1318, %v1694
      %v1697 = vadd.f32 %v1321, %v1694
      %v1698 = vadd.f32 %v1324, %v1694
      %v1699 = vadd.f32 %v1327, %v1694
      %v1700 = vadd.f32 %v1330, %v1694
      %v1701 = vadd.f32 %v1333, %v1694
      %v1702 = vadd.f32 %v1336, %v1694
      %v1703 = vadd.f32 %v1428, %v1694
      %v1704 = vadd.f32 %v1431, %v1694
      %v1705 = vadd.f32 %v1434, %v1694
      %v1706 = vadd.f32 %v1437, %v1694
      %v1707 = vadd.f32 %v1440, %v1694
      %v1708 = vadd.f32 %v1443, %v1694
      %v1709 = vadd.f32 %v1446, %v1694
      %v1710 = vadd.f32 %v1449, %v1694
      %v1711 = vadd.f32 %v1541, %v1694
      %v1712 = vadd.f32 %v1544, %v1694
      %v1713 = vadd.f32 %v1547, %v1694
      %v1714 = vadd.f32 %v1550, %v1694
      %v1715 = vadd.f32 %v1553, %v1694
      %v1716 = vadd.f32 %v1556, %v1694
      %v1717 = vadd.f32 %v1559, %v1694
      %v1718 = vadd.f32 %v1562, %v1694
      %v1719 = vadd.f32 %v1670, %v1694
      %v1720 = vadd.f32 %v1673, %v1694
      %v1721 = vadd.f32 %v1676, %v1694
      %v1722 = vadd.f32 %v1679, %v1694
      %v1723 = vadd.f32 %v1682, %v1694
      %v1724 = vadd.f32 %v1685, %v1694
      %v1725 = vadd.f32 %v1688, %v1694
      %v1726 = vadd.f32 %v1691, %v1694
      %v1727 = vld [vmem:[%s6 + $0x1] sm:$0x1]
      %v1728 = vld [vmem:[%s6 + $0x2] sm:$0x1]
      %vm1729 = vcmask 64512
      %v1730 = vsel %vm1729, %v1695, 0.0
      %v1731 = vsel %vm1729, %v1696, 0.0
      %v1732 = vadd.f32 %v1730, %v1731
      %v1733 = vsel %vm1729, %v1697, 0.0
      %v1734 = vadd.f32 %v1732, %v1733
      %v1735 = vsel %vm1729, %v1698, 0.0
      %v1736 = vadd.f32 %v1734, %v1735
      %v1737 = vsel %vm1729, %v1699, 0.0
      %v1738 = vadd.f32 %v1736, %v1737
      %v1739 = vsel %vm1729, %v1700, 0.0
      %v1740 = vadd.f32 %v1738, %v1739
      %v1741 = vsel %vm1729, %v1701, 0.0
      %v1742 = vadd.f32 %v1740, %v1741
      %v1743 = vsel %vm1729, %v1702, 0.0
      %v1744 = vadd.f32 %v1742, %v1743
      %v1745 = vsel %vm1729, %v1703, 0.0
      %v1746 = vadd.f32 %v1744, %v1745
      %v1747 = vsel %vm1729, %v1704, 0.0
      %v1748 = vadd.f32 %v1746, %v1747
      %v1749 = vsel %vm1729, %v1705, 0.0
      %v1750 = vadd.f32 %v1748, %v1749
      %v1751 = vsel %vm1729, %v1706, 0.0
      %v1752 = vadd.f32 %v1750, %v1751
      %v1753 = vsel %vm1729, %v1707, 0.0
      %v1754 = vadd.f32 %v1752, %v1753
      %v1755 = vsel %vm1729, %v1708, 0.0
      %v1756 = vadd.f32 %v1754, %v1755
      %v1757 = vsel %vm1729, %v1709, 0.0
      %v1758 = vadd.f32 %v1756, %v1757
      %v1759 = vsel %vm1729, %v1710, 0.0
      %v1760 = vadd.f32 %v1758, %v1759
      %v1761 = vsel %vm1729, %v1711, 0.0
      %v1762 = vadd.f32 %v1760, %v1761
      %v1763 = vsel %vm1729, %v1712, 0.0
      %v1764 = vadd.f32 %v1762, %v1763
      %v1765 = vsel %vm1729, %v1713, 0.0
      %v1766 = vadd.f32 %v1764, %v1765
      %v1767 = vsel %vm1729, %v1714, 0.0
      %v1768 = vadd.f32 %v1766, %v1767
      %v1769 = vsel %vm1729, %v1715, 0.0
      %v1770 = vadd.f32 %v1768, %v1769
      %v1771 = vsel %vm1729, %v1716, 0.0
      %v1772 = vadd.f32 %v1770, %v1771
      %v1773 = vsel %vm1729, %v1717, 0.0
      %v1774 = vadd.f32 %v1772, %v1773
      %v1775 = vsel %vm1729, %v1718, 0.0
      %v1776 = vadd.f32 %v1774, %v1775
      %v1777 = vsel %vm1729, %v1719, 0.0
      %v1778 = vadd.f32 %v1776, %v1777
      %v1779 = vsel %vm1729, %v1720, 0.0
      %v1780 = vadd.f32 %v1778, %v1779
      %v1781 = vsel %vm1729, %v1721, 0.0
      %v1782 = vadd.f32 %v1780, %v1781
      %v1783 = vsel %vm1729, %v1722, 0.0
      %v1784 = vadd.f32 %v1782, %v1783
      %v1785 = vsel %vm1729, %v1723, 0.0
      %v1786 = vadd.f32 %v1784, %v1785
      %v1787 = vsel %vm1729, %v1724, 0.0
      %v1788 = vadd.f32 %v1786, %v1787
      %v1789 = vsel %vm1729, %v1725, 0.0
      %v1790 = vadd.f32 %v1788, %v1789
      %v1791 = vsel %vm1729, %v1726, 0.0
      %v1792 = vadd.f32 %v1790, %v1791
      %v1793 = vrot.slane %v1792, 4
      %v1794 = vadd.f32 %v1792, %v1793
      %v1795 = vrot.slane %v1794, 2
      %v1796 = vadd.f32 %v1794, %v1795
      %v1797 = vrot.slane %v1796, 1
      %v1798 = vadd.f32 %v1796, %v1797
      %vm1799 = vcmp.lt.s32.totalorder %v954, 4
      %vm1800 = vmand %vm976, %vm1799
      %v1801 = vsel %vm1800, %v1798, 0.0
      %vm1802 = vcmask 57344
      %v1803 = vsel %vm1802, %v1801, 0.0
      %1804 = vadd.xlane.f32.xlu0 %v1803
      %v1805 = vpop.xlane.xlu0 %1804
      %v1806 = vrot.slane %v1805, 4
      %v1807 = vadd.f32 %v1805, %v1806
      %v1808 = vrot.slane %v1807, 2
      %v1809 = vadd.f32 %v1807, %v1808
      %v1810 = vrot.slane %v1809, 1
      %v1811 = vadd.f32 %v1809, %v1810
      %s1812 = vtos %v1811
      %v1813 = vrcp.pop 1024.0
      %v1814 = vmul.f32 1024.0, %v1813
      %v1815 = vsub.f32 1.0, %v1814
      %v1816 = vmul.f32 %v1813, %v1815
      %v1817 = vadd.f32 %v1813, %v1816
      %vm1818 = vweird.f32 %v1813
      %v1819 = vsel %vm1818, %v1813, %v1817
      %s1820 = vtos %v1819
      %s1821 = smul.f32 %s1812, %s1820
      %v1822 = vstv %s1821
      %v1823 = vsel %vm1800, %v1822, 0.0
      %vm1824 = vcmp.ge.s32.totalorder %v954, 4
      %vm1825 = vmand %vm1824, %vm977
      %v1826 = vsel %vm1825, %v1798, 0.0
      %v1827 = vsel %vm1802, %v1826, 0.0
      %1828 = vadd.xlane.f32.xlu0 %v1827
      %v1829 = vpop.xlane.xlu0 %1828
      %v1830 = vrot.slane %v1829, 4
      %v1831 = vadd.f32 %v1829, %v1830
      %v1832 = vrot.slane %v1831, 2
      %v1833 = vadd.f32 %v1831, %v1832
      %v1834 = vrot.slane %v1833, 1
      %v1835 = vadd.f32 %v1833, %v1834
      %s1836 = vtos %v1835
      %v1837 = vrcp.pop 1024.0
      %v1838 = vmul.f32 1024.0, %v1837
      %v1839 = vsub.f32 1.0, %v1838
      %v1840 = vmul.f32 %v1837, %v1839
      %v1841 = vadd.f32 %v1837, %v1840
      %vm1842 = vweird.f32 %v1837
      %v1843 = vsel %vm1842, %v1837, %v1841
      %s1844 = vtos %v1843
      %s1845 = smul.f32 %s1836, %s1844
      %v1846 = vstv %s1845
      %v1847 = vsel %vm1825, %v1846, %v1823
      %v1848 = vsub.f32 %v1695, %v1847
      %v1849 = vsub.f32 %v1696, %v1847
      %v1850 = vsub.f32 %v1697, %v1847
      %v1851 = vsub.f32 %v1698, %v1847
      %v1852 = vsub.f32 %v1699, %v1847
      %v1853 = vsub.f32 %v1700, %v1847
      %v1854 = vsub.f32 %v1701, %v1847
      %v1855 = vsub.f32 %v1702, %v1847
      %v1856 = vsub.f32 %v1703, %v1847
      %v1857 = vsub.f32 %v1704, %v1847
      %v1858 = vsub.f32 %v1705, %v1847
      %v1859 = vsub.f32 %v1706, %v1847
      %v1860 = vsub.f32 %v1707, %v1847
      %v1861 = vsub.f32 %v1708, %v1847
      %v1862 = vsub.f32 %v1709, %v1847
      %v1863 = vsub.f32 %v1710, %v1847
      %v1864 = vsub.f32 %v1711, %v1847
      %v1865 = vsub.f32 %v1712, %v1847
      %v1866 = vsub.f32 %v1713, %v1847
      %v1867 = vsub.f32 %v1714, %v1847
      %v1868 = vsub.f32 %v1715, %v1847
      %v1869 = vsub.f32 %v1716, %v1847
      %v1870 = vsub.f32 %v1717, %v1847
      %v1871 = vsub.f32 %v1718, %v1847
      %v1872 = vsub.f32 %v1719, %v1847
      %v1873 = vsub.f32 %v1720, %v1847
      %v1874 = vsub.f32 %v1721, %v1847
      %v1875 = vsub.f32 %v1722, %v1847
      %v1876 = vsub.f32 %v1723, %v1847
      %v1877 = vsub.f32 %v1724, %v1847
      %v1878 = vsub.f32 %v1725, %v1847
      %v1879 = vsub.f32 %v1726, %v1847
      %v1880 = vmul.f32 %v1848, %v1848
      %v1881 = vmul.f32 %v1849, %v1849
      %v1882 = vmul.f32 %v1850, %v1850
      %v1883 = vmul.f32 %v1851, %v1851
      %v1884 = vmul.f32 %v1852, %v1852
      %v1885 = vmul.f32 %v1853, %v1853
      %v1886 = vmul.f32 %v1854, %v1854
      %v1887 = vmul.f32 %v1855, %v1855
      %v1888 = vmul.f32 %v1856, %v1856
      %v1889 = vmul.f32 %v1857, %v1857
      %v1890 = vmul.f32 %v1858, %v1858
      %v1891 = vmul.f32 %v1859, %v1859
      %v1892 = vmul.f32 %v1860, %v1860
      %v1893 = vmul.f32 %v1861, %v1861
      %v1894 = vmul.f32 %v1862, %v1862
      %v1895 = vmul.f32 %v1863, %v1863
      %v1896 = vmul.f32 %v1864, %v1864
      %v1897 = vmul.f32 %v1865, %v1865
      %v1898 = vmul.f32 %v1866, %v1866
      %v1899 = vmul.f32 %v1867, %v1867
      %v1900 = vmul.f32 %v1868, %v1868
      %v1901 = vmul.f32 %v1869, %v1869
      %v1902 = vmul.f32 %v1870, %v1870
      %v1903 = vmul.f32 %v1871, %v1871
      %v1904 = vmul.f32 %v1872, %v1872
      %v1905 = vmul.f32 %v1873, %v1873
      %v1906 = vmul.f32 %v1874, %v1874
      %v1907 = vmul.f32 %v1875, %v1875
      %v1908 = vmul.f32 %v1876, %v1876
      %v1909 = vmul.f32 %v1877, %v1877
      %v1910 = vmul.f32 %v1878, %v1878
      %v1911 = vmul.f32 %v1879, %v1879
      %v1912 = vsel %vm1729, %v1880, 0.0
      %v1913 = vsel %vm1729, %v1881, 0.0
      %v1914 = vadd.f32 %v1912, %v1913
      %v1915 = vsel %vm1729, %v1882, 0.0
      %v1916 = vadd.f32 %v1914, %v1915
      %v1917 = vsel %vm1729, %v1883, 0.0
      %v1918 = vadd.f32 %v1916, %v1917
      %v1919 = vsel %vm1729, %v1884, 0.0
      %v1920 = vadd.f32 %v1918, %v1919
      %v1921 = vsel %vm1729, %v1885, 0.0
      %v1922 = vadd.f32 %v1920, %v1921
      %v1923 = vsel %vm1729, %v1886, 0.0
      %v1924 = vadd.f32 %v1922, %v1923
      %v1925 = vsel %vm1729, %v1887, 0.0
      %v1926 = vadd.f32 %v1924, %v1925
      %v1927 = vsel %vm1729, %v1888, 0.0
      %v1928 = vadd.f32 %v1926, %v1927
      %v1929 = vsel %vm1729, %v1889, 0.0
      %v1930 = vadd.f32 %v1928, %v1929
      %v1931 = vsel %vm1729, %v1890, 0.0
      %v1932 = vadd.f32 %v1930, %v1931
      %v1933 = vsel %vm1729, %v1891, 0.0
      %v1934 = vadd.f32 %v1932, %v1933
      %v1935 = vsel %vm1729, %v1892, 0.0
      %v1936 = vadd.f32 %v1934, %v1935
      %v1937 = vsel %vm1729, %v1893, 0.0
      %v1938 = vadd.f32 %v1936, %v1937
      %v1939 = vsel %vm1729, %v1894, 0.0
      %v1940 = vadd.f32 %v1938, %v1939
      %v1941 = vsel %vm1729, %v1895, 0.0
      %v1942 = vadd.f32 %v1940, %v1941
      %v1943 = vsel %vm1729, %v1896, 0.0
      %v1944 = vadd.f32 %v1942, %v1943
      %v1945 = vsel %vm1729, %v1897, 0.0
      %v1946 = vadd.f32 %v1944, %v1945
      %v1947 = vsel %vm1729, %v1898, 0.0
      %v1948 = vadd.f32 %v1946, %v1947
      %v1949 = vsel %vm1729, %v1899, 0.0
      %v1950 = vadd.f32 %v1948, %v1949
      %v1951 = vsel %vm1729, %v1900, 0.0
      %v1952 = vadd.f32 %v1950, %v1951
      %v1953 = vsel %vm1729, %v1901, 0.0
      %v1954 = vadd.f32 %v1952, %v1953
      %v1955 = vsel %vm1729, %v1902, 0.0
      %v1956 = vadd.f32 %v1954, %v1955
      %v1957 = vsel %vm1729, %v1903, 0.0
      %v1958 = vadd.f32 %v1956, %v1957
      %v1959 = vsel %vm1729, %v1904, 0.0
      %v1960 = vadd.f32 %v1958, %v1959
      %v1961 = vsel %vm1729, %v1905, 0.0
      %v1962 = vadd.f32 %v1960, %v1961
      %v1963 = vsel %vm1729, %v1906, 0.0
      %v1964 = vadd.f32 %v1962, %v1963
      %v1965 = vsel %vm1729, %v1907, 0.0
      %v1966 = vadd.f32 %v1964, %v1965
      %v1967 = vsel %vm1729, %v1908, 0.0
      %v1968 = vadd.f32 %v1966, %v1967
      %v1969 = vsel %vm1729, %v1909, 0.0
      %v1970 = vadd.f32 %v1968, %v1969
      %v1971 = vsel %vm1729, %v1910, 0.0
      %v1972 = vadd.f32 %v1970, %v1971
      %v1973 = vsel %vm1729, %v1911, 0.0
      %v1974 = vadd.f32 %v1972, %v1973
      %v1975 = vrot.slane %v1974, 4
      %v1976 = vadd.f32 %v1974, %v1975
      %v1977 = vrot.slane %v1976, 2
      %v1978 = vadd.f32 %v1976, %v1977
      %v1979 = vrot.slane %v1978, 1
      %v1980 = vadd.f32 %v1978, %v1979
      %v1981 = vsel %vm1800, %v1980, 0.0
      %v1982 = vsel %vm1802, %v1981, 0.0
      %1983 = vadd.xlane.f32.xlu0 %v1982
      %v1984 = vpop.xlane.xlu0 %1983
      %v1985 = vrot.slane %v1984, 4
      %v1986 = vadd.f32 %v1984, %v1985
      %v1987 = vrot.slane %v1986, 2
      %v1988 = vadd.f32 %v1986, %v1987
      %v1989 = vrot.slane %v1988, 1
      %v1990 = vadd.f32 %v1988, %v1989
      %s1991 = vtos %v1990
      %v1992 = vrcp.pop 1024.0
      %v1993 = vmul.f32 1024.0, %v1992
      %v1994 = vsub.f32 1.0, %v1993
      %v1995 = vmul.f32 %v1992, %v1994
      %v1996 = vadd.f32 %v1992, %v1995
      %vm1997 = vweird.f32 %v1992
      %v1998 = vsel %vm1997, %v1992, %v1996
      %s1999 = vtos %v1998
      %s2000 = smul.f32 %s1991, %s1999
      %v2001 = vstv %s2000
      %v2002 = vsel %vm1800, %v2001, 0.0
      %v2003 = vsel %vm1825, %v1980, 0.0
      %v2004 = vsel %vm1802, %v2003, 0.0
      %2005 = vadd.xlane.f32.xlu0 %v2004
      %v2006 = vpop.xlane.xlu0 %2005
      %v2007 = vrot.slane %v2006, 4
      %v2008 = vadd.f32 %v2006, %v2007
      %v2009 = vrot.slane %v2008, 2
      %v2010 = vadd.f32 %v2008, %v2009
      %v2011 = vrot.slane %v2010, 1
      %v2012 = vadd.f32 %v2010, %v2011
      %s2013 = vtos %v2012
      %v2014 = vrcp.pop 1024.0
      %v2015 = vmul.f32 1024.0, %v2014
      %v2016 = vsub.f32 1.0, %v2015
      %v2017 = vmul.f32 %v2014, %v2016
      %v2018 = vadd.f32 %v2014, %v2017
      %vm2019 = vweird.f32 %v2014
      %v2020 = vsel %vm2019, %v2014, %v2018
      %s2021 = vtos %v2020
      %s2022 = smul.f32 %s2013, %s2021
      %v2023 = vstv %s2022
      %v2024 = vsel %vm1825, %v2023, %v2002
      %v2025 = vadd.f32 %v2024, 1e-05
      %v2026 = vrsqrt.pop %v2025
      %v2027 = vmul.f32 %v2026, %v2025
      %v2028 = vmul.f32 %v2027, %v2026
      %v2029 = vmul.f32 0.5, %v2028
      %v2030 = vsub.f32 1.5, %v2029
      %v2031 = vmul.f32 %v2026, %v2030
      %vm2032 = vweird.f32 %v2025
      %vm2033 = vweird.f32 %v2026
      %vm2034 = vmor %vm2032, %vm2033
      %v2035 = vsel %vm2034, %v2026, %v2031
      %v2036 = vmul.f32 %v1848, %v2035
      %v2037 = vmul.f32 %v1849, %v2035
      %v2038 = vmul.f32 %v1850, %v2035
      %v2039 = vmul.f32 %v1851, %v2035
      %v2040 = vmul.f32 %v1852, %v2035
      %v2041 = vmul.f32 %v1853, %v2035
      %v2042 = vmul.f32 %v1854, %v2035
      %v2043 = vmul.f32 %v1855, %v2035
      %v2044 = vmul.f32 %v1856, %v2035
      %v2045 = vmul.f32 %v1857, %v2035
      %v2046 = vmul.f32 %v1858, %v2035
      %v2047 = vmul.f32 %v1859, %v2035
      %v2048 = vmul.f32 %v1860, %v2035
      %v2049 = vmul.f32 %v1861, %v2035
      %v2050 = vmul.f32 %v1862, %v2035
      %v2051 = vmul.f32 %v1863, %v2035
      %v2052 = vmul.f32 %v1864, %v2035
      %v2053 = vmul.f32 %v1865, %v2035
      %v2054 = vmul.f32 %v1866, %v2035
      %v2055 = vmul.f32 %v1867, %v2035
      %v2056 = vmul.f32 %v1868, %v2035
      %v2057 = vmul.f32 %v1869, %v2035
      %v2058 = vmul.f32 %v1870, %v2035
      %v2059 = vmul.f32 %v1871, %v2035
      %v2060 = vmul.f32 %v1872, %v2035
      %v2061 = vmul.f32 %v1873, %v2035
      %v2062 = vmul.f32 %v1874, %v2035
      %v2063 = vmul.f32 %v1875, %v2035
      %v2064 = vmul.f32 %v1876, %v2035
      %v2065 = vmul.f32 %v1877, %v2035
      %v2066 = vmul.f32 %v1878, %v2035
      %v2067 = vmul.f32 %v1879, %v2035
      %v2068 = vperm.slane %v1727, 0
      %v2069 = vmul.f32 %v2036, %v2068
      %v2070 = vmul.f32 %v2037, %v2068
      %v2071 = vmul.f32 %v2038, %v2068
      %v2072 = vmul.f32 %v2039, %v2068
      %v2073 = vmul.f32 %v2040, %v2068
      %v2074 = vmul.f32 %v2041, %v2068
      %v2075 = vmul.f32 %v2042, %v2068
      %v2076 = vmul.f32 %v2043, %v2068
      %v2077 = vmul.f32 %v2044, %v2068
      %v2078 = vmul.f32 %v2045, %v2068
      %v2079 = vmul.f32 %v2046, %v2068
      %v2080 = vmul.f32 %v2047, %v2068
      %v2081 = vmul.f32 %v2048, %v2068
      %v2082 = vmul.f32 %v2049, %v2068
      %v2083 = vmul.f32 %v2050, %v2068
      %v2084 = vmul.f32 %v2051, %v2068
      %v2085 = vmul.f32 %v2052, %v2068
      %v2086 = vmul.f32 %v2053, %v2068
      %v2087 = vmul.f32 %v2054, %v2068
      %v2088 = vmul.f32 %v2055, %v2068
      %v2089 = vmul.f32 %v2056, %v2068
      %v2090 = vmul.f32 %v2057, %v2068
      %v2091 = vmul.f32 %v2058, %v2068
      %v2092 = vmul.f32 %v2059, %v2068
      %v2093 = vmul.f32 %v2060, %v2068
      %v2094 = vmul.f32 %v2061, %v2068
      %v2095 = vmul.f32 %v2062, %v2068
      %v2096 = vmul.f32 %v2063, %v2068
      %v2097 = vmul.f32 %v2064, %v2068
      %v2098 = vmul.f32 %v2065, %v2068
      %v2099 = vmul.f32 %v2066, %v2068
      %v2100 = vmul.f32 %v2067, %v2068
      %v2101 = vperm.slane %v1728, 0
      %v2102 = vadd.f32 %v2069, %v2101
      %v2103 = vadd.f32 %v2070, %v2101
      %v2104 = vadd.f32 %v2071, %v2101
      %v2105 = vadd.f32 %v2072, %v2101
      %v2106 = vadd.f32 %v2073, %v2101
      %v2107 = vadd.f32 %v2074, %v2101
      %v2108 = vadd.f32 %v2075, %v2101
      %v2109 = vadd.f32 %v2076, %v2101
      %v2110 = vadd.f32 %v2077, %v2101
      %v2111 = vadd.f32 %v2078, %v2101
      %v2112 = vadd.f32 %v2079, %v2101
      %v2113 = vadd.f32 %v2080, %v2101
      %v2114 = vadd.f32 %v2081, %v2101
      %v2115 = vadd.f32 %v2082, %v2101
      %v2116 = vadd.f32 %v2083, %v2101
      %v2117 = vadd.f32 %v2084, %v2101
      %v2118 = vadd.f32 %v2085, %v2101
      %v2119 = vadd.f32 %v2086, %v2101
      %v2120 = vadd.f32 %v2087, %v2101
      %v2121 = vadd.f32 %v2088, %v2101
      %v2122 = vadd.f32 %v2089, %v2101
      %v2123 = vadd.f32 %v2090, %v2101
      %v2124 = vadd.f32 %v2091, %v2101
      %v2125 = vadd.f32 %v2092, %v2101
      %v2126 = vadd.f32 %v2093, %v2101
      %v2127 = vadd.f32 %v2094, %v2101
      %v2128 = vadd.f32 %v2095, %v2101
      %v2129 = vadd.f32 %v2096, %v2101
      %v2130 = vadd.f32 %v2097, %v2101
      %v2131 = vadd.f32 %v2098, %v2101
      %v2132 = vadd.f32 %v2099, %v2101
      %v2133 = vadd.f32 %v2100, %v2101
      %vm2134 = vcmp.gt.f32.partialorder %v2102, 0.0
      %vm2135 = vcmp.gt.f32.partialorder %v2103, 0.0
      %vm2136 = vcmp.gt.f32.partialorder %v2104, 0.0
      %vm2137 = vcmp.gt.f32.partialorder %v2105, 0.0
      %vm2138 = vcmp.gt.f32.partialorder %v2106, 0.0
      %vm2139 = vcmp.gt.f32.partialorder %v2107, 0.0
      %vm2140 = vcmp.gt.f32.partialorder %v2108, 0.0
      %vm2141 = vcmp.gt.f32.partialorder %v2109, 0.0
      %vm2142 = vcmp.gt.f32.partialorder %v2110, 0.0
      %vm2143 = vcmp.gt.f32.partialorder %v2111, 0.0
      %vm2144 = vcmp.gt.f32.partialorder %v2112, 0.0
      %vm2145 = vcmp.gt.f32.partialorder %v2113, 0.0
      %vm2146 = vcmp.gt.f32.partialorder %v2114, 0.0
      %vm2147 = vcmp.gt.f32.partialorder %v2115, 0.0
      %vm2148 = vcmp.gt.f32.partialorder %v2116, 0.0
      %vm2149 = vcmp.gt.f32.partialorder %v2117, 0.0
      %vm2150 = vcmp.gt.f32.partialorder %v2118, 0.0
      %vm2151 = vcmp.gt.f32.partialorder %v2119, 0.0
      %vm2152 = vcmp.gt.f32.partialorder %v2120, 0.0
      %vm2153 = vcmp.gt.f32.partialorder %v2121, 0.0
      %vm2154 = vcmp.gt.f32.partialorder %v2122, 0.0
      %vm2155 = vcmp.gt.f32.partialorder %v2123, 0.0
      %vm2156 = vcmp.gt.f32.partialorder %v2124, 0.0
      %vm2157 = vcmp.gt.f32.partialorder %v2125, 0.0
      %vm2158 = vcmp.gt.f32.partialorder %v2126, 0.0
      %vm2159 = vcmp.gt.f32.partialorder %v2127, 0.0
      %vm2160 = vcmp.gt.f32.partialorder %v2128, 0.0
      %vm2161 = vcmp.gt.f32.partialorder %v2129, 0.0
      %vm2162 = vcmp.gt.f32.partialorder %v2130, 0.0
      %vm2163 = vcmp.gt.f32.partialorder %v2131, 0.0
      %vm2164 = vcmp.gt.f32.partialorder %v2132, 0.0
      %vm2165 = vcmp.gt.f32.partialorder %v2133, 0.0
      %v2166 = vmul.f32 %v2102, 0.2
      %v2167 = vmul.f32 %v2103, 0.2
      %v2168 = vmul.f32 %v2104, 0.2
      %v2169 = vmul.f32 %v2105, 0.2
      %v2170 = vmul.f32 %v2106, 0.2
      %v2171 = vmul.f32 %v2107, 0.2
      %v2172 = vmul.f32 %v2108, 0.2
      %v2173 = vmul.f32 %v2109, 0.2
      %v2174 = vmul.f32 %v2110, 0.2
      %v2175 = vmul.f32 %v2111, 0.2
      %v2176 = vmul.f32 %v2112, 0.2
      %v2177 = vmul.f32 %v2113, 0.2
      %v2178 = vmul.f32 %v2114, 0.2
      %v2179 = vmul.f32 %v2115, 0.2
      %v2180 = vmul.f32 %v2116, 0.2
      %v2181 = vmul.f32 %v2117, 0.2
      %v2182 = vmul.f32 %v2118, 0.2
      %v2183 = vmul.f32 %v2119, 0.2
      %v2184 = vmul.f32 %v2120, 0.2
      %v2185 = vmul.f32 %v2121, 0.2
      %v2186 = vmul.f32 %v2122, 0.2
      %v2187 = vmul.f32 %v2123, 0.2
      %v2188 = vmul.f32 %v2124, 0.2
      %v2189 = vmul.f32 %v2125, 0.2
      %v2190 = vmul.f32 %v2126, 0.2
      %v2191 = vmul.f32 %v2127, 0.2
      %v2192 = vmul.f32 %v2128, 0.2
      %v2193 = vmul.f32 %v2129, 0.2
      %v2194 = vmul.f32 %v2130, 0.2
      %v2195 = vmul.f32 %v2131, 0.2
      %v2196 = vmul.f32 %v2132, 0.2
      %v2197 = vmul.f32 %v2133, 0.2
      %v2198 = vsel %vm2134, %v2102, %v2166
      %v2199 = vsel %vm2135, %v2103, %v2167
      %v2200 = vsel %vm2136, %v2104, %v2168
      %v2201 = vsel %vm2137, %v2105, %v2169
      %v2202 = vsel %vm2138, %v2106, %v2170
      %v2203 = vsel %vm2139, %v2107, %v2171
      %v2204 = vsel %vm2140, %v2108, %v2172
      %v2205 = vsel %vm2141, %v2109, %v2173
      %v2206 = vsel %vm2142, %v2110, %v2174
      %v2207 = vsel %vm2143, %v2111, %v2175
      %v2208 = vsel %vm2144, %v2112, %v2176
      %v2209 = vsel %vm2145, %v2113, %v2177
      %v2210 = vsel %vm2146, %v2114, %v2178
      %v2211 = vsel %vm2147, %v2115, %v2179
      %v2212 = vsel %vm2148, %v2116, %v2180
      %v2213 = vsel %vm2149, %v2117, %v2181
      %v2214 = vsel %vm2150, %v2118, %v2182
      %v2215 = vsel %vm2151, %v2119, %v2183
      %v2216 = vsel %vm2152, %v2120, %v2184
      %v2217 = vsel %vm2153, %v2121, %v2185
      %v2218 = vsel %vm2154, %v2122, %v2186
      %v2219 = vsel %vm2155, %v2123, %v2187
      %v2220 = vsel %vm2156, %v2124, %v2188
      %v2221 = vsel %vm2157, %v2125, %v2189
      %v2222 = vsel %vm2158, %v2126, %v2190
      %v2223 = vsel %vm2159, %v2127, %v2191
      %v2224 = vsel %vm2160, %v2128, %v2192
      %v2225 = vsel %vm2161, %v2129, %v2193
      %v2226 = vsel %vm2162, %v2130, %v2194
      %v2227 = vsel %vm2163, %v2131, %v2195
      %v2228 = vsel %vm2164, %v2132, %v2196
      %v2229 = vsel %vm2165, %v2133, %v2197
      %2230 = vst.msk [vmem:[#allocation4] sm:$0xff] %vm427, 0.0
      %2231 = vst.msk [vmem:[#allocation4 + $0x8] sm:$0x3] %vm429, 0.0
      %2232 = vst.msk [vmem:[#allocation4 + $0x10] sm:$0xff] %vm427, 0.0
      %2233 = vst.msk [vmem:[#allocation4 + $0x18] sm:$0x3] %vm429, 0.0
      %2234 = vst.msk [vmem:[#allocation4 + $0x20] sm:$0xff] %vm427, 0.0
      %2235 = vst.msk [vmem:[#allocation4 + $0x28] sm:$0x3] %vm429, 0.0
      %2236 = vst.msk [vmem:[#allocation4 + $0x30] sm:$0xff] %vm427, 0.0
      %2237 = vst.msk [vmem:[#allocation4 + $0x38] sm:$0x3] %vm429, 0.0
      %2238 = vst.msk [vmem:[#allocation4 + $0x40] sm:$0xff] %vm427, 0.0
      %2239 = vst.msk [vmem:[#allocation4 + $0x48] sm:$0x3] %vm429, 0.0
      %2240 = vst.msk [vmem:[#allocation4 + $0x50] sm:$0xff] %vm427, 0.0
      %2241 = vst.msk [vmem:[#allocation4 + $0x58] sm:$0x3] %vm429, 0.0
      %2242 = vst.msk [vmem:[#allocation4 + $0x60] sm:$0xff] %vm427, 0.0
      %2243 = vst.msk [vmem:[#allocation4 + $0x68] sm:$0x3] %vm429, 0.0
      %2244 = vst.msk [vmem:[#allocation4 + $0x70] sm:$0xff] %vm427, 0.0
      %2245 = vst.msk [vmem:[#allocation4 + $0x78] sm:$0x3] %vm429, 0.0
      %2246 = vst.msk [vmem:[#allocation4 + $0x80] sm:$0xff] %vm427, 0.0
      %2247 = vst.msk [vmem:[#allocation4 + $0x88] sm:$0x3] %vm429, 0.0
      %2248 = vst.msk [vmem:[#allocation4 + $0x90] sm:$0xff] %vm427, 0.0
      %2249 = vst.msk [vmem:[#allocation4 + $0x98] sm:$0x3] %vm429, 0.0
      %2250 = vst.msk [vmem:[#allocation4 + $0xa0] sm:$0xff] %vm427, 0.0
      %2251 = vst.msk [vmem:[#allocation4 + $0xa8] sm:$0x3] %vm429, 0.0
      %2252 = vst.msk [vmem:[#allocation4 + $0xb0] sm:$0xff] %vm427, 0.0
      %2253 = vst.msk [vmem:[#allocation4 + $0xb8] sm:$0x3] %vm429, 0.0
      %2254 = vst.msk [vmem:[#allocation4 + $0xc0] sm:$0xff] %vm427, 0.0
      %2255 = vst.msk [vmem:[#allocation4 + $0xc8] sm:$0x3] %vm429, 0.0
      %2256 = vst.msk [vmem:[#allocation4 + $0xd0] sm:$0xff] %vm427, 0.0
      %2257 = vst.msk [vmem:[#allocation4 + $0xd8] sm:$0x3] %vm429, 0.0
      %2258 = vst.msk [vmem:[#allocation4 + $0xe0] sm:$0xff] %vm427, 0.0
      %2259 = vst.msk [vmem:[#allocation4 + $0xe8] sm:$0x3] %vm429, 0.0
      %2260 = vst.msk [vmem:[#allocation4 + $0xf0] sm:$0xff] %vm427, 0.0
      %2261 = vst.msk [vmem:[#allocation4 + $0xf8] sm:$0x3] %vm429, 0.0
      %2262 = vst.msk [vmem:[#allocation4 + $0x100] sm:$0xff] %vm427, 0.0
      %2263 = vst.msk [vmem:[#allocation4 + $0x108] sm:$0x3] %vm429, 0.0
      %2264 = vst.msk [vmem:[#allocation4 + $0x110] sm:$0xff] %vm427, 0.0
      %2265 = vst.msk [vmem:[#allocation4 + $0x118] sm:$0x3] %vm429, 0.0
      %2266 = vst.msk [vmem:[#allocation4 + $0x120] sm:$0xff] %vm427, 0.0
      %2267 = vst.msk [vmem:[#allocation4 + $0x128] sm:$0x3] %vm429, 0.0
      %2268 = vst.msk [vmem:[#allocation4 + $0x130] sm:$0xff] %vm427, 0.0
      %2269 = vst.msk [vmem:[#allocation4 + $0x138] sm:$0x3] %vm429, 0.0
      %2270 = vst.msk [vmem:[#allocation4 + $0x140] sm:$0xff] %vm427, 0.0
      %2271 = vst.msk [vmem:[#allocation4 + $0x148] sm:$0x3] %vm429, 0.0
      %2272 = vst.msk [vmem:[#allocation4 + $0x150] sm:$0xff] %vm427, 0.0
      %2273 = vst.msk [vmem:[#allocation4 + $0x158] sm:$0x3] %vm429, 0.0
      %2274 = vst.msk [vmem:[#allocation4 + $0x160] sm:$0xff] %vm427, 0.0
      %2275 = vst.msk [vmem:[#allocation4 + $0x168] sm:$0x3] %vm429, 0.0
      %2276 = vst.msk [vmem:[#allocation4 + $0x170] sm:$0xff] %vm427, 0.0
      %2277 = vst.msk [vmem:[#allocation4 + $0x178] sm:$0x3] %vm429, 0.0
      %2278 = vst.msk [vmem:[#allocation4 + $0x180] sm:$0xff] %vm427, 0.0
      %2279 = vst.msk [vmem:[#allocation4 + $0x188] sm:$0x3] %vm429, 0.0
      %2280 = vst.msk [vmem:[#allocation4 + $0x190] sm:$0xff] %vm427, 0.0
      %2281 = vst.msk [vmem:[#allocation4 + $0x198] sm:$0x3] %vm429, 0.0
      %2282 = vst.msk [vmem:[#allocation4 + $0x1a0] sm:$0xff] %vm427, 0.0
      %2283 = vst.msk [vmem:[#allocation4 + $0x1a8] sm:$0x3] %vm429, 0.0
      %2284 = vst.msk [vmem:[#allocation4 + $0x1b0] sm:$0xff] %vm427, 0.0
      %2285 = vst.msk [vmem:[#allocation4 + $0x1b8] sm:$0x3] %vm429, 0.0
      %2286 = vst.msk [vmem:[#allocation4 + $0x1c0] sm:$0xff] %vm427, 0.0
      %2287 = vst.msk [vmem:[#allocation4 + $0x1c8] sm:$0x3] %vm429, 0.0
      %2288 = vst.msk [vmem:[#allocation4 + $0x1d0] sm:$0xff] %vm427, 0.0
      %2289 = vst.msk [vmem:[#allocation4 + $0x1d8] sm:$0x3] %vm429, 0.0
      %2290 = vst.msk [vmem:[#allocation4 + $0x1e0] sm:$0xff] %vm427, 0.0
      %2291 = vst.msk [vmem:[#allocation4 + $0x1e8] sm:$0x3] %vm429, 0.0
      %2292 = vst.msk [vmem:[#allocation4 + $0x1f0] sm:$0xff] %vm427, 0.0
      %2293 = vst.msk [vmem:[#allocation4 + $0x1f8] sm:$0x3] %vm429, 0.0
      %2294 = vst.msk [vmem:[#allocation4 + $0x200] sm:$0xff] %vm427, 0.0
      %2295 = vst.msk [vmem:[#allocation4 + $0x208] sm:$0x3] %vm429, 0.0
      %2296 = vst.msk [vmem:[#allocation4 + $0x210] sm:$0xff] %vm427, 0.0
      %2297 = vst.msk [vmem:[#allocation4 + $0x218] sm:$0x3] %vm429, 0.0
      %2298 = vst.msk [vmem:[#allocation4 + $0x220] sm:$0xff] %vm427, 0.0
      %2299 = vst.msk [vmem:[#allocation4 + $0x228] sm:$0x3] %vm429, 0.0
      %2300 = vst.msk [vmem:[#allocation4 + $0x230] sm:$0xff] %vm427, 0.0
      %2301 = vst.msk [vmem:[#allocation4 + $0x238] sm:$0x3] %vm429, 0.0
      %2302 = vst.msk [vmem:[#allocation4 + $0x240] sm:$0xff] %vm427, 0.0
      %2303 = vst.msk [vmem:[#allocation4 + $0x248] sm:$0x3] %vm429, 0.0
      %2304 = vst.msk [vmem:[#allocation4 + $0x250] sm:$0xff] %vm427, 0.0
      %2305 = vst.msk [vmem:[#allocation4 + $0x258] sm:$0x3] %vm429, 0.0
      %2306 = vst.msk [vmem:[#allocation4 + $0x260] sm:$0xff] %vm427, 0.0
      %2307 = vst.msk [vmem:[#allocation4 + $0x268] sm:$0x3] %vm429, 0.0
      %2308 = vst.msk [vmem:[#allocation4 + $0x270] sm:$0xff] %vm427, 0.0
      %2309 = vst.msk [vmem:[#allocation4 + $0x278] sm:$0x3] %vm429, 0.0
      %v2310 = vld [vmem:[%s421] sm:$0xff]
      %v2311 = vld [vmem:[%s421 + $0x8] sm:$0xff]
      %v2312 = vld [vmem:[%s421 + $0x10] sm:$0xff]
      %v2313 = vld [vmem:[%s421 + $0x18] sm:$0xff]
      %v2314 = vld [vmem:[%s421 + $0x20] sm:$0xff]
      %v2315 = vld [vmem:[%s421 + $0x28] sm:$0xff]
      %v2316 = vld [vmem:[%s421 + $0x30] sm:$0xff]
      %v2317 = vld [vmem:[%s421 + $0x38] sm:$0xff]
      %2326 = vrot.lane.b32.xlu0 %v2310, 8
      %v2327 = vpop.permute.xlu0 %2326
      %2328 = vrot.lane.b32.xlu0 %v2311, 8
      %v2329 = vpop.permute.xlu0 %2328
      %2330 = vrot.lane.b32.xlu0 %v2312, 8
      %v2331 = vpop.permute.xlu0 %2330
      %2332 = vrot.lane.b32.xlu0 %v2313, 8
      %v2333 = vpop.permute.xlu0 %2332
      %2334 = vrot.lane.b32.xlu0 %v2314, 8
      %v2335 = vpop.permute.xlu0 %2334
      %2336 = vrot.lane.b32.xlu0 %v2315, 8
      %v2337 = vpop.permute.xlu0 %2336
      %2338 = vrot.lane.b32.xlu0 %v2316, 8
      %v2339 = vpop.permute.xlu0 %2338
      %2340 = vrot.lane.b32.xlu0 %v2317, 8
      %v2341 = vpop.permute.xlu0 %2340
      %v2350 = vsel %vm1729, %v2198, %v2327
      %v2351 = vsel %vm1729, %v2199, %v2329
      %v2352 = vsel %vm1729, %v2200, %v2331
      %v2353 = vsel %vm1729, %v2201, %v2333
      %v2354 = vsel %vm1729, %v2202, %v2335
      %v2355 = vsel %vm1729, %v2203, %v2337
      %v2356 = vsel %vm1729, %v2204, %v2339
      %v2357 = vsel %vm1729, %v2205, %v2341
      %s2358 = scalar_lea.vmem [#allocation4], 16
      %2359 = vst.msk [vmem:[%s2358 + $0x1] sm:$0xff] %vm427, %v2350
      %2360 = vst.msk [vmem:[%s2358 + $0x11] sm:$0xff] %vm427, %v2351
      %2361 = vst.msk [vmem:[%s2358 + $0x21] sm:$0xff] %vm427, %v2352
      %2362 = vst.msk [vmem:[%s2358 + $0x31] sm:$0xff] %vm427, %v2353
      %2363 = vst.msk [vmem:[%s2358 + $0x41] sm:$0xff] %vm427, %v2354
      %2364 = vst.msk [vmem:[%s2358 + $0x51] sm:$0xff] %vm427, %v2355
      %2365 = vst.msk [vmem:[%s2358 + $0x61] sm:$0xff] %vm427, %v2356
      %2366 = vst.msk [vmem:[%s2358 + $0x71] sm:$0xff] %vm427, %v2357
      %s2367 = scalar_lea.vmem %s421, 64
      %v2368 = vld [vmem:[%s2367] sm:$0xff]
      %v2369 = vld [vmem:[%s2367 + $0x8] sm:$0xff]
      %v2370 = vld [vmem:[%s2367 + $0x10] sm:$0xff]
      %v2371 = vld [vmem:[%s2367 + $0x18] sm:$0xff]
      %v2372 = vld [vmem:[%s2367 + $0x20] sm:$0xff]
      %v2373 = vld [vmem:[%s2367 + $0x28] sm:$0xff]
      %v2374 = vld [vmem:[%s2367 + $0x30] sm:$0xff]
      %v2375 = vld [vmem:[%s2367 + $0x38] sm:$0xff]
      %2384 = vrot.lane.b32.xlu0 %v2368, 8
      %v2385 = vpop.permute.xlu0 %2384
      %2386 = vrot.lane.b32.xlu0 %v2369, 8
      %v2387 = vpop.permute.xlu0 %2386
      %2388 = vrot.lane.b32.xlu0 %v2370, 8
      %v2389 = vpop.permute.xlu0 %2388
      %2390 = vrot.lane.b32.xlu0 %v2371, 8
      %v2391 = vpop.permute.xlu0 %2390
      %2392 = vrot.lane.b32.xlu0 %v2372, 8
      %v2393 = vpop.permute.xlu0 %2392
      %2394 = vrot.lane.b32.xlu0 %v2373, 8
      %v2395 = vpop.permute.xlu0 %2394
      %2396 = vrot.lane.b32.xlu0 %v2374, 8
      %v2397 = vpop.permute.xlu0 %2396
      %2398 = vrot.lane.b32.xlu0 %v2375, 8
      %v2399 = vpop.permute.xlu0 %2398
      %v2408 = vsel %vm1729, %v2206, %v2385
      %v2409 = vsel %vm1729, %v2207, %v2387
      %v2410 = vsel %vm1729, %v2208, %v2389
      %v2411 = vsel %vm1729, %v2209, %v2391
      %v2412 = vsel %vm1729, %v2210, %v2393
      %v2413 = vsel %vm1729, %v2211, %v2395
      %v2414 = vsel %vm1729, %v2212, %v2397
      %v2415 = vsel %vm1729, %v2213, %v2399
      %s2416 = scalar_lea.vmem [#allocation4], 176
      %2417 = vst.msk [vmem:[%s2416 + $0x1] sm:$0xff] %vm427, %v2408
      %2418 = vst.msk [vmem:[%s2416 + $0x11] sm:$0xff] %vm427, %v2409
      %2419 = vst.msk [vmem:[%s2416 + $0x21] sm:$0xff] %vm427, %v2410
      %2420 = vst.msk [vmem:[%s2416 + $0x31] sm:$0xff] %vm427, %v2411
      %2421 = vst.msk [vmem:[%s2416 + $0x41] sm:$0xff] %vm427, %v2412
      %2422 = vst.msk [vmem:[%s2416 + $0x51] sm:$0xff] %vm427, %v2413
      %2423 = vst.msk [vmem:[%s2416 + $0x61] sm:$0xff] %vm427, %v2414
      %2424 = vst.msk [vmem:[%s2416 + $0x71] sm:$0xff] %vm427, %v2415
      %s2425 = scalar_lea.vmem %s421, 128
      %v2426 = vld [vmem:[%s2425] sm:$0xff]
      %v2427 = vld [vmem:[%s2425 + $0x8] sm:$0xff]
      %v2428 = vld [vmem:[%s2425 + $0x10] sm:$0xff]
      %v2429 = vld [vmem:[%s2425 + $0x18] sm:$0xff]
      %v2430 = vld [vmem:[%s2425 + $0x20] sm:$0xff]
      %v2431 = vld [vmem:[%s2425 + $0x28] sm:$0xff]
      %v2432 = vld [vmem:[%s2425 + $0x30] sm:$0xff]
      %v2433 = vld [vmem:[%s2425 + $0x38] sm:$0xff]
      %2442 = vrot.lane.b32.xlu0 %v2426, 8
      %v2443 = vpop.permute.xlu0 %2442
      %2444 = vrot.lane.b32.xlu0 %v2427, 8
      %v2445 = vpop.permute.xlu0 %2444
      %2446 = vrot.lane.b32.xlu0 %v2428, 8
      %v2447 = vpop.permute.xlu0 %2446
      %2448 = vrot.lane.b32.xlu0 %v2429, 8
      %v2449 = vpop.permute.xlu0 %2448
      %2450 = vrot.lane.b32.xlu0 %v2430, 8
      %v2451 = vpop.permute.xlu0 %2450
      %2452 = vrot.lane.b32.xlu0 %v2431, 8
      %v2453 = vpop.permute.xlu0 %2452
      %2454 = vrot.lane.b32.xlu0 %v2432, 8
      %v2455 = vpop.permute.xlu0 %2454
      %2456 = vrot.lane.b32.xlu0 %v2433, 8
      %v2457 = vpop.permute.xlu0 %2456
      %v2466 = vsel %vm1729, %v2214, %v2443
      %v2467 = vsel %vm1729, %v2215, %v2445
      %v2468 = vsel %vm1729, %v2216, %v2447
      %v2469 = vsel %vm1729, %v2217, %v2449
      %v2470 = vsel %vm1729, %v2218, %v2451
      %v2471 = vsel %vm1729, %v2219, %v2453
      %v2472 = vsel %vm1729, %v2220, %v2455
      %v2473 = vsel %vm1729, %v2221, %v2457
      %s2474 = scalar_lea.vmem [#allocation4], 336
      %2475 = vst.msk [vmem:[%s2474 + $0x1] sm:$0xff] %vm427, %v2466
      %2476 = vst.msk [vmem:[%s2474 + $0x11] sm:$0xff] %vm427, %v2467
      %2477 = vst.msk [vmem:[%s2474 + $0x21] sm:$0xff] %vm427, %v2468
      %2478 = vst.msk [vmem:[%s2474 + $0x31] sm:$0xff] %vm427, %v2469
      %2479 = vst.msk [vmem:[%s2474 + $0x41] sm:$0xff] %vm427, %v2470
      %2480 = vst.msk [vmem:[%s2474 + $0x51] sm:$0xff] %vm427, %v2471
      %2481 = vst.msk [vmem:[%s2474 + $0x61] sm:$0xff] %vm427, %v2472
      %2482 = vst.msk [vmem:[%s2474 + $0x71] sm:$0xff] %vm427, %v2473
      %s2483 = scalar_lea.vmem %s421, 192
      %v2484 = vld [vmem:[%s2483] sm:$0xff]
      %v2485 = vld [vmem:[%s2483 + $0x8] sm:$0xff]
      %v2486 = vld [vmem:[%s2483 + $0x10] sm:$0xff]
      %v2487 = vld [vmem:[%s2483 + $0x18] sm:$0xff]
      %v2488 = vld [vmem:[%s2483 + $0x20] sm:$0xff]
      %v2489 = vld [vmem:[%s2483 + $0x28] sm:$0xff]
      %v2490 = vld [vmem:[%s2483 + $0x30] sm:$0xff]
      %v2491 = vld [vmem:[%s2483 + $0x38] sm:$0xff]
      %2500 = vrot.lane.b32.xlu0 %v2484, 8
      %v2501 = vpop.permute.xlu0 %2500
      %2502 = vrot.lane.b32.xlu0 %v2485, 8
      %v2503 = vpop.permute.xlu0 %2502
      %2504 = vrot.lane.b32.xlu0 %v2486, 8
      %v2505 = vpop.permute.xlu0 %2504
      %2506 = vrot.lane.b32.xlu0 %v2487, 8
      %v2507 = vpop.permute.xlu0 %2506
      %2508 = vrot.lane.b32.xlu0 %v2488, 8
      %v2509 = vpop.permute.xlu0 %2508
      %2510 = vrot.lane.b32.xlu0 %v2489, 8
      %v2511 = vpop.permute.xlu0 %2510
      %2512 = vrot.lane.b32.xlu0 %v2490, 8
      %v2513 = vpop.permute.xlu0 %2512
      %2514 = vrot.lane.b32.xlu0 %v2491, 8
      %v2515 = vpop.permute.xlu0 %2514
      %v2524 = vsel %vm1729, %v2222, %v2501
      %v2525 = vsel %vm1729, %v2223, %v2503
      %v2526 = vsel %vm1729, %v2224, %v2505
      %v2527 = vsel %vm1729, %v2225, %v2507
      %v2528 = vsel %vm1729, %v2226, %v2509
      %v2529 = vsel %vm1729, %v2227, %v2511
      %v2530 = vsel %vm1729, %v2228, %v2513
      %v2531 = vsel %vm1729, %v2229, %v2515
      %s2532 = scalar_lea.vmem [#allocation4], 496
      %2533 = vst.msk [vmem:[%s2532 + $0x1] sm:$0xff] %vm427, %v2524
      %2534 = vst.msk [vmem:[%s2532 + $0x11] sm:$0xff] %vm427, %v2525
      %2535 = vst.msk [vmem:[%s2532 + $0x21] sm:$0xff] %vm427, %v2526
      %2536 = vst.msk [vmem:[%s2532 + $0x31] sm:$0xff] %vm427, %v2527
      %2537 = vst.msk [vmem:[%s2532 + $0x41] sm:$0xff] %vm427, %v2528
      %2538 = vst.msk [vmem:[%s2532 + $0x51] sm:$0xff] %vm427, %v2529
      %2539 = vst.msk [vmem:[%s2532 + $0x61] sm:$0xff] %vm427, %v2530
      %2540 = vst.msk [vmem:[%s2532 + $0x71] sm:$0xff] %vm427, %v2531
      %s2541 = scalar_lea.vmem [#allocation4], 480
      %v2542 = vld [vmem:[%s2541] sm:$0xff]
      %v2543 = vld [vmem:[%s2541 + $0x10] sm:$0xff]
      %v2544 = vld [vmem:[%s2541 + $0x20] sm:$0xff]
      %v2545 = vld [vmem:[%s2541 + $0x30] sm:$0xff]
      %v2546 = vld [vmem:[%s2541 + $0x40] sm:$0xff]
      %v2547 = vld [vmem:[%s2541 + $0x50] sm:$0xff]
      %v2548 = vld [vmem:[%s2541 + $0x60] sm:$0xff]
      %v2549 = vld [vmem:[%s2541 + $0x70] sm:$0xff]
      %s2550 = scalar_lea.vmem [#allocation4], 320
      %v2551 = vld [vmem:[%s2550 + $0x1] sm:$0xff]
      %v2552 = vld [vmem:[%s2550 + $0x11] sm:$0xff]
      %v2553 = vld [vmem:[%s2550 + $0x21] sm:$0xff]
      %v2554 = vld [vmem:[%s2550 + $0x31] sm:$0xff]
      %v2555 = vld [vmem:[%s2550 + $0x41] sm:$0xff]
      %v2556 = vld [vmem:[%s2550 + $0x51] sm:$0xff]
      %v2557 = vld [vmem:[%s2550 + $0x61] sm:$0xff]
      %v2558 = vld [vmem:[%s2550 + $0x71] sm:$0xff]
      %v2559 = vld [vmem:[%s2541 + $0x1] sm:$0xff]
      %v2560 = vld [vmem:[%s2541 + $0x11] sm:$0xff]
      %v2561 = vld [vmem:[%s2541 + $0x21] sm:$0xff]
      %v2562 = vld [vmem:[%s2541 + $0x31] sm:$0xff]
      %v2563 = vld [vmem:[%s2541 + $0x41] sm:$0xff]
      %v2564 = vld [vmem:[%s2541 + $0x51] sm:$0xff]
      %v2565 = vld [vmem:[%s2541 + $0x61] sm:$0xff]
      %v2566 = vld [vmem:[%s2541 + $0x71] sm:$0xff]
      %v2567 = vld [vmem:[%s2550 + $0x2] sm:$0xff]
      %v2568 = vld [vmem:[%s2550 + $0x12] sm:$0xff]
      %v2569 = vld [vmem:[%s2550 + $0x22] sm:$0xff]
      %v2570 = vld [vmem:[%s2550 + $0x32] sm:$0xff]
      %v2571 = vld [vmem:[%s2550 + $0x42] sm:$0xff]
      %v2572 = vld [vmem:[%s2550 + $0x52] sm:$0xff]
      %v2573 = vld [vmem:[%s2550 + $0x62] sm:$0xff]
      %v2574 = vld [vmem:[%s2550 + $0x72] sm:$0xff]
      %v2575 = vld [vmem:[%s2416] sm:$0xff]
      %v2576 = vld [vmem:[%s2416 + $0x10] sm:$0xff]
      %v2577 = vld [vmem:[%s2416 + $0x20] sm:$0xff]
      %v2578 = vld [vmem:[%s2416 + $0x30] sm:$0xff]
      %v2579 = vld [vmem:[%s2416 + $0x40] sm:$0xff]
      %v2580 = vld [vmem:[%s2416 + $0x50] sm:$0xff]
      %v2581 = vld [vmem:[%s2416 + $0x60] sm:$0xff]
      %v2582 = vld [vmem:[%s2416 + $0x70] sm:$0xff]
      %v2583 = vld [vmem:[%s2358 + $0x1] sm:$0xff]
      %v2584 = vld [vmem:[%s2358 + $0x11] sm:$0xff]
      %v2585 = vld [vmem:[%s2358 + $0x21] sm:$0xff]
      %v2586 = vld [vmem:[%s2358 + $0x31] sm:$0xff]
      %v2587 = vld [vmem:[%s2358 + $0x41] sm:$0xff]
      %v2588 = vld [vmem:[%s2358 + $0x51] sm:$0xff]
      %v2589 = vld [vmem:[%s2358 + $0x61] sm:$0xff]
      %v2590 = vld [vmem:[%s2358 + $0x71] sm:$0xff]
      %v2591 = vld [vmem:[%s2416 + $0x1] sm:$0xff]
      %v2592 = vld [vmem:[%s2416 + $0x11] sm:$0xff]
      %v2593 = vld [vmem:[%s2416 + $0x21] sm:$0xff]
      %v2594 = vld [vmem:[%s2416 + $0x31] sm:$0xff]
      %v2595 = vld [vmem:[%s2416 + $0x41] sm:$0xff]
      %v2596 = vld [vmem:[%s2416 + $0x51] sm:$0xff]
      %v2597 = vld [vmem:[%s2416 + $0x61] sm:$0xff]
      %v2598 = vld [vmem:[%s2416 + $0x71] sm:$0xff]
      %v2599 = vld [vmem:[%s2358 + $0x2] sm:$0xff]
      %v2600 = vld [vmem:[%s2358 + $0x12] sm:$0xff]
      %v2601 = vld [vmem:[%s2358 + $0x22] sm:$0xff]
      %v2602 = vld [vmem:[%s2358 + $0x32] sm:$0xff]
      %v2603 = vld [vmem:[%s2358 + $0x42] sm:$0xff]
      %v2604 = vld [vmem:[%s2358 + $0x52] sm:$0xff]
      %v2605 = vld [vmem:[%s2358 + $0x62] sm:$0xff]
      %v2606 = vld [vmem:[%s2358 + $0x72] sm:$0xff]
      %v2607 = vld [vmem:[%s2532] sm:$0xff]
      %v2608 = vld [vmem:[%s2532 + $0x10] sm:$0xff]
      %v2609 = vld [vmem:[%s2532 + $0x20] sm:$0xff]
      %v2610 = vld [vmem:[%s2532 + $0x30] sm:$0xff]
      %v2611 = vld [vmem:[%s2532 + $0x40] sm:$0xff]
      %v2612 = vld [vmem:[%s2532 + $0x50] sm:$0xff]
      %v2613 = vld [vmem:[%s2532 + $0x60] sm:$0xff]
      %v2614 = vld [vmem:[%s2532 + $0x70] sm:$0xff]
      %v2615 = vld [vmem:[%s2474 + $0x1] sm:$0xff]
      %v2616 = vld [vmem:[%s2474 + $0x11] sm:$0xff]
      %v2617 = vld [vmem:[%s2474 + $0x21] sm:$0xff]
      %v2618 = vld [vmem:[%s2474 + $0x31] sm:$0xff]
      %v2619 = vld [vmem:[%s2474 + $0x41] sm:$0xff]
      %v2620 = vld [vmem:[%s2474 + $0x51] sm:$0xff]
      %v2621 = vld [vmem:[%s2474 + $0x61] sm:$0xff]
      %v2622 = vld [vmem:[%s2474 + $0x71] sm:$0xff]
      %v2623 = vld [vmem:[%s2532 + $0x1] sm:$0xff]
      %v2624 = vld [vmem:[%s2532 + $0x11] sm:$0xff]
      %v2625 = vld [vmem:[%s2532 + $0x21] sm:$0xff]
      %v2626 = vld [vmem:[%s2532 + $0x31] sm:$0xff]
      %v2627 = vld [vmem:[%s2532 + $0x41] sm:$0xff]
      %v2628 = vld [vmem:[%s2532 + $0x51] sm:$0xff]
      %v2629 = vld [vmem:[%s2532 + $0x61] sm:$0xff]
      %v2630 = vld [vmem:[%s2532 + $0x71] sm:$0xff]
      %v2631 = vld [vmem:[%s2474 + $0x2] sm:$0xff]
      %v2632 = vld [vmem:[%s2474 + $0x12] sm:$0xff]
      %v2633 = vld [vmem:[%s2474 + $0x22] sm:$0xff]
      %v2634 = vld [vmem:[%s2474 + $0x32] sm:$0xff]
      %v2635 = vld [vmem:[%s2474 + $0x42] sm:$0xff]
      %v2636 = vld [vmem:[%s2474 + $0x52] sm:$0xff]
      %v2637 = vld [vmem:[%s2474 + $0x62] sm:$0xff]
      %v2638 = vld [vmem:[%s2474 + $0x72] sm:$0xff]
      %s2639 = scalar_lea.vmem [#allocation4], 192
      %v2640 = vld [vmem:[%s2639] sm:$0xff]
      %v2641 = vld [vmem:[%s2639 + $0x10] sm:$0xff]
      %v2642 = vld [vmem:[%s2639 + $0x20] sm:$0xff]
      %v2643 = vld [vmem:[%s2639 + $0x30] sm:$0xff]
      %v2644 = vld [vmem:[%s2639 + $0x40] sm:$0xff]
      %v2645 = vld [vmem:[%s2639 + $0x50] sm:$0xff]
      %v2646 = vld [vmem:[%s2639 + $0x60] sm:$0xff]
      %v2647 = vld [vmem:[%s2639 + $0x70] sm:$0xff]
      %s2648 = scalar_lea.vmem [#allocation4], 32
      %v2649 = vld [vmem:[%s2648 + $0x1] sm:$0xff]
      %v2650 = vld [vmem:[%s2648 + $0x11] sm:$0xff]
      %v2651 = vld [vmem:[%s2648 + $0x21] sm:$0xff]
      %v2652 = vld [vmem:[%s2648 + $0x31] sm:$0xff]
      %v2653 = vld [vmem:[%s2648 + $0x41] sm:$0xff]
      %v2654 = vld [vmem:[%s2648 + $0x51] sm:$0xff]
      %v2655 = vld [vmem:[%s2648 + $0x61] sm:$0xff]
      %v2656 = vld [vmem:[%s2648 + $0x71] sm:$0xff]
      %v2657 = vld [vmem:[%s2639 + $0x1] sm:$0xff]
      %v2658 = vld [vmem:[%s2639 + $0x11] sm:$0xff]
      %v2659 = vld [vmem:[%s2639 + $0x21] sm:$0xff]
      %v2660 = vld [vmem:[%s2639 + $0x31] sm:$0xff]
      %v2661 = vld [vmem:[%s2639 + $0x41] sm:$0xff]
      %v2662 = vld [vmem:[%s2639 + $0x51] sm:$0xff]
      %v2663 = vld [vmem:[%s2639 + $0x61] sm:$0xff]
      %v2664 = vld [vmem:[%s2639 + $0x71] sm:$0xff]
      %v2665 = vld [vmem:[%s2648 + $0x2] sm:$0xff]
      %v2666 = vld [vmem:[%s2648 + $0x12] sm:$0xff]
      %v2667 = vld [vmem:[%s2648 + $0x22] sm:$0xff]
      %v2668 = vld [vmem:[%s2648 + $0x32] sm:$0xff]
      %v2669 = vld [vmem:[%s2648 + $0x42] sm:$0xff]
      %v2670 = vld [vmem:[%s2648 + $0x52] sm:$0xff]
      %v2671 = vld [vmem:[%s2648 + $0x62] sm:$0xff]
      %v2672 = vld [vmem:[%s2648 + $0x72] sm:$0xff]
      %2681 = vrot.lane.b32.xlu0 %v2551, 16
      %v2682 = vpop.permute.xlu0 %2681
      %2683 = vrot.lane.b32.xlu0 %v2552, 16
      %v2684 = vpop.permute.xlu0 %2683
      %2685 = vrot.lane.b32.xlu0 %v2553, 16
      %v2686 = vpop.permute.xlu0 %2685
      %2687 = vrot.lane.b32.xlu0 %v2554, 16
      %v2688 = vpop.permute.xlu0 %2687
      %2689 = vrot.lane.b32.xlu0 %v2555, 16
      %v2690 = vpop.permute.xlu0 %2689
      %2691 = vrot.lane.b32.xlu0 %v2556, 16
      %v2692 = vpop.permute.xlu0 %2691
      %2693 = vrot.lane.b32.xlu0 %v2557, 16
      %v2694 = vpop.permute.xlu0 %2693
      %2695 = vrot.lane.b32.xlu0 %v2558, 16
      %v2696 = vpop.permute.xlu0 %2695
      %2713 = vrot.lane.b32.xlu0 %v2559, 32
      %v2714 = vpop.permute.xlu0 %2713
      %2715 = vrot.lane.b32.xlu0 %v2560, 32
      %v2716 = vpop.permute.xlu0 %2715
      %2717 = vrot.lane.b32.xlu0 %v2561, 32
      %v2718 = vpop.permute.xlu0 %2717
      %2719 = vrot.lane.b32.xlu0 %v2562, 32
      %v2720 = vpop.permute.xlu0 %2719
      %2721 = vrot.lane.b32.xlu0 %v2563, 32
      %v2722 = vpop.permute.xlu0 %2721
      %2723 = vrot.lane.b32.xlu0 %v2564, 32
      %v2724 = vpop.permute.xlu0 %2723
      %2725 = vrot.lane.b32.xlu0 %v2565, 32
      %v2726 = vpop.permute.xlu0 %2725
      %2727 = vrot.lane.b32.xlu0 %v2566, 32
      %v2728 = vpop.permute.xlu0 %2727
      %2745 = vrot.lane.b32.xlu0 %v2575, 48
      %v2746 = vpop.permute.xlu0 %2745
      %2747 = vrot.lane.b32.xlu0 %v2576, 48
      %v2748 = vpop.permute.xlu0 %2747
      %2749 = vrot.lane.b32.xlu0 %v2577, 48
      %v2750 = vpop.permute.xlu0 %2749
      %2751 = vrot.lane.b32.xlu0 %v2578, 48
      %v2752 = vpop.permute.xlu0 %2751
      %2753 = vrot.lane.b32.xlu0 %v2579, 48
      %v2754 = vpop.permute.xlu0 %2753
      %2755 = vrot.lane.b32.xlu0 %v2580, 48
      %v2756 = vpop.permute.xlu0 %2755
      %2757 = vrot.lane.b32.xlu0 %v2581, 48
      %v2758 = vpop.permute.xlu0 %2757
      %2759 = vrot.lane.b32.xlu0 %v2582, 48
      %v2760 = vpop.permute.xlu0 %2759
      %2777 = vrot.lane.b32.xlu0 %v2583, 64
      %v2778 = vpop.permute.xlu0 %2777
      %2779 = vrot.lane.b32.xlu0 %v2584, 64
      %v2780 = vpop.permute.xlu0 %2779
      %2781 = vrot.lane.b32.xlu0 %v2585, 64
      %v2782 = vpop.permute.xlu0 %2781
      %2783 = vrot.lane.b32.xlu0 %v2586, 64
      %v2784 = vpop.permute.xlu0 %2783
      %2785 = vrot.lane.b32.xlu0 %v2587, 64
      %v2786 = vpop.permute.xlu0 %2785
      %2787 = vrot.lane.b32.xlu0 %v2588, 64
      %v2788 = vpop.permute.xlu0 %2787
      %2789 = vrot.lane.b32.xlu0 %v2589, 64
      %v2790 = vpop.permute.xlu0 %2789
      %2791 = vrot.lane.b32.xlu0 %v2590, 64
      %v2792 = vpop.permute.xlu0 %2791
      %2809 = vrot.lane.b32.xlu0 %v2591, 80
      %v2810 = vpop.permute.xlu0 %2809
      %2811 = vrot.lane.b32.xlu0 %v2592, 80
      %v2812 = vpop.permute.xlu0 %2811
      %2813 = vrot.lane.b32.xlu0 %v2593, 80
      %v2814 = vpop.permute.xlu0 %2813
      %2815 = vrot.lane.b32.xlu0 %v2594, 80
      %v2816 = vpop.permute.xlu0 %2815
      %2817 = vrot.lane.b32.xlu0 %v2595, 80
      %v2818 = vpop.permute.xlu0 %2817
      %2819 = vrot.lane.b32.xlu0 %v2596, 80
      %v2820 = vpop.permute.xlu0 %2819
      %2821 = vrot.lane.b32.xlu0 %v2597, 80
      %v2822 = vpop.permute.xlu0 %2821
      %2823 = vrot.lane.b32.xlu0 %v2598, 80
      %v2824 = vpop.permute.xlu0 %2823
      %2841 = vrot.lane.b32.xlu0 %v2607, 96
      %v2842 = vpop.permute.xlu0 %2841
      %2843 = vrot.lane.b32.xlu0 %v2608, 96
      %v2844 = vpop.permute.xlu0 %2843
      %2845 = vrot.lane.b32.xlu0 %v2609, 96
      %v2846 = vpop.permute.xlu0 %2845
      %2847 = vrot.lane.b32.xlu0 %v2610, 96
      %v2848 = vpop.permute.xlu0 %2847
      %2849 = vrot.lane.b32.xlu0 %v2611, 96
      %v2850 = vpop.permute.xlu0 %2849
      %2851 = vrot.lane.b32.xlu0 %v2612, 96
      %v2852 = vpop.permute.xlu0 %2851
      %2853 = vrot.lane.b32.xlu0 %v2613, 96
      %v2854 = vpop.permute.xlu0 %2853
      %2855 = vrot.lane.b32.xlu0 %v2614, 96
      %v2856 = vpop.permute.xlu0 %2855
      %2873 = vrot.lane.b32.xlu0 %v2615, 112
      %v2874 = vpop.permute.xlu0 %2873
      %2875 = vrot.lane.b32.xlu0 %v2616, 112
      %v2876 = vpop.permute.xlu0 %2875
      %2877 = vrot.lane.b32.xlu0 %v2617, 112
      %v2878 = vpop.permute.xlu0 %2877
      %2879 = vrot.lane.b32.xlu0 %v2618, 112
      %v2880 = vpop.permute.xlu0 %2879
      %2881 = vrot.lane.b32.xlu0 %v2619, 112
      %v2882 = vpop.permute.xlu0 %2881
      %2883 = vrot.lane.b32.xlu0 %v2620, 112
      %v2884 = vpop.permute.xlu0 %2883
      %2885 = vrot.lane.b32.xlu0 %v2621, 112
      %v2886 = vpop.permute.xlu0 %2885
      %2887 = vrot.lane.b32.xlu0 %v2622, 112
      %v2888 = vpop.permute.xlu0 %2887
      %v2897 = vsel %vm427, %v2542, %v2682
      %v2898 = vsel %vm427, %v2543, %v2684
      %v2899 = vsel %vm427, %v2544, %v2686
      %v2900 = vsel %vm427, %v2545, %v2688
      %v2901 = vsel %vm427, %v2546, %v2690
      %v2902 = vsel %vm427, %v2547, %v2692
      %v2903 = vsel %vm427, %v2548, %v2694
      %v2904 = vsel %vm427, %v2549, %v2696
      %v2905 = vsel %vm771, %v2897, %v2714
      %v2906 = vsel %vm771, %v2898, %v2716
      %v2907 = vsel %vm771, %v2899, %v2718
      %v2908 = vsel %vm771, %v2900, %v2720
      %v2909 = vsel %vm771, %v2901, %v2722
      %v2910 = vsel %vm771, %v2902, %v2724
      %v2911 = vsel %vm771, %v2903, %v2726
      %v2912 = vsel %vm771, %v2904, %v2728
      %v2913 = vsel %vm780, %v2905, %v2746
      %v2914 = vsel %vm780, %v2906, %v2748
      %v2915 = vsel %vm780, %v2907, %v2750
      %v2916 = vsel %vm780, %v2908, %v2752
      %v2917 = vsel %vm780, %v2909, %v2754
      %v2918 = vsel %vm780, %v2910, %v2756
      %v2919 = vsel %vm780, %v2911, %v2758
      %v2920 = vsel %vm780, %v2912, %v2760
      %v2921 = vsel %vm789, %v2913, %v2778
      %v2922 = vsel %vm789, %v2914, %v2780
      %v2923 = vsel %vm789, %v2915, %v2782
      %v2924 = vsel %vm789, %v2916, %v2784
      %v2925 = vsel %vm789, %v2917, %v2786
      %v2926 = vsel %vm789, %v2918, %v2788
      %v2927 = vsel %vm789, %v2919, %v2790
      %v2928 = vsel %vm789, %v2920, %v2792
      %v2929 = vsel %vm798, %v2921, %v2810
      %v2930 = vsel %vm798, %v2922, %v2812
      %v2931 = vsel %vm798, %v2923, %v2814
      %v2932 = vsel %vm798, %v2924, %v2816
      %v2933 = vsel %vm798, %v2925, %v2818
      %v2934 = vsel %vm798, %v2926, %v2820
      %v2935 = vsel %vm798, %v2927, %v2822
      %v2936 = vsel %vm798, %v2928, %v2824
      %v2937 = vsel %vm807, %v2929, %v2842
      %v2938 = vsel %vm807, %v2930, %v2844
      %v2939 = vsel %vm807, %v2931, %v2846
      %v2940 = vsel %vm807, %v2932, %v2848
      %v2941 = vsel %vm807, %v2933, %v2850
      %v2942 = vsel %vm807, %v2934, %v2852
      %v2943 = vsel %vm807, %v2935, %v2854
      %v2944 = vsel %vm807, %v2936, %v2856
      %v2945 = vsel %vm816, %v2937, %v2874
      %v2946 = vsel %vm816, %v2938, %v2876
      %v2947 = vsel %vm816, %v2939, %v2878
      %v2948 = vsel %vm816, %v2940, %v2880
      %v2949 = vsel %vm816, %v2941, %v2882
      %v2950 = vsel %vm816, %v2942, %v2884
      %v2951 = vsel %vm816, %v2943, %v2886
      %v2952 = vsel %vm816, %v2944, %v2888
      %2953 = vrot.lane.b32.xlu0 %v2559, 16
      %v2954 = vpop.permute.xlu0 %2953
      %2955 = vrot.lane.b32.xlu0 %v2560, 16
      %v2956 = vpop.permute.xlu0 %2955
      %2957 = vrot.lane.b32.xlu0 %v2561, 16
      %v2958 = vpop.permute.xlu0 %2957
      %2959 = vrot.lane.b32.xlu0 %v2562, 16
      %v2960 = vpop.permute.xlu0 %2959
      %2961 = vrot.lane.b32.xlu0 %v2563, 16
      %v2962 = vpop.permute.xlu0 %2961
      %2963 = vrot.lane.b32.xlu0 %v2564, 16
      %v2964 = vpop.permute.xlu0 %2963
      %2965 = vrot.lane.b32.xlu0 %v2565, 16
      %v2966 = vpop.permute.xlu0 %2965
      %2967 = vrot.lane.b32.xlu0 %v2566, 16
      %v2968 = vpop.permute.xlu0 %2967
      %2985 = vrot.lane.b32.xlu0 %v2567, 32
      %v2986 = vpop.permute.xlu0 %2985
      %2987 = vrot.lane.b32.xlu0 %v2568, 32
      %v2988 = vpop.permute.xlu0 %2987
      %2989 = vrot.lane.b32.xlu0 %v2569, 32
      %v2990 = vpop.permute.xlu0 %2989
      %2991 = vrot.lane.b32.xlu0 %v2570, 32
      %v2992 = vpop.permute.xlu0 %2991
      %2993 = vrot.lane.b32.xlu0 %v2571, 32
      %v2994 = vpop.permute.xlu0 %2993
      %2995 = vrot.lane.b32.xlu0 %v2572, 32
      %v2996 = vpop.permute.xlu0 %2995
      %2997 = vrot.lane.b32.xlu0 %v2573, 32
      %v2998 = vpop.permute.xlu0 %2997
      %2999 = vrot.lane.b32.xlu0 %v2574, 32
      %v3000 = vpop.permute.xlu0 %2999
      %3009 = vrot.lane.b32.xlu0 %v2583, 48
      %v3010 = vpop.permute.xlu0 %3009
      %3011 = vrot.lane.b32.xlu0 %v2584, 48
      %v3012 = vpop.permute.xlu0 %3011
      %3013 = vrot.lane.b32.xlu0 %v2585, 48
      %v3014 = vpop.permute.xlu0 %3013
      %3015 = vrot.lane.b32.xlu0 %v2586, 48
      %v3016 = vpop.permute.xlu0 %3015
      %3017 = vrot.lane.b32.xlu0 %v2587, 48
      %v3018 = vpop.permute.xlu0 %3017
      %3019 = vrot.lane.b32.xlu0 %v2588, 48
      %v3020 = vpop.permute.xlu0 %3019
      %3021 = vrot.lane.b32.xlu0 %v2589, 48
      %v3022 = vpop.permute.xlu0 %3021
      %3023 = vrot.lane.b32.xlu0 %v2590, 48
      %v3024 = vpop.permute.xlu0 %3023
      %3033 = vrot.lane.b32.xlu0 %v2591, 64
      %v3034 = vpop.permute.xlu0 %3033
      %3035 = vrot.lane.b32.xlu0 %v2592, 64
      %v3036 = vpop.permute.xlu0 %3035
      %3037 = vrot.lane.b32.xlu0 %v2593, 64
      %v3038 = vpop.permute.xlu0 %3037
      %3039 = vrot.lane.b32.xlu0 %v2594, 64
      %v3040 = vpop.permute.xlu0 %3039
      %3041 = vrot.lane.b32.xlu0 %v2595, 64
      %v3042 = vpop.permute.xlu0 %3041
      %3043 = vrot.lane.b32.xlu0 %v2596, 64
      %v3044 = vpop.permute.xlu0 %3043
      %3045 = vrot.lane.b32.xlu0 %v2597, 64
      %v3046 = vpop.permute.xlu0 %3045
      %3047 = vrot.lane.b32.xlu0 %v2598, 64
      %v3048 = vpop.permute.xlu0 %3047
      %3065 = vrot.lane.b32.xlu0 %v2599, 80
      %v3066 = vpop.permute.xlu0 %3065
      %3067 = vrot.lane.b32.xlu0 %v2600, 80
      %v3068 = vpop.permute.xlu0 %3067
      %3069 = vrot.lane.b32.xlu0 %v2601, 80
      %v3070 = vpop.permute.xlu0 %3069
      %3071 = vrot.lane.b32.xlu0 %v2602, 80
      %v3072 = vpop.permute.xlu0 %3071
      %3073 = vrot.lane.b32.xlu0 %v2603, 80
      %v3074 = vpop.permute.xlu0 %3073
      %3075 = vrot.lane.b32.xlu0 %v2604, 80
      %v3076 = vpop.permute.xlu0 %3075
      %3077 = vrot.lane.b32.xlu0 %v2605, 80
      %v3078 = vpop.permute.xlu0 %3077
      %3079 = vrot.lane.b32.xlu0 %v2606, 80
      %v3080 = vpop.permute.xlu0 %3079
      %3089 = vrot.lane.b32.xlu0 %v2615, 96
      %v3090 = vpop.permute.xlu0 %3089
      %3091 = vrot.lane.b32.xlu0 %v2616, 96
      %v3092 = vpop.permute.xlu0 %3091
      %3093 = vrot.lane.b32.xlu0 %v2617, 96
      %v3094 = vpop.permute.xlu0 %3093
      %3095 = vrot.lane.b32.xlu0 %v2618, 96
      %v3096 = vpop.permute.xlu0 %3095
      %3097 = vrot.lane.b32.xlu0 %v2619, 96
      %v3098 = vpop.permute.xlu0 %3097
      %3099 = vrot.lane.b32.xlu0 %v2620, 96
      %v3100 = vpop.permute.xlu0 %3099
      %3101 = vrot.lane.b32.xlu0 %v2621, 96
      %v3102 = vpop.permute.xlu0 %3101
      %3103 = vrot.lane.b32.xlu0 %v2622, 96
      %v3104 = vpop.permute.xlu0 %3103
      %3121 = vrot.lane.b32.xlu0 %v2623, 112
      %v3122 = vpop.permute.xlu0 %3121
      %3123 = vrot.lane.b32.xlu0 %v2624, 112
      %v3124 = vpop.permute.xlu0 %3123
      %3125 = vrot.lane.b32.xlu0 %v2625, 112
      %v3126 = vpop.permute.xlu0 %3125
      %3127 = vrot.lane.b32.xlu0 %v2626, 112
      %v3128 = vpop.permute.xlu0 %3127
      %3129 = vrot.lane.b32.xlu0 %v2627, 112
      %v3130 = vpop.permute.xlu0 %3129
      %3131 = vrot.lane.b32.xlu0 %v2628, 112
      %v3132 = vpop.permute.xlu0 %3131
      %3133 = vrot.lane.b32.xlu0 %v2629, 112
      %v3134 = vpop.permute.xlu0 %3133
      %3135 = vrot.lane.b32.xlu0 %v2630, 112
      %v3136 = vpop.permute.xlu0 %3135
      %v3145 = vsel %vm427, %v2551, %v2954
      %v3146 = vsel %vm427, %v2552, %v2956
      %v3147 = vsel %vm427, %v2553, %v2958
      %v3148 = vsel %vm427, %v2554, %v2960
      %v3149 = vsel %vm427, %v2555, %v2962
      %v3150 = vsel %vm427, %v2556, %v2964
      %v3151 = vsel %vm427, %v2557, %v2966
      %v3152 = vsel %vm427, %v2558, %v2968
      %v3153 = vsel %vm771, %v3145, %v2986
      %v3154 = vsel %vm771, %v3146, %v2988
      %v3155 = vsel %vm771, %v3147, %v2990
      %v3156 = vsel %vm771, %v3148, %v2992
      %v3157 = vsel %vm771, %v3149, %v2994
      %v3158 = vsel %vm771, %v3150, %v2996
      %v3159 = vsel %vm771, %v3151, %v2998
      %v3160 = vsel %vm771, %v3152, %v3000
      %v3161 = vsel %vm780, %v3153, %v3010
      %v3162 = vsel %vm780, %v3154, %v3012
      %v3163 = vsel %vm780, %v3155, %v3014
      %v3164 = vsel %vm780, %v3156, %v3016
      %v3165 = vsel %vm780, %v3157, %v3018
      %v3166 = vsel %vm780, %v3158, %v3020
      %v3167 = vsel %vm780, %v3159, %v3022
      %v3168 = vsel %vm780, %v3160, %v3024
      %v3169 = vsel %vm789, %v3161, %v3034
      %v3170 = vsel %vm789, %v3162, %v3036
      %v3171 = vsel %vm789, %v3163, %v3038
      %v3172 = vsel %vm789, %v3164, %v3040
      %v3173 = vsel %vm789, %v3165, %v3042
      %v3174 = vsel %vm789, %v3166, %v3044
      %v3175 = vsel %vm789, %v3167, %v3046
      %v3176 = vsel %vm789, %v3168, %v3048
      %v3177 = vsel %vm798, %v3169, %v3066
      %v3178 = vsel %vm798, %v3170, %v3068
      %v3179 = vsel %vm798, %v3171, %v3070
      %v3180 = vsel %vm798, %v3172, %v3072
      %v3181 = vsel %vm798, %v3173, %v3074
      %v3182 = vsel %vm798, %v3174, %v3076
      %v3183 = vsel %vm798, %v3175, %v3078
      %v3184 = vsel %vm798, %v3176, %v3080
      %v3185 = vsel %vm807, %v3177, %v3090
      %v3186 = vsel %vm807, %v3178, %v3092
      %v3187 = vsel %vm807, %v3179, %v3094
      %v3188 = vsel %vm807, %v3180, %v3096
      %v3189 = vsel %vm807, %v3181, %v3098
      %v3190 = vsel %vm807, %v3182, %v3100
      %v3191 = vsel %vm807, %v3183, %v3102
      %v3192 = vsel %vm807, %v3184, %v3104
      %v3193 = vsel %vm816, %v3185, %v3122
      %v3194 = vsel %vm816, %v3186, %v3124
      %v3195 = vsel %vm816, %v3187, %v3126
      %v3196 = vsel %vm816, %v3188, %v3128
      %v3197 = vsel %vm816, %v3189, %v3130
      %v3198 = vsel %vm816, %v3190, %v3132
      %v3199 = vsel %vm816, %v3191, %v3134
      %v3200 = vsel %vm816, %v3192, %v3136
      %3201 = vrot.lane.b32.xlu0 %v2583, 16
      %v3202 = vpop.permute.xlu0 %3201
      %3203 = vrot.lane.b32.xlu0 %v2584, 16
      %v3204 = vpop.permute.xlu0 %3203
      %3205 = vrot.lane.b32.xlu0 %v2585, 16
      %v3206 = vpop.permute.xlu0 %3205
      %3207 = vrot.lane.b32.xlu0 %v2586, 16
      %v3208 = vpop.permute.xlu0 %3207
      %3209 = vrot.lane.b32.xlu0 %v2587, 16
      %v3210 = vpop.permute.xlu0 %3209
      %3211 = vrot.lane.b32.xlu0 %v2588, 16
      %v3212 = vpop.permute.xlu0 %3211
      %3213 = vrot.lane.b32.xlu0 %v2589, 16
      %v3214 = vpop.permute.xlu0 %3213
      %3215 = vrot.lane.b32.xlu0 %v2590, 16
      %v3216 = vpop.permute.xlu0 %3215
      %3225 = vrot.lane.b32.xlu0 %v2591, 32
      %v3226 = vpop.permute.xlu0 %3225
      %3227 = vrot.lane.b32.xlu0 %v2592, 32
      %v3228 = vpop.permute.xlu0 %3227
      %3229 = vrot.lane.b32.xlu0 %v2593, 32
      %v3230 = vpop.permute.xlu0 %3229
      %3231 = vrot.lane.b32.xlu0 %v2594, 32
      %v3232 = vpop.permute.xlu0 %3231
      %3233 = vrot.lane.b32.xlu0 %v2595, 32
      %v3234 = vpop.permute.xlu0 %3233
      %3235 = vrot.lane.b32.xlu0 %v2596, 32
      %v3236 = vpop.permute.xlu0 %3235
      %3237 = vrot.lane.b32.xlu0 %v2597, 32
      %v3238 = vpop.permute.xlu0 %3237
      %3239 = vrot.lane.b32.xlu0 %v2598, 32
      %v3240 = vpop.permute.xlu0 %3239
      %3249 = vrot.lane.b32.xlu0 %v2607, 48
      %v3250 = vpop.permute.xlu0 %3249
      %3251 = vrot.lane.b32.xlu0 %v2608, 48
      %v3252 = vpop.permute.xlu0 %3251
      %3253 = vrot.lane.b32.xlu0 %v2609, 48
      %v3254 = vpop.permute.xlu0 %3253
      %3255 = vrot.lane.b32.xlu0 %v2610, 48
      %v3256 = vpop.permute.xlu0 %3255
      %3257 = vrot.lane.b32.xlu0 %v2611, 48
      %v3258 = vpop.permute.xlu0 %3257
      %3259 = vrot.lane.b32.xlu0 %v2612, 48
      %v3260 = vpop.permute.xlu0 %3259
      %3261 = vrot.lane.b32.xlu0 %v2613, 48
      %v3262 = vpop.permute.xlu0 %3261
      %3263 = vrot.lane.b32.xlu0 %v2614, 48
      %v3264 = vpop.permute.xlu0 %3263
      %3273 = vrot.lane.b32.xlu0 %v2615, 64
      %v3274 = vpop.permute.xlu0 %3273
      %3275 = vrot.lane.b32.xlu0 %v2616, 64
      %v3276 = vpop.permute.xlu0 %3275
      %3277 = vrot.lane.b32.xlu0 %v2617, 64
      %v3278 = vpop.permute.xlu0 %3277
      %3279 = vrot.lane.b32.xlu0 %v2618, 64
      %v3280 = vpop.permute.xlu0 %3279
      %3281 = vrot.lane.b32.xlu0 %v2619, 64
      %v3282 = vpop.permute.xlu0 %3281
      %3283 = vrot.lane.b32.xlu0 %v2620, 64
      %v3284 = vpop.permute.xlu0 %3283
      %3285 = vrot.lane.b32.xlu0 %v2621, 64
      %v3286 = vpop.permute.xlu0 %3285
      %3287 = vrot.lane.b32.xlu0 %v2622, 64
      %v3288 = vpop.permute.xlu0 %3287
      %3297 = vrot.lane.b32.xlu0 %v2623, 80
      %v3298 = vpop.permute.xlu0 %3297
      %3299 = vrot.lane.b32.xlu0 %v2624, 80
      %v3300 = vpop.permute.xlu0 %3299
      %3301 = vrot.lane.b32.xlu0 %v2625, 80
      %v3302 = vpop.permute.xlu0 %3301
      %3303 = vrot.lane.b32.xlu0 %v2626, 80
      %v3304 = vpop.permute.xlu0 %3303
      %3305 = vrot.lane.b32.xlu0 %v2627, 80
      %v3306 = vpop.permute.xlu0 %3305
      %3307 = vrot.lane.b32.xlu0 %v2628, 80
      %v3308 = vpop.permute.xlu0 %3307
      %3309 = vrot.lane.b32.xlu0 %v2629, 80
      %v3310 = vpop.permute.xlu0 %3309
      %3311 = vrot.lane.b32.xlu0 %v2630, 80
      %v3312 = vpop.permute.xlu0 %3311
      %3329 = vrot.lane.b32.xlu0 %v2640, 96
      %v3330 = vpop.permute.xlu0 %3329
      %3331 = vrot.lane.b32.xlu0 %v2641, 96
      %v3332 = vpop.permute.xlu0 %3331
      %3333 = vrot.lane.b32.xlu0 %v2642, 96
      %v3334 = vpop.permute.xlu0 %3333
      %3335 = vrot.lane.b32.xlu0 %v2643, 96
      %v3336 = vpop.permute.xlu0 %3335
      %3337 = vrot.lane.b32.xlu0 %v2644, 96
      %v3338 = vpop.permute.xlu0 %3337
      %3339 = vrot.lane.b32.xlu0 %v2645, 96
      %v3340 = vpop.permute.xlu0 %3339
      %3341 = vrot.lane.b32.xlu0 %v2646, 96
      %v3342 = vpop.permute.xlu0 %3341
      %3343 = vrot.lane.b32.xlu0 %v2647, 96
      %v3344 = vpop.permute.xlu0 %3343
      %3361 = vrot.lane.b32.xlu0 %v2649, 112
      %v3362 = vpop.permute.xlu0 %3361
      %3363 = vrot.lane.b32.xlu0 %v2650, 112
      %v3364 = vpop.permute.xlu0 %3363
      %3365 = vrot.lane.b32.xlu0 %v2651, 112
      %v3366 = vpop.permute.xlu0 %3365
      %3367 = vrot.lane.b32.xlu0 %v2652, 112
      %v3368 = vpop.permute.xlu0 %3367
      %3369 = vrot.lane.b32.xlu0 %v2653, 112
      %v3370 = vpop.permute.xlu0 %3369
      %3371 = vrot.lane.b32.xlu0 %v2654, 112
      %v3372 = vpop.permute.xlu0 %3371
      %3373 = vrot.lane.b32.xlu0 %v2655, 112
      %v3374 = vpop.permute.xlu0 %3373
      %3375 = vrot.lane.b32.xlu0 %v2656, 112
      %v3376 = vpop.permute.xlu0 %3375
      %v3385 = vsel %vm427, %v2575, %v3202
      %v3386 = vsel %vm427, %v2576, %v3204
      %v3387 = vsel %vm427, %v2577, %v3206
      %v3388 = vsel %vm427, %v2578, %v3208
      %v3389 = vsel %vm427, %v2579, %v3210
      %v3390 = vsel %vm427, %v2580, %v3212
      %v3391 = vsel %vm427, %v2581, %v3214
      %v3392 = vsel %vm427, %v2582, %v3216
      %v3393 = vsel %vm771, %v3385, %v3226
      %v3394 = vsel %vm771, %v3386, %v3228
      %v3395 = vsel %vm771, %v3387, %v3230
      %v3396 = vsel %vm771, %v3388, %v3232
      %v3397 = vsel %vm771, %v3389, %v3234
      %v3398 = vsel %vm771, %v3390, %v3236
      %v3399 = vsel %vm771, %v3391, %v3238
      %v3400 = vsel %vm771, %v3392, %v3240
      %v3401 = vsel %vm780, %v3393, %v3250
      %v3402 = vsel %vm780, %v3394, %v3252
      %v3403 = vsel %vm780, %v3395, %v3254
      %v3404 = vsel %vm780, %v3396, %v3256
      %v3405 = vsel %vm780, %v3397, %v3258
      %v3406 = vsel %vm780, %v3398, %v3260
      %v3407 = vsel %vm780, %v3399, %v3262
      %v3408 = vsel %vm780, %v3400, %v3264
      %v3409 = vsel %vm789, %v3401, %v3274
      %v3410 = vsel %vm789, %v3402, %v3276
      %v3411 = vsel %vm789, %v3403, %v3278
      %v3412 = vsel %vm789, %v3404, %v3280
      %v3413 = vsel %vm789, %v3405, %v3282
      %v3414 = vsel %vm789, %v3406, %v3284
      %v3415 = vsel %vm789, %v3407, %v3286
      %v3416 = vsel %vm789, %v3408, %v3288
      %v3417 = vsel %vm798, %v3409, %v3298
      %v3418 = vsel %vm798, %v3410, %v3300
      %v3419 = vsel %vm798, %v3411, %v3302
      %v3420 = vsel %vm798, %v3412, %v3304
      %v3421 = vsel %vm798, %v3413, %v3306
      %v3422 = vsel %vm798, %v3414, %v3308
      %v3423 = vsel %vm798, %v3415, %v3310
      %v3424 = vsel %vm798, %v3416, %v3312
      %v3425 = vsel %vm807, %v3417, %v3330
      %v3426 = vsel %vm807, %v3418, %v3332
      %v3427 = vsel %vm807, %v3419, %v3334
      %v3428 = vsel %vm807, %v3420, %v3336
      %v3429 = vsel %vm807, %v3421, %v3338
      %v3430 = vsel %vm807, %v3422, %v3340
      %v3431 = vsel %vm807, %v3423, %v3342
      %v3432 = vsel %vm807, %v3424, %v3344
      %v3433 = vsel %vm816, %v3425, %v3362
      %v3434 = vsel %vm816, %v3426, %v3364
      %v3435 = vsel %vm816, %v3427, %v3366
      %v3436 = vsel %vm816, %v3428, %v3368
      %v3437 = vsel %vm816, %v3429, %v3370
      %v3438 = vsel %vm816, %v3430, %v3372
      %v3439 = vsel %vm816, %v3431, %v3374
      %v3440 = vsel %vm816, %v3432, %v3376
      %3441 = vrot.lane.b32.xlu0 %v2591, 16
      %v3442 = vpop.permute.xlu0 %3441
      %3443 = vrot.lane.b32.xlu0 %v2592, 16
      %v3444 = vpop.permute.xlu0 %3443
      %3445 = vrot.lane.b32.xlu0 %v2593, 16
      %v3446 = vpop.permute.xlu0 %3445
      %3447 = vrot.lane.b32.xlu0 %v2594, 16
      %v3448 = vpop.permute.xlu0 %3447
      %3449 = vrot.lane.b32.xlu0 %v2595, 16
      %v3450 = vpop.permute.xlu0 %3449
      %3451 = vrot.lane.b32.xlu0 %v2596, 16
      %v3452 = vpop.permute.xlu0 %3451
      %3453 = vrot.lane.b32.xlu0 %v2597, 16
      %v3454 = vpop.permute.xlu0 %3453
      %3455 = vrot.lane.b32.xlu0 %v2598, 16
      %v3456 = vpop.permute.xlu0 %3455
      %3465 = vrot.lane.b32.xlu0 %v2599, 32
      %v3466 = vpop.permute.xlu0 %3465
      %3467 = vrot.lane.b32.xlu0 %v2600, 32
      %v3468 = vpop.permute.xlu0 %3467
      %3469 = vrot.lane.b32.xlu0 %v2601, 32
      %v3470 = vpop.permute.xlu0 %3469
      %3471 = vrot.lane.b32.xlu0 %v2602, 32
      %v3472 = vpop.permute.xlu0 %3471
      %3473 = vrot.lane.b32.xlu0 %v2603, 32
      %v3474 = vpop.permute.xlu0 %3473
      %3475 = vrot.lane.b32.xlu0 %v2604, 32
      %v3476 = vpop.permute.xlu0 %3475
      %3477 = vrot.lane.b32.xlu0 %v2605, 32
      %v3478 = vpop.permute.xlu0 %3477
      %3479 = vrot.lane.b32.xlu0 %v2606, 32
      %v3480 = vpop.permute.xlu0 %3479
      %3489 = vrot.lane.b32.xlu0 %v2615, 48
      %v3490 = vpop.permute.xlu0 %3489
      %3491 = vrot.lane.b32.xlu0 %v2616, 48
      %v3492 = vpop.permute.xlu0 %3491
      %3493 = vrot.lane.b32.xlu0 %v2617, 48
      %v3494 = vpop.permute.xlu0 %3493
      %3495 = vrot.lane.b32.xlu0 %v2618, 48
      %v3496 = vpop.permute.xlu0 %3495
      %3497 = vrot.lane.b32.xlu0 %v2619, 48
      %v3498 = vpop.permute.xlu0 %3497
      %3499 = vrot.lane.b32.xlu0 %v2620, 48
      %v3500 = vpop.permute.xlu0 %3499
      %3501 = vrot.lane.b32.xlu0 %v2621, 48
      %v3502 = vpop.permute.xlu0 %3501
      %3503 = vrot.lane.b32.xlu0 %v2622, 48
      %v3504 = vpop.permute.xlu0 %3503
      %3513 = vrot.lane.b32.xlu0 %v2623, 64
      %v3514 = vpop.permute.xlu0 %3513
      %3515 = vrot.lane.b32.xlu0 %v2624, 64
      %v3516 = vpop.permute.xlu0 %3515
      %3517 = vrot.lane.b32.xlu0 %v2625, 64
      %v3518 = vpop.permute.xlu0 %3517
      %3519 = vrot.lane.b32.xlu0 %v2626, 64
      %v3520 = vpop.permute.xlu0 %3519
      %3521 = vrot.lane.b32.xlu0 %v2627, 64
      %v3522 = vpop.permute.xlu0 %3521
      %3523 = vrot.lane.b32.xlu0 %v2628, 64
      %v3524 = vpop.permute.xlu0 %3523
      %3525 = vrot.lane.b32.xlu0 %v2629, 64
      %v3526 = vpop.permute.xlu0 %3525
      %3527 = vrot.lane.b32.xlu0 %v2630, 64
      %v3528 = vpop.permute.xlu0 %3527
      %3545 = vrot.lane.b32.xlu0 %v2631, 80
      %v3546 = vpop.permute.xlu0 %3545
      %3547 = vrot.lane.b32.xlu0 %v2632, 80
      %v3548 = vpop.permute.xlu0 %3547
      %3549 = vrot.lane.b32.xlu0 %v2633, 80
      %v3550 = vpop.permute.xlu0 %3549
      %3551 = vrot.lane.b32.xlu0 %v2634, 80
      %v3552 = vpop.permute.xlu0 %3551
      %3553 = vrot.lane.b32.xlu0 %v2635, 80
      %v3554 = vpop.permute.xlu0 %3553
      %3555 = vrot.lane.b32.xlu0 %v2636, 80
      %v3556 = vpop.permute.xlu0 %3555
      %3557 = vrot.lane.b32.xlu0 %v2637, 80
      %v3558 = vpop.permute.xlu0 %3557
      %3559 = vrot.lane.b32.xlu0 %v2638, 80
      %v3560 = vpop.permute.xlu0 %3559
      %3569 = vrot.lane.b32.xlu0 %v2649, 96
      %v3570 = vpop.permute.xlu0 %3569
      %3571 = vrot.lane.b32.xlu0 %v2650, 96
      %v3572 = vpop.permute.xlu0 %3571
      %3573 = vrot.lane.b32.xlu0 %v2651, 96
      %v3574 = vpop.permute.xlu0 %3573
      %3575 = vrot.lane.b32.xlu0 %v2652, 96
      %v3576 = vpop.permute.xlu0 %3575
      %3577 = vrot.lane.b32.xlu0 %v2653, 96
      %v3578 = vpop.permute.xlu0 %3577
      %3579 = vrot.lane.b32.xlu0 %v2654, 96
      %v3580 = vpop.permute.xlu0 %3579
      %3581 = vrot.lane.b32.xlu0 %v2655, 96
      %v3582 = vpop.permute.xlu0 %3581
      %3583 = vrot.lane.b32.xlu0 %v2656, 96
      %v3584 = vpop.permute.xlu0 %3583
      %3601 = vrot.lane.b32.xlu0 %v2657, 112
      %v3602 = vpop.permute.xlu0 %3601
      %3603 = vrot.lane.b32.xlu0 %v2658, 112
      %v3604 = vpop.permute.xlu0 %3603
      %3605 = vrot.lane.b32.xlu0 %v2659, 112
      %v3606 = vpop.permute.xlu0 %3605
      %3607 = vrot.lane.b32.xlu0 %v2660, 112
      %v3608 = vpop.permute.xlu0 %3607
      %3609 = vrot.lane.b32.xlu0 %v2661, 112
      %v3610 = vpop.permute.xlu0 %3609
      %3611 = vrot.lane.b32.xlu0 %v2662, 112
      %v3612 = vpop.permute.xlu0 %3611
      %3613 = vrot.lane.b32.xlu0 %v2663, 112
      %v3614 = vpop.permute.xlu0 %3613
      %3615 = vrot.lane.b32.xlu0 %v2664, 112
      %v3616 = vpop.permute.xlu0 %3615
      %v3625 = vsel %vm427, %v2583, %v3442
      %v3626 = vsel %vm427, %v2584, %v3444
      %v3627 = vsel %vm427, %v2585, %v3446
      %v3628 = vsel %vm427, %v2586, %v3448
      %v3629 = vsel %vm427, %v2587, %v3450
      %v3630 = vsel %vm427, %v2588, %v3452
      %v3631 = vsel %vm427, %v2589, %v3454
      %v3632 = vsel %vm427, %v2590, %v3456
      %v3633 = vsel %vm771, %v3625, %v3466
      %v3634 = vsel %vm771, %v3626, %v3468
      %v3635 = vsel %vm771, %v3627, %v3470
      %v3636 = vsel %vm771, %v3628, %v3472
      %v3637 = vsel %vm771, %v3629, %v3474
      %v3638 = vsel %vm771, %v3630, %v3476
      %v3639 = vsel %vm771, %v3631, %v3478
      %v3640 = vsel %vm771, %v3632, %v3480
      %v3641 = vsel %vm780, %v3633, %v3490
      %v3642 = vsel %vm780, %v3634, %v3492
      %v3643 = vsel %vm780, %v3635, %v3494
      %v3644 = vsel %vm780, %v3636, %v3496
      %v3645 = vsel %vm780, %v3637, %v3498
      %v3646 = vsel %vm780, %v3638, %v3500
      %v3647 = vsel %vm780, %v3639, %v3502
      %v3648 = vsel %vm780, %v3640, %v3504
      %v3649 = vsel %vm789, %v3641, %v3514
      %v3650 = vsel %vm789, %v3642, %v3516
      %v3651 = vsel %vm789, %v3643, %v3518
      %v3652 = vsel %vm789, %v3644, %v3520
      %v3653 = vsel %vm789, %v3645, %v3522
      %v3654 = vsel %vm789, %v3646, %v3524
      %v3655 = vsel %vm789, %v3647, %v3526
      %v3656 = vsel %vm789, %v3648, %v3528
      %v3657 = vsel %vm798, %v3649, %v3546
      %v3658 = vsel %vm798, %v3650, %v3548
      %v3659 = vsel %vm798, %v3651, %v3550
      %v3660 = vsel %vm798, %v3652, %v3552
      %v3661 = vsel %vm798, %v3653, %v3554
      %v3662 = vsel %vm798, %v3654, %v3556
      %v3663 = vsel %vm798, %v3655, %v3558
      %v3664 = vsel %vm798, %v3656, %v3560
      %v3665 = vsel %vm807, %v3657, %v3570
      %v3666 = vsel %vm807, %v3658, %v3572
      %v3667 = vsel %vm807, %v3659, %v3574
      %v3668 = vsel %vm807, %v3660, %v3576
      %v3669 = vsel %vm807, %v3661, %v3578
      %v3670 = vsel %vm807, %v3662, %v3580
      %v3671 = vsel %vm807, %v3663, %v3582
      %v3672 = vsel %vm807, %v3664, %v3584
      %v3673 = vsel %vm816, %v3665, %v3602
      %v3674 = vsel %vm816, %v3666, %v3604
      %v3675 = vsel %vm816, %v3667, %v3606
      %v3676 = vsel %vm816, %v3668, %v3608
      %v3677 = vsel %vm816, %v3669, %v3610
      %v3678 = vsel %vm816, %v3670, %v3612
      %v3679 = vsel %vm816, %v3671, %v3614
      %v3680 = vsel %vm816, %v3672, %v3616
      %v3681 = vld [vmem:[%s7] sm:$0xff]
      %v3682 = vld [vmem:[%s7 + $0x8] sm:$0xff]
      %v3683 = vld [vmem:[%s7 + $0x10] sm:$0xff]
      %v3684 = vld [vmem:[%s7 + $0x18] sm:$0xff]
      %v3685 = vld [vmem:[%s7 + $0x20] sm:$0xff]
      %v3686 = vld [vmem:[%s7 + $0x28] sm:$0xff]
      %v3687 = vld [vmem:[%s7 + $0x30] sm:$0xff]
      %v3688 = vld [vmem:[%s7 + $0x38] sm:$0xff]
      %v3689 = vld [vmem:[%s7 + $0x40] sm:$0xff]
      %v3690 = vld [vmem:[%s7 + $0x48] sm:$0xff]
      %v3691 = vld [vmem:[%s7 + $0x50] sm:$0xff]
      %v3692 = vld [vmem:[%s7 + $0x58] sm:$0xff]
      %v3693 = vld [vmem:[%s7 + $0x60] sm:$0xff]
      %v3694 = vld [vmem:[%s7 + $0x68] sm:$0xff]
      %v3695 = vld [vmem:[%s7 + $0x70] sm:$0xff]
      %v3696 = vld [vmem:[%s7 + $0x78] sm:$0xff]
      %v3697 = vld [vmem:[%s7 + $0x80] sm:$0xff]
      %v3698 = vld [vmem:[%s7 + $0x88] sm:$0xff]
      %v3699 = vld [vmem:[%s8] sm:$0x1]
      %v3700 = vperm.slane %v3699, 0
      %v3701 = vsel %vm427, %v2623, 0
      %v3703 = vsel %vm427, %v2624, 0
      %v3705 = vsel %vm427, %v2625, 0
      %v3707 = vsel %vm427, %v2626, 0
      %v3709 = vsel %vm427, %v2627, 0
      %v3711 = vsel %vm427, %v2628, 0
      %v3713 = vsel %vm427, %v2629, 0
      %v3715 = vsel %vm427, %v2630, 0
      %v3717 = vsel %vm427, %v2631, 0
      %v3719 = vsel %vm427, %v2632, 0
      %v3721 = vsel %vm427, %v2633, 0
      %v3723 = vsel %vm427, %v2634, 0
      %v3725 = vsel %vm427, %v2635, 0
      %v3727 = vsel %vm427, %v2636, 0
      %v3729 = vsel %vm427, %v2637, 0
      %v3731 = vsel %vm427, %v2638, 0
      %v3733 = vsel %vm427, %v2657, 0
      %v3735 = vsel %vm427, %v2658, 0
      %v3737 = vsel %vm427, %v2659, 0
      %v3739 = vsel %vm427, %v2660, 0
      %v3741 = vsel %vm427, %v2661, 0
      %v3743 = vsel %vm427, %v2662, 0
      %v3745 = vsel %vm427, %v2663, 0
      %v3747 = vsel %vm427, %v2664, 0
      %v3750 = vsel %vm427, %v2665, 0
      %v3753 = vsel %vm427, %v2666, 0
      %v3756 = vsel %vm427, %v2667, 0
      %v3759 = vsel %vm427, %v2668, 0
      %v3762 = vsel %vm427, %v2669, 0
      %v3765 = vsel %vm427, %v2670, 0
      %v3768 = vsel %vm427, %v2671, 0
      %v3771 = vsel %vm427, %v2672, 0
      %3773 = vmatpush.msra.mxu0 %v3696
      %3774 = vmatpush.msra.mxu0 %v3695
      %3775 = vmatpush.msra.mxu0 %v3694
      %3776 = vmatpush.msra.mxu0 %v3693
      %3777 = vmatpush.msra.mxu0 %v3692
      %3778 = vmatpush.msra.mxu0 %v3691
      %3779 = vmatpush.msra.mxu0 %v3690
      %3780 = vmatpush.msra.mxu0 %v3689
      %3781 = vmatpush.msra.mxu0 %v3688
      %3782 = vmatpush.msra.mxu0 %v3687
      %3783 = vmatpush.msra.mxu0 %v3686
      %3784 = vmatpush.msra.mxu0 %v3685
      %3785 = vmatpush.msra.mxu0 %v3684
      %3786 = vmatpush.msra.mxu0 %v3683
      %3787 = vmatpush.msra.mxu0 %v3682
      %3788 = vmatpush.msra.mxu0 %v3681
      %3789 = vmatmul.f32.gmra.mxu0 %v2945
      %v3790 = vpop.f32.mrf.mxu0
      %v3791 = vadd.f32 %v3700, %v3790
      %3792 = vmatmul.f32.gmra.mxu0 %v2946
      %v3793 = vpop.f32.mrf.mxu0
      %v3794 = vadd.f32 %v3700, %v3793
      %3795 = vmatmul.f32.gmra.mxu0 %v2947
      %v3796 = vpop.f32.mrf.mxu0
      %v3797 = vadd.f32 %v3700, %v3796
      %3798 = vmatmul.f32.gmra.mxu0 %v2948
      %v3799 = vpop.f32.mrf.mxu0
      %v3800 = vadd.f32 %v3700, %v3799
      %3801 = vmatmul.f32.gmra.mxu0 %v2949
      %v3802 = vpop.f32.mrf.mxu0
      %v3803 = vadd.f32 %v3700, %v3802
      %3804 = vmatmul.f32.gmra.mxu0 %v2950
      %v3805 = vpop.f32.mrf.mxu0
      %v3806 = vadd.f32 %v3700, %v3805
      %3807 = vmatmul.f32.gmra.mxu0 %v2951
      %v3808 = vpop.f32.mrf.mxu0
      %v3809 = vadd.f32 %v3700, %v3808
      %3810 = vmatmul.f32.gmra.mxu0 %v2952
      %v3811 = vpop.f32.mrf.mxu0
      %v3812 = vadd.f32 %v3700, %v3811
      %3813 = vmatmul.f32.gmra.mxu0 %v3193
      %v3814 = vpop.f32.mrf.mxu0
      %v3815 = vadd.f32 %v3700, %v3814
      %3816 = vmatmul.f32.gmra.mxu0 %v3194
      %v3817 = vpop.f32.mrf.mxu0
      %v3818 = vadd.f32 %v3700, %v3817
      %3819 = vmatmul.f32.gmra.mxu0 %v3195
      %v3820 = vpop.f32.mrf.mxu0
      %v3821 = vadd.f32 %v3700, %v3820
      %3822 = vmatmul.f32.gmra.mxu0 %v3196
      %v3823 = vpop.f32.mrf.mxu0
      %v3824 = vadd.f32 %v3700, %v3823
      %3825 = vmatmul.f32.gmra.mxu0 %v3197
      %v3826 = vpop.f32.mrf.mxu0
      %v3827 = vadd.f32 %v3700, %v3826
      %3828 = vmatmul.f32.gmra.mxu0 %v3198
      %v3829 = vpop.f32.mrf.mxu0
      %v3830 = vadd.f32 %v3700, %v3829
      %3831 = vmatmul.f32.gmra.mxu0 %v3199
      %v3832 = vpop.f32.mrf.mxu0
      %v3833 = vadd.f32 %v3700, %v3832
      %3834 = vmatmul.f32.gmra.mxu0 %v3200
      %v3835 = vpop.f32.mrf.mxu0
      %v3836 = vadd.f32 %v3700, %v3835
      %3837 = vmatmul.f32.gmra.mxu0 %v3433
      %v3838 = vpop.f32.mrf.mxu0
      %v3839 = vadd.f32 %v3700, %v3838
      %3840 = vmatmul.f32.gmra.mxu0 %v3434
      %v3841 = vpop.f32.mrf.mxu0
      %v3842 = vadd.f32 %v3700, %v3841
      %3843 = vmatmul.f32.gmra.mxu0 %v3435
      %v3844 = vpop.f32.mrf.mxu0
      %v3845 = vadd.f32 %v3700, %v3844
      %3846 = vmatmul.f32.gmra.mxu0 %v3436
      %v3847 = vpop.f32.mrf.mxu0
      %v3848 = vadd.f32 %v3700, %v3847
      %3849 = vmatmul.f32.gmra.mxu0 %v3437
      %v3850 = vpop.f32.mrf.mxu0
      %v3851 = vadd.f32 %v3700, %v3850
      %3852 = vmatmul.f32.gmra.mxu0 %v3438
      %v3853 = vpop.f32.mrf.mxu0
      %v3854 = vadd.f32 %v3700, %v3853
      %3855 = vmatmul.f32.gmra.mxu0 %v3439
      %v3856 = vpop.f32.mrf.mxu0
      %v3857 = vadd.f32 %v3700, %v3856
      %3858 = vmatmul.f32.gmra.mxu0 %v3440
      %v3859 = vpop.f32.mrf.mxu0
      %v3860 = vadd.f32 %v3700, %v3859
      %3861 = vmatmul.f32.gmra.mxu0 %v3673
      %v3862 = vpop.f32.mrf.mxu0
      %v3863 = vadd.f32 %v3700, %v3862
      %3864 = vmatmul.f32.gmra.mxu0 %v3674
      %v3865 = vpop.f32.mrf.mxu0
      %v3866 = vadd.f32 %v3700, %v3865
      %3867 = vmatmul.f32.gmra.mxu0 %v3675
      %v3868 = vpop.f32.mrf.mxu0
      %v3869 = vadd.f32 %v3700, %v3868
      %3870 = vmatmul.f32.gmra.mxu0 %v3676
      %v3871 = vpop.f32.mrf.mxu0
      %v3872 = vadd.f32 %v3700, %v3871
      %3873 = vmatmul.f32.gmra.mxu0 %v3677
      %v3874 = vpop.f32.mrf.mxu0
      %v3875 = vadd.f32 %v3700, %v3874
      %3876 = vmatmul.f32.gmra.mxu0 %v3678
      %v3877 = vpop.f32.mrf.mxu0
      %v3878 = vadd.f32 %v3700, %v3877
      %3879 = vmatmul.f32.gmra.mxu0 %v3679
      %v3880 = vpop.f32.mrf.mxu0
      %v3881 = vadd.f32 %v3700, %v3880
      %3882 = vmatmul.f32.gmra.mxu0 %v3680
      %v3883 = vpop.f32.mrf.mxu0
      %v3884 = vadd.f32 %v3700, %v3883
      %3885 = vdwg.mxu0
      %3886 = vmatpush.msra.mxu0 0.0
      %3887 = vmatpush.msra.mxu0 0.0
      %3888 = vmatpush.msra.mxu0 0.0
      %3889 = vmatpush.msra.mxu0 0.0
      %3890 = vmatpush.msra.mxu0 0.0
      %3891 = vmatpush.msra.mxu0 0.0
      %3892 = vmatpush.msra.mxu0 0.0
      %3893 = vmatpush.msra.mxu0 0.0
      %3894 = vmatpush.msra.mxu0 0.0
      %3895 = vmatpush.msra.mxu0 0.0
      %3896 = vmatpush.msra.mxu0 0.0
      %3897 = vmatpush.msra.mxu0 0.0
      %3898 = vmatpush.msra.mxu0 0.0
      %3899 = vmatpush.msra.mxu0 0.0
      %3900 = vmatpush.msra.mxu0 %v3698
      %3901 = vmatpush.msra.mxu0 %v3697
      %3902 = vmatmul.f32.gmra.mxu0 %v3701
      %v3903 = vpop.f32.mrf.mxu0
      %v3904 = vadd.f32 %v3791, %v3903
      %3905 = vmatmul.f32.gmra.mxu0 %v3703
      %v3906 = vpop.f32.mrf.mxu0
      %v3907 = vadd.f32 %v3794, %v3906
      %3908 = vmatmul.f32.gmra.mxu0 %v3705
      %v3909 = vpop.f32.mrf.mxu0
      %v3910 = vadd.f32 %v3797, %v3909
      %3911 = vmatmul.f32.gmra.mxu0 %v3707
      %v3912 = vpop.f32.mrf.mxu0
      %v3913 = vadd.f32 %v3800, %v3912
      %3914 = vmatmul.f32.gmra.mxu0 %v3709
      %v3915 = vpop.f32.mrf.mxu0
      %v3916 = vadd.f32 %v3803, %v3915
      %3917 = vmatmul.f32.gmra.mxu0 %v3711
      %v3918 = vpop.f32.mrf.mxu0
      %v3919 = vadd.f32 %v3806, %v3918
      %3920 = vmatmul.f32.gmra.mxu0 %v3713
      %v3921 = vpop.f32.mrf.mxu0
      %v3922 = vadd.f32 %v3809, %v3921
      %3923 = vmatmul.f32.gmra.mxu0 %v3715
      %v3924 = vpop.f32.mrf.mxu0
      %v3925 = vadd.f32 %v3812, %v3924
      %3926 = vmatmul.f32.gmra.mxu0 %v3717
      %v3927 = vpop.f32.mrf.mxu0
      %v3928 = vadd.f32 %v3815, %v3927
      %3929 = vmatmul.f32.gmra.mxu0 %v3719
      %v3930 = vpop.f32.mrf.mxu0
      %v3931 = vadd.f32 %v3818, %v3930
      %3932 = vmatmul.f32.gmra.mxu0 %v3721
      %v3933 = vpop.f32.mrf.mxu0
      %v3934 = vadd.f32 %v3821, %v3933
      %3935 = vmatmul.f32.gmra.mxu0 %v3723
      %v3936 = vpop.f32.mrf.mxu0
      %v3937 = vadd.f32 %v3824, %v3936
      %3938 = vmatmul.f32.gmra.mxu0 %v3725
      %v3939 = vpop.f32.mrf.mxu0
      %v3940 = vadd.f32 %v3827, %v3939
      %3941 = vmatmul.f32.gmra.mxu0 %v3727
      %v3942 = vpop.f32.mrf.mxu0
      %v3943 = vadd.f32 %v3830, %v3942
      %3944 = vmatmul.f32.gmra.mxu0 %v3729
      %v3945 = vpop.f32.mrf.mxu0
      %v3946 = vadd.f32 %v3833, %v3945
      %3947 = vmatmul.f32.gmra.mxu0 %v3731
      %v3948 = vpop.f32.mrf.mxu0
      %v3949 = vadd.f32 %v3836, %v3948
      %3950 = vmatmul.f32.gmra.mxu0 %v3733
      %v3951 = vpop.f32.mrf.mxu0
      %v3952 = vadd.f32 %v3839, %v3951
      %3953 = vmatmul.f32.gmra.mxu0 %v3735
      %v3954 = vpop.f32.mrf.mxu0
      %v3955 = vadd.f32 %v3842, %v3954
      %3956 = vmatmul.f32.gmra.mxu0 %v3737
      %v3957 = vpop.f32.mrf.mxu0
      %v3958 = vadd.f32 %v3845, %v3957
      %3959 = vmatmul.f32.gmra.mxu0 %v3739
      %v3960 = vpop.f32.mrf.mxu0
      %v3961 = vadd.f32 %v3848, %v3960
      %3962 = vmatmul.f32.gmra.mxu0 %v3741
      %v3963 = vpop.f32.mrf.mxu0
      %v3964 = vadd.f32 %v3851, %v3963
      %3965 = vmatmul.f32.gmra.mxu0 %v3743
      %v3966 = vpop.f32.mrf.mxu0
      %v3967 = vadd.f32 %v3854, %v3966
      %3968 = vmatmul.f32.gmra.mxu0 %v3745
      %v3969 = vpop.f32.mrf.mxu0
      %v3970 = vadd.f32 %v3857, %v3969
      %3971 = vmatmul.f32.gmra.mxu0 %v3747
      %v3972 = vpop.f32.mrf.mxu0
      %v3973 = vadd.f32 %v3860, %v3972
      %3974 = vmatmul.f32.gmra.mxu0 %v3750
      %v3975 = vpop.f32.mrf.mxu0
      %v3976 = vadd.f32 %v3863, %v3975
      %3977 = vmatmul.f32.gmra.mxu0 %v3753
      %v3978 = vpop.f32.mrf.mxu0
      %v3979 = vadd.f32 %v3866, %v3978
      %3980 = vmatmul.f32.gmra.mxu0 %v3756
      %v3981 = vpop.f32.mrf.mxu0
      %v3982 = vadd.f32 %v3869, %v3981
      %3983 = vmatmul.f32.gmra.mxu0 %v3759
      %v3984 = vpop.f32.mrf.mxu0
      %v3985 = vadd.f32 %v3872, %v3984
      %3986 = vmatmul.f32.gmra.mxu0 %v3762
      %v3987 = vpop.f32.mrf.mxu0
      %v3988 = vadd.f32 %v3875, %v3987
      %3989 = vmatmul.f32.gmra.mxu0 %v3765
      %v3990 = vpop.f32.mrf.mxu0
      %v3991 = vadd.f32 %v3878, %v3990
      %3992 = vmatmul.f32.gmra.mxu0 %v3768
      %v3993 = vpop.f32.mrf.mxu0
      %v3994 = vadd.f32 %v3881, %v3993
      %3995 = vmatmul.f32.gmra.mxu0 %v3771
      %v3996 = vpop.f32.mrf.mxu0
      %v3997 = vadd.f32 %v3884, %v3996
      %3998 = vdwg.mxu0
      %v3999 = vld [vmem:[%s8 + $0x1] sm:$0x1]
      %v4000 = vld [vmem:[%s8 + $0x2] sm:$0x1]
      %v4001 = vsel %vm1729, %v3904, 0.0
      %v4002 = vsel %vm1729, %v3907, 0.0
      %v4003 = vadd.f32 %v4001, %v4002
      %v4004 = vsel %vm1729, %v3910, 0.0
      %v4005 = vadd.f32 %v4003, %v4004
      %v4006 = vsel %vm1729, %v3913, 0.0
      %v4007 = vadd.f32 %v4005, %v4006
      %v4008 = vsel %vm1729, %v3916, 0.0
      %v4009 = vadd.f32 %v4007, %v4008
      %v4010 = vsel %vm1729, %v3919, 0.0
      %v4011 = vadd.f32 %v4009, %v4010
      %v4012 = vsel %vm1729, %v3922, 0.0
      %v4013 = vadd.f32 %v4011, %v4012
      %v4014 = vsel %vm1729, %v3925, 0.0
      %v4015 = vadd.f32 %v4013, %v4014
      %v4016 = vsel %vm1729, %v3928, 0.0
      %v4017 = vadd.f32 %v4015, %v4016
      %v4018 = vsel %vm1729, %v3931, 0.0
      %v4019 = vadd.f32 %v4017, %v4018
      %v4020 = vsel %vm1729, %v3934, 0.0
      %v4021 = vadd.f32 %v4019, %v4020
      %v4022 = vsel %vm1729, %v3937, 0.0
      %v4023 = vadd.f32 %v4021, %v4022
      %v4024 = vsel %vm1729, %v3940, 0.0
      %v4025 = vadd.f32 %v4023, %v4024
      %v4026 = vsel %vm1729, %v3943, 0.0
      %v4027 = vadd.f32 %v4025, %v4026
      %v4028 = vsel %vm1729, %v3946, 0.0
      %v4029 = vadd.f32 %v4027, %v4028
      %v4030 = vsel %vm1729, %v3949, 0.0
      %v4031 = vadd.f32 %v4029, %v4030
      %v4032 = vsel %vm1729, %v3952, 0.0
      %v4033 = vadd.f32 %v4031, %v4032
      %v4034 = vsel %vm1729, %v3955, 0.0
      %v4035 = vadd.f32 %v4033, %v4034
      %v4036 = vsel %vm1729, %v3958, 0.0
      %v4037 = vadd.f32 %v4035, %v4036
      %v4038 = vsel %vm1729, %v3961, 0.0
      %v4039 = vadd.f32 %v4037, %v4038
      %v4040 = vsel %vm1729, %v3964, 0.0
      %v4041 = vadd.f32 %v4039, %v4040
      %v4042 = vsel %vm1729, %v3967, 0.0
      %v4043 = vadd.f32 %v4041, %v4042
      %v4044 = vsel %vm1729, %v3970, 0.0
      %v4045 = vadd.f32 %v4043, %v4044
      %v4046 = vsel %vm1729, %v3973, 0.0
      %v4047 = vadd.f32 %v4045, %v4046
      %v4048 = vsel %vm1729, %v3976, 0.0
      %v4049 = vadd.f32 %v4047, %v4048
      %v4050 = vsel %vm1729, %v3979, 0.0
      %v4051 = vadd.f32 %v4049, %v4050
      %v4052 = vsel %vm1729, %v3982, 0.0
      %v4053 = vadd.f32 %v4051, %v4052
      %v4054 = vsel %vm1729, %v3985, 0.0
      %v4055 = vadd.f32 %v4053, %v4054
      %v4056 = vsel %vm1729, %v3988, 0.0
      %v4057 = vadd.f32 %v4055, %v4056
      %v4058 = vsel %vm1729, %v3991, 0.0
      %v4059 = vadd.f32 %v4057, %v4058
      %v4060 = vsel %vm1729, %v3994, 0.0
      %v4061 = vadd.f32 %v4059, %v4060
      %v4062 = vsel %vm1729, %v3997, 0.0
      %v4063 = vadd.f32 %v4061, %v4062
      %v4064 = vrot.slane %v4063, 4
      %v4065 = vadd.f32 %v4063, %v4064
      %v4066 = vrot.slane %v4065, 2
      %v4067 = vadd.f32 %v4065, %v4066
      %v4068 = vrot.slane %v4067, 1
      %v4069 = vadd.f32 %v4067, %v4068
      %v4070 = vsel %vm1800, %v4069, 0.0
      %v4071 = vsel %vm1802, %v4070, 0.0
      %4072 = vadd.xlane.f32.xlu0 %v4071
      %v4073 = vpop.xlane.xlu0 %4072
      %v4074 = vrot.slane %v4073, 4
      %v4075 = vadd.f32 %v4073, %v4074
      %v4076 = vrot.slane %v4075, 2
      %v4077 = vadd.f32 %v4075, %v4076
      %v4078 = vrot.slane %v4077, 1
      %v4079 = vadd.f32 %v4077, %v4078
      %s4080 = vtos %v4079
      %v4081 = vrcp.pop 1024.0
      %v4082 = vmul.f32 1024.0, %v4081
      %v4083 = vsub.f32 1.0, %v4082
      %v4084 = vmul.f32 %v4081, %v4083
      %v4085 = vadd.f32 %v4081, %v4084
      %vm4086 = vweird.f32 %v4081
      %v4087 = vsel %vm4086, %v4081, %v4085
      %s4088 = vtos %v4087
      %s4089 = smul.f32 %s4080, %s4088
      %v4090 = vstv %s4089
      %v4091 = vsel %vm1800, %v4090, 0.0
      %v4092 = vsel %vm1825, %v4069, 0.0
      %v4093 = vsel %vm1802, %v4092, 0.0
      %4094 = vadd.xlane.f32.xlu0 %v4093
      %v4095 = vpop.xlane.xlu0 %4094
      %v4096 = vrot.slane %v4095, 4
      %v4097 = vadd.f32 %v4095, %v4096
      %v4098 = vrot.slane %v4097, 2
      %v4099 = vadd.f32 %v4097, %v4098
      %v4100 = vrot.slane %v4099, 1
      %v4101 = vadd.f32 %v4099, %v4100
      %s4102 = vtos %v4101
      %v4103 = vrcp.pop 1024.0
      %v4104 = vmul.f32 1024.0, %v4103
      %v4105 = vsub.f32 1.0, %v4104
      %v4106 = vmul.f32 %v4103, %v4105
      %v4107 = vadd.f32 %v4103, %v4106
      %vm4108 = vweird.f32 %v4103
      %v4109 = vsel %vm4108, %v4103, %v4107
      %s4110 = vtos %v4109
      %s4111 = smul.f32 %s4102, %s4110
      %v4112 = vstv %s4111
      %v4113 = vsel %vm1825, %v4112, %v4091
      %v4114 = vsub.f32 %v3904, %v4113
      %v4115 = vsub.f32 %v3907, %v4113
      %v4116 = vsub.f32 %v3910, %v4113
      %v4117 = vsub.f32 %v3913, %v4113
      %v4118 = vsub.f32 %v3916, %v4113
      %v4119 = vsub.f32 %v3919, %v4113
      %v4120 = vsub.f32 %v3922, %v4113
      %v4121 = vsub.f32 %v3925, %v4113
      %v4122 = vsub.f32 %v3928, %v4113
      %v4123 = vsub.f32 %v3931, %v4113
      %v4124 = vsub.f32 %v3934, %v4113
      %v4125 = vsub.f32 %v3937, %v4113
      %v4126 = vsub.f32 %v3940, %v4113
      %v4127 = vsub.f32 %v3943, %v4113
      %v4128 = vsub.f32 %v3946, %v4113
      %v4129 = vsub.f32 %v3949, %v4113
      %v4130 = vsub.f32 %v3952, %v4113
      %v4131 = vsub.f32 %v3955, %v4113
      %v4132 = vsub.f32 %v3958, %v4113
      %v4133 = vsub.f32 %v3961, %v4113
      %v4134 = vsub.f32 %v3964, %v4113
      %v4135 = vsub.f32 %v3967, %v4113
      %v4136 = vsub.f32 %v3970, %v4113
      %v4137 = vsub.f32 %v3973, %v4113
      %v4138 = vsub.f32 %v3976, %v4113
      %v4139 = vsub.f32 %v3979, %v4113
      %v4140 = vsub.f32 %v3982, %v4113
      %v4141 = vsub.f32 %v3985, %v4113
      %v4142 = vsub.f32 %v3988, %v4113
      %v4143 = vsub.f32 %v3991, %v4113
      %v4144 = vsub.f32 %v3994, %v4113
      %v4145 = vsub.f32 %v3997, %v4113
      %v4146 = vmul.f32 %v4114, %v4114
      %v4147 = vmul.f32 %v4115, %v4115
      %v4148 = vmul.f32 %v4116, %v4116
      %v4149 = vmul.f32 %v4117, %v4117
      %v4150 = vmul.f32 %v4118, %v4118
      %v4151 = vmul.f32 %v4119, %v4119
      %v4152 = vmul.f32 %v4120, %v4120
      %v4153 = vmul.f32 %v4121, %v4121
      %v4154 = vmul.f32 %v4122, %v4122
      %v4155 = vmul.f32 %v4123, %v4123
      %v4156 = vmul.f32 %v4124, %v4124
      %v4157 = vmul.f32 %v4125, %v4125
      %v4158 = vmul.f32 %v4126, %v4126
      %v4159 = vmul.f32 %v4127, %v4127
      %v4160 = vmul.f32 %v4128, %v4128
      %v4161 = vmul.f32 %v4129, %v4129
      %v4162 = vmul.f32 %v4130, %v4130
      %v4163 = vmul.f32 %v4131, %v4131
      %v4164 = vmul.f32 %v4132, %v4132
      %v4165 = vmul.f32 %v4133, %v4133
      %v4166 = vmul.f32 %v4134, %v4134
      %v4167 = vmul.f32 %v4135, %v4135
      %v4168 = vmul.f32 %v4136, %v4136
      %v4169 = vmul.f32 %v4137, %v4137
      %v4170 = vmul.f32 %v4138, %v4138
      %v4171 = vmul.f32 %v4139, %v4139
      %v4172 = vmul.f32 %v4140, %v4140
      %v4173 = vmul.f32 %v4141, %v4141
      %v4174 = vmul.f32 %v4142, %v4142
      %v4175 = vmul.f32 %v4143, %v4143
      %v4176 = vmul.f32 %v4144, %v4144
      %v4177 = vmul.f32 %v4145, %v4145
      %v4178 = vsel %vm1729, %v4146, 0.0
      %v4179 = vsel %vm1729, %v4147, 0.0
      %v4180 = vadd.f32 %v4178, %v4179
      %v4181 = vsel %vm1729, %v4148, 0.0
      %v4182 = vadd.f32 %v4180, %v4181
      %v4183 = vsel %vm1729, %v4149, 0.0
      %v4184 = vadd.f32 %v4182, %v4183
      %v4185 = vsel %vm1729, %v4150, 0.0
      %v4186 = vadd.f32 %v4184, %v4185
      %v4187 = vsel %vm1729, %v4151, 0.0
      %v4188 = vadd.f32 %v4186, %v4187
      %v4189 = vsel %vm1729, %v4152, 0.0
      %v4190 = vadd.f32 %v4188, %v4189
      %v4191 = vsel %vm1729, %v4153, 0.0
      %v4192 = vadd.f32 %v4190, %v4191
      %v4193 = vsel %vm1729, %v4154, 0.0
      %v4194 = vadd.f32 %v4192, %v4193
      %v4195 = vsel %vm1729, %v4155, 0.0
      %v4196 = vadd.f32 %v4194, %v4195
      %v4197 = vsel %vm1729, %v4156, 0.0
      %v4198 = vadd.f32 %v4196, %v4197
      %v4199 = vsel %vm1729, %v4157, 0.0
      %v4200 = vadd.f32 %v4198, %v4199
      %v4201 = vsel %vm1729, %v4158, 0.0
      %v4202 = vadd.f32 %v4200, %v4201
      %v4203 = vsel %vm1729, %v4159, 0.0
      %v4204 = vadd.f32 %v4202, %v4203
      %v4205 = vsel %vm1729, %v4160, 0.0
      %v4206 = vadd.f32 %v4204, %v4205
      %v4207 = vsel %vm1729, %v4161, 0.0
      %v4208 = vadd.f32 %v4206, %v4207
      %v4209 = vsel %vm1729, %v4162, 0.0
      %v4210 = vadd.f32 %v4208, %v4209
      %v4211 = vsel %vm1729, %v4163, 0.0
      %v4212 = vadd.f32 %v4210, %v4211
      %v4213 = vsel %vm1729, %v4164, 0.0
      %v4214 = vadd.f32 %v4212, %v4213
      %v4215 = vsel %vm1729, %v4165, 0.0
      %v4216 = vadd.f32 %v4214, %v4215
      %v4217 = vsel %vm1729, %v4166, 0.0
      %v4218 = vadd.f32 %v4216, %v4217
      %v4219 = vsel %vm1729, %v4167, 0.0
      %v4220 = vadd.f32 %v4218, %v4219
      %v4221 = vsel %vm1729, %v4168, 0.0
      %v4222 = vadd.f32 %v4220, %v4221
      %v4223 = vsel %vm1729, %v4169, 0.0
      %v4224 = vadd.f32 %v4222, %v4223
      %v4225 = vsel %vm1729, %v4170, 0.0
      %v4226 = vadd.f32 %v4224, %v4225
      %v4227 = vsel %vm1729, %v4171, 0.0
      %v4228 = vadd.f32 %v4226, %v4227
      %v4229 = vsel %vm1729, %v4172, 0.0
      %v4230 = vadd.f32 %v4228, %v4229
      %v4231 = vsel %vm1729, %v4173, 0.0
      %v4232 = vadd.f32 %v4230, %v4231
      %v4233 = vsel %vm1729, %v4174, 0.0
      %v4234 = vadd.f32 %v4232, %v4233
      %v4235 = vsel %vm1729, %v4175, 0.0
      %v4236 = vadd.f32 %v4234, %v4235
      %v4237 = vsel %vm1729, %v4176, 0.0
      %v4238 = vadd.f32 %v4236, %v4237
      %v4239 = vsel %vm1729, %v4177, 0.0
      %v4240 = vadd.f32 %v4238, %v4239
      %v4241 = vrot.slane %v4240, 4
      %v4242 = vadd.f32 %v4240, %v4241
      %v4243 = vrot.slane %v4242, 2
      %v4244 = vadd.f32 %v4242, %v4243
      %v4245 = vrot.slane %v4244, 1
      %v4246 = vadd.f32 %v4244, %v4245
      %v4247 = vsel %vm1800, %v4246, 0.0
      %v4248 = vsel %vm1802, %v4247, 0.0
      %4249 = vadd.xlane.f32.xlu0 %v4248
      %v4250 = vpop.xlane.xlu0 %4249
      %v4251 = vrot.slane %v4250, 4
      %v4252 = vadd.f32 %v4250, %v4251
      %v4253 = vrot.slane %v4252, 2
      %v4254 = vadd.f32 %v4252, %v4253
      %v4255 = vrot.slane %v4254, 1
      %v4256 = vadd.f32 %v4254, %v4255
      %s4257 = vtos %v4256
      %v4258 = vrcp.pop 1024.0
      %v4259 = vmul.f32 1024.0, %v4258
      %v4260 = vsub.f32 1.0, %v4259
      %v4261 = vmul.f32 %v4258, %v4260
      %v4262 = vadd.f32 %v4258, %v4261
      %vm4263 = vweird.f32 %v4258
      %v4264 = vsel %vm4263, %v4258, %v4262
      %s4265 = vtos %v4264
      %s4266 = smul.f32 %s4257, %s4265
      %v4267 = vstv %s4266
      %v4268 = vsel %vm1800, %v4267, 0.0
      %v4269 = vsel %vm1825, %v4246, 0.0
      %v4270 = vsel %vm1802, %v4269, 0.0
      %4271 = vadd.xlane.f32.xlu0 %v4270
      %v4272 = vpop.xlane.xlu0 %4271
      %v4273 = vrot.slane %v4272, 4
      %v4274 = vadd.f32 %v4272, %v4273
      %v4275 = vrot.slane %v4274, 2
      %v4276 = vadd.f32 %v4274, %v4275
      %v4277 = vrot.slane %v4276, 1
      %v4278 = vadd.f32 %v4276, %v4277
      %s4279 = vtos %v4278
      %v4280 = vrcp.pop 1024.0
      %v4281 = vmul.f32 1024.0, %v4280
      %v4282 = vsub.f32 1.0, %v4281
      %v4283 = vmul.f32 %v4280, %v4282
      %v4284 = vadd.f32 %v4280, %v4283
      %vm4285 = vweird.f32 %v4280
      %v4286 = vsel %vm4285, %v4280, %v4284
      %s4287 = vtos %v4286
      %s4288 = smul.f32 %s4279, %s4287
      %v4289 = vstv %s4288
      %v4290 = vsel %vm1825, %v4289, %v4268
      %v4291 = vadd.f32 %v4290, 1e-05
      %v4292 = vrsqrt.pop %v4291
      %v4293 = vmul.f32 %v4292, %v4291
      %v4294 = vmul.f32 %v4293, %v4292
      %v4295 = vmul.f32 0.5, %v4294
      %v4296 = vsub.f32 1.5, %v4295
      %v4297 = vmul.f32 %v4292, %v4296
      %vm4298 = vweird.f32 %v4291
      %vm4299 = vweird.f32 %v4292
      %vm4300 = vmor %vm4298, %vm4299
      %v4301 = vsel %vm4300, %v4292, %v4297
      %v4302 = vmul.f32 %v4114, %v4301
      %v4303 = vmul.f32 %v4115, %v4301
      %v4304 = vmul.f32 %v4116, %v4301
      %v4305 = vmul.f32 %v4117, %v4301
      %v4306 = vmul.f32 %v4118, %v4301
      %v4307 = vmul.f32 %v4119, %v4301
      %v4308 = vmul.f32 %v4120, %v4301
      %v4309 = vmul.f32 %v4121, %v4301
      %v4310 = vmul.f32 %v4122, %v4301
      %v4311 = vmul.f32 %v4123, %v4301
      %v4312 = vmul.f32 %v4124, %v4301
      %v4313 = vmul.f32 %v4125, %v4301
      %v4314 = vmul.f32 %v4126, %v4301
      %v4315 = vmul.f32 %v4127, %v4301
      %v4316 = vmul.f32 %v4128, %v4301
      %v4317 = vmul.f32 %v4129, %v4301
      %v4318 = vmul.f32 %v4130, %v4301
      %v4319 = vmul.f32 %v4131, %v4301
      %v4320 = vmul.f32 %v4132, %v4301
      %v4321 = vmul.f32 %v4133, %v4301
      %v4322 = vmul.f32 %v4134, %v4301
      %v4323 = vmul.f32 %v4135, %v4301
      %v4324 = vmul.f32 %v4136, %v4301
      %v4325 = vmul.f32 %v4137, %v4301
      %v4326 = vmul.f32 %v4138, %v4301
      %v4327 = vmul.f32 %v4139, %v4301
      %v4328 = vmul.f32 %v4140, %v4301
      %v4329 = vmul.f32 %v4141, %v4301
      %v4330 = vmul.f32 %v4142, %v4301
      %v4331 = vmul.f32 %v4143, %v4301
      %v4332 = vmul.f32 %v4144, %v4301
      %v4333 = vmul.f32 %v4145, %v4301
      %v4334 = vperm.slane %v3999, 0
      %v4335 = vmul.f32 %v4302, %v4334
      %v4336 = vmul.f32 %v4303, %v4334
      %v4337 = vmul.f32 %v4304, %v4334
      %v4338 = vmul.f32 %v4305, %v4334
      %v4339 = vmul.f32 %v4306, %v4334
      %v4340 = vmul.f32 %v4307, %v4334
      %v4341 = vmul.f32 %v4308, %v4334
      %v4342 = vmul.f32 %v4309, %v4334
      %v4343 = vmul.f32 %v4310, %v4334
      %v4344 = vmul.f32 %v4311, %v4334
      %v4345 = vmul.f32 %v4312, %v4334
      %v4346 = vmul.f32 %v4313, %v4334
      %v4347 = vmul.f32 %v4314, %v4334
      %v4348 = vmul.f32 %v4315, %v4334
      %v4349 = vmul.f32 %v4316, %v4334
      %v4350 = vmul.f32 %v4317, %v4334
      %v4351 = vmul.f32 %v4318, %v4334
      %v4352 = vmul.f32 %v4319, %v4334
      %v4353 = vmul.f32 %v4320, %v4334
      %v4354 = vmul.f32 %v4321, %v4334
      %v4355 = vmul.f32 %v4322, %v4334
      %v4356 = vmul.f32 %v4323, %v4334
      %v4357 = vmul.f32 %v4324, %v4334
      %v4358 = vmul.f32 %v4325, %v4334
      %v4359 = vmul.f32 %v4326, %v4334
      %v4360 = vmul.f32 %v4327, %v4334
      %v4361 = vmul.f32 %v4328, %v4334
      %v4362 = vmul.f32 %v4329, %v4334
      %v4363 = vmul.f32 %v4330, %v4334
      %v4364 = vmul.f32 %v4331, %v4334
      %v4365 = vmul.f32 %v4332, %v4334
      %v4366 = vmul.f32 %v4333, %v4334
      %v4367 = vperm.slane %v4000, 0
      %v4368 = vadd.f32 %v4335, %v4367
      %v4369 = vadd.f32 %v4336, %v4367
      %v4370 = vadd.f32 %v4337, %v4367
      %v4371 = vadd.f32 %v4338, %v4367
      %v4372 = vadd.f32 %v4339, %v4367
      %v4373 = vadd.f32 %v4340, %v4367
      %v4374 = vadd.f32 %v4341, %v4367
      %v4375 = vadd.f32 %v4342, %v4367
      %v4376 = vadd.f32 %v4343, %v4367
      %v4377 = vadd.f32 %v4344, %v4367
      %v4378 = vadd.f32 %v4345, %v4367
      %v4379 = vadd.f32 %v4346, %v4367
      %v4380 = vadd.f32 %v4347, %v4367
      %v4381 = vadd.f32 %v4348, %v4367
      %v4382 = vadd.f32 %v4349, %v4367
      %v4383 = vadd.f32 %v4350, %v4367
      %v4384 = vadd.f32 %v4351, %v4367
      %v4385 = vadd.f32 %v4352, %v4367
      %v4386 = vadd.f32 %v4353, %v4367
      %v4387 = vadd.f32 %v4354, %v4367
      %v4388 = vadd.f32 %v4355, %v4367
      %v4389 = vadd.f32 %v4356, %v4367
      %v4390 = vadd.f32 %v4357, %v4367
      %v4391 = vadd.f32 %v4358, %v4367
      %v4392 = vadd.f32 %v4359, %v4367
      %v4393 = vadd.f32 %v4360, %v4367
      %v4394 = vadd.f32 %v4361, %v4367
      %v4395 = vadd.f32 %v4362, %v4367
      %v4396 = vadd.f32 %v4363, %v4367
      %v4397 = vadd.f32 %v4364, %v4367
      %v4398 = vadd.f32 %v4365, %v4367
      %v4399 = vadd.f32 %v4366, %v4367
      %vm4400 = vcmp.gt.f32.partialorder %v4368, 0.0
      %vm4401 = vcmp.gt.f32.partialorder %v4369, 0.0
      %vm4402 = vcmp.gt.f32.partialorder %v4370, 0.0
      %vm4403 = vcmp.gt.f32.partialorder %v4371, 0.0
      %vm4404 = vcmp.gt.f32.partialorder %v4372, 0.0
      %vm4405 = vcmp.gt.f32.partialorder %v4373, 0.0
      %vm4406 = vcmp.gt.f32.partialorder %v4374, 0.0
      %vm4407 = vcmp.gt.f32.partialorder %v4375, 0.0
      %vm4408 = vcmp.gt.f32.partialorder %v4376, 0.0
      %vm4409 = vcmp.gt.f32.partialorder %v4377, 0.0
      %vm4410 = vcmp.gt.f32.partialorder %v4378, 0.0
      %vm4411 = vcmp.gt.f32.partialorder %v4379, 0.0
      %vm4412 = vcmp.gt.f32.partialorder %v4380, 0.0
      %vm4413 = vcmp.gt.f32.partialorder %v4381, 0.0
      %vm4414 = vcmp.gt.f32.partialorder %v4382, 0.0
      %vm4415 = vcmp.gt.f32.partialorder %v4383, 0.0
      %vm4416 = vcmp.gt.f32.partialorder %v4384, 0.0
      %vm4417 = vcmp.gt.f32.partialorder %v4385, 0.0
      %vm4418 = vcmp.gt.f32.partialorder %v4386, 0.0
      %vm4419 = vcmp.gt.f32.partialorder %v4387, 0.0
      %vm4420 = vcmp.gt.f32.partialorder %v4388, 0.0
      %vm4421 = vcmp.gt.f32.partialorder %v4389, 0.0
      %vm4422 = vcmp.gt.f32.partialorder %v4390, 0.0
      %vm4423 = vcmp.gt.f32.partialorder %v4391, 0.0
      %vm4424 = vcmp.gt.f32.partialorder %v4392, 0.0
      %vm4425 = vcmp.gt.f32.partialorder %v4393, 0.0
      %vm4426 = vcmp.gt.f32.partialorder %v4394, 0.0
      %vm4427 = vcmp.gt.f32.partialorder %v4395, 0.0
      %vm4428 = vcmp.gt.f32.partialorder %v4396, 0.0
      %vm4429 = vcmp.gt.f32.partialorder %v4397, 0.0
      %vm4430 = vcmp.gt.f32.partialorder %v4398, 0.0
      %vm4431 = vcmp.gt.f32.partialorder %v4399, 0.0
      %v4432 = vmul.f32 %v4368, 0.2
      %v4433 = vmul.f32 %v4369, 0.2
      %v4434 = vmul.f32 %v4370, 0.2
      %v4435 = vmul.f32 %v4371, 0.2
      %v4436 = vmul.f32 %v4372, 0.2
      %v4437 = vmul.f32 %v4373, 0.2
      %v4438 = vmul.f32 %v4374, 0.2
      %v4439 = vmul.f32 %v4375, 0.2
      %v4440 = vmul.f32 %v4376, 0.2
      %v4441 = vmul.f32 %v4377, 0.2
      %v4442 = vmul.f32 %v4378, 0.2
      %v4443 = vmul.f32 %v4379, 0.2
      %v4444 = vmul.f32 %v4380, 0.2
      %v4445 = vmul.f32 %v4381, 0.2
      %v4446 = vmul.f32 %v4382, 0.2
      %v4447 = vmul.f32 %v4383, 0.2
      %v4448 = vmul.f32 %v4384, 0.2
      %v4449 = vmul.f32 %v4385, 0.2
      %v4450 = vmul.f32 %v4386, 0.2
      %v4451 = vmul.f32 %v4387, 0.2
      %v4452 = vmul.f32 %v4388, 0.2
      %v4453 = vmul.f32 %v4389, 0.2
      %v4454 = vmul.f32 %v4390, 0.2
      %v4455 = vmul.f32 %v4391, 0.2
      %v4456 = vmul.f32 %v4392, 0.2
      %v4457 = vmul.f32 %v4393, 0.2
      %v4458 = vmul.f32 %v4394, 0.2
      %v4459 = vmul.f32 %v4395, 0.2
      %v4460 = vmul.f32 %v4396, 0.2
      %v4461 = vmul.f32 %v4397, 0.2
      %v4462 = vmul.f32 %v4398, 0.2
      %v4463 = vmul.f32 %v4399, 0.2
      %v4464 = vsel %vm4400, %v4368, %v4432
      %v4465 = vsel %vm4401, %v4369, %v4433
      %v4466 = vsel %vm4402, %v4370, %v4434
      %v4467 = vsel %vm4403, %v4371, %v4435
      %v4468 = vsel %vm4404, %v4372, %v4436
      %v4469 = vsel %vm4405, %v4373, %v4437
      %v4470 = vsel %vm4406, %v4374, %v4438
      %v4471 = vsel %vm4407, %v4375, %v4439
      %v4472 = vsel %vm4408, %v4376, %v4440
      %v4473 = vsel %vm4409, %v4377, %v4441
      %v4474 = vsel %vm4410, %v4378, %v4442
      %v4475 = vsel %vm4411, %v4379, %v4443
      %v4476 = vsel %vm4412, %v4380, %v4444
      %v4477 = vsel %vm4413, %v4381, %v4445
      %v4478 = vsel %vm4414, %v4382, %v4446
      %v4479 = vsel %vm4415, %v4383, %v4447
      %v4480 = vsel %vm4416, %v4384, %v4448
      %v4481 = vsel %vm4417, %v4385, %v4449
      %v4482 = vsel %vm4418, %v4386, %v4450
      %v4483 = vsel %vm4419, %v4387, %v4451
      %v4484 = vsel %vm4420, %v4388, %v4452
      %v4485 = vsel %vm4421, %v4389, %v4453
      %v4486 = vsel %vm4422, %v4390, %v4454
      %v4487 = vsel %vm4423, %v4391, %v4455
      %v4488 = vsel %vm4424, %v4392, %v4456
      %v4489 = vsel %vm4425, %v4393, %v4457
      %v4490 = vsel %vm4426, %v4394, %v4458
      %v4491 = vsel %vm4427, %v4395, %v4459
      %v4492 = vsel %vm4428, %v4396, %v4460
      %v4493 = vsel %vm4429, %v4397, %v4461
      %v4494 = vsel %vm4430, %v4398, %v4462
      %v4495 = vsel %vm4431, %v4399, %v4463
      %v4496 = vld [vmem:[%s9] sm:$0xff]
      %v4497 = vld [vmem:[%s10] sm:$0x1]
      %v4499 = vperm.slane %v4497, 0
      %v4502 = vsel %vm1729, %v4464, 0
      %v4505 = vsel %vm1729, %v4465, 0
      %v4508 = vsel %vm1729, %v4466, 0
      %v4511 = vsel %vm1729, %v4467, 0
      %v4514 = vsel %vm1729, %v4468, 0
      %v4517 = vsel %vm1729, %v4469, 0
      %v4520 = vsel %vm1729, %v4470, 0
      %v4523 = vsel %vm1729, %v4471, 0
      %v4526 = vsel %vm1729, %v4472, 0
      %v4529 = vsel %vm1729, %v4473, 0
      %v4532 = vsel %vm1729, %v4474, 0
      %v4535 = vsel %vm1729, %v4475, 0
      %v4538 = vsel %vm1729, %v4476, 0
      %v4541 = vsel %vm1729, %v4477, 0
      %v4544 = vsel %vm1729, %v4478, 0
      %v4547 = vsel %vm1729, %v4479, 0
      %v4550 = vsel %vm1729, %v4480, 0
      %v4553 = vsel %vm1729, %v4481, 0
      %v4556 = vsel %vm1729, %v4482, 0
      %v4559 = vsel %vm1729, %v4483, 0
      %v4562 = vsel %vm1729, %v4484, 0
      %v4565 = vsel %vm1729, %v4485, 0
      %v4568 = vsel %vm1729, %v4486, 0
      %v4571 = vsel %vm1729, %v4487, 0
      %v4574 = vsel %vm1729, %v4488, 0
      %v4577 = vsel %vm1729, %v4489, 0
      %v4580 = vsel %vm1729, %v4490, 0
      %v4583 = vsel %vm1729, %v4491, 0
      %v4586 = vsel %vm1729, %v4492, 0
      %v4589 = vsel %vm1729, %v4493, 0
      %v4592 = vsel %vm1729, %v4494, 0
      %v4595 = vsel %vm1729, %v4495, 0
      %4597 = vmatpush.msra.mxu0 0.0
      %4598 = vmatpush.msra.mxu0 0.0
      %4599 = vmatpush.msra.mxu0 0.0
      %4600 = vmatpush.msra.mxu0 0.0
      %4601 = vmatpush.msra.mxu0 0.0
      %4602 = vmatpush.msra.mxu0 0.0
      %4603 = vmatpush.msra.mxu0 0.0
      %4604 = vmatpush.msra.mxu0 0.0
      %4605 = vmatpush.msra.mxu0 0.0
      %4606 = vmatpush.msra.mxu0 0.0
      %4607 = vmatpush.msra.mxu0 0.0
      %4608 = vmatpush.msra.mxu0 0.0
      %4609 = vmatpush.msra.mxu0 0.0
      %4610 = vmatpush.msra.mxu0 0.0
      %4611 = vmatpush.msra.mxu0 0.0
      %4612 = vmatpush.msra.mxu0 %v4496
      %4613 = vmatmul.f32.gmra.mxu0 %v4502
      %v4614 = vpop.f32.mrf.mxu0
      %v4615 = vadd.f32 %v4499, %v4614
      %4616 = vmatmul.f32.gmra.mxu0 %v4505
      %v4617 = vpop.f32.mrf.mxu0
      %v4618 = vadd.f32 %v4499, %v4617
      %4619 = vmatmul.f32.gmra.mxu0 %v4508
      %v4620 = vpop.f32.mrf.mxu0
      %v4621 = vadd.f32 %v4499, %v4620
      %4622 = vmatmul.f32.gmra.mxu0 %v4511
      %v4623 = vpop.f32.mrf.mxu0
      %v4624 = vadd.f32 %v4499, %v4623
      %4625 = vmatmul.f32.gmra.mxu0 %v4514
      %v4626 = vpop.f32.mrf.mxu0
      %v4627 = vadd.f32 %v4499, %v4626
      %4628 = vmatmul.f32.gmra.mxu0 %v4517
      %v4629 = vpop.f32.mrf.mxu0
      %v4630 = vadd.f32 %v4499, %v4629
      %4631 = vmatmul.f32.gmra.mxu0 %v4520
      %v4632 = vpop.f32.mrf.mxu0
      %v4633 = vadd.f32 %v4499, %v4632
      %4634 = vmatmul.f32.gmra.mxu0 %v4523
      %v4635 = vpop.f32.mrf.mxu0
      %v4636 = vadd.f32 %v4499, %v4635
      %4637 = vmatmul.f32.gmra.mxu0 %v4526
      %v4638 = vpop.f32.mrf.mxu0
      %v4639 = vadd.f32 %v4499, %v4638
      %4640 = vmatmul.f32.gmra.mxu0 %v4529
      %v4641 = vpop.f32.mrf.mxu0
      %v4642 = vadd.f32 %v4499, %v4641
      %4643 = vmatmul.f32.gmra.mxu0 %v4532
      %v4644 = vpop.f32.mrf.mxu0
      %v4645 = vadd.f32 %v4499, %v4644
      %4646 = vmatmul.f32.gmra.mxu0 %v4535
      %v4647 = vpop.f32.mrf.mxu0
      %v4648 = vadd.f32 %v4499, %v4647
      %4649 = vmatmul.f32.gmra.mxu0 %v4538
      %v4650 = vpop.f32.mrf.mxu0
      %v4651 = vadd.f32 %v4499, %v4650
      %4652 = vmatmul.f32.gmra.mxu0 %v4541
      %v4653 = vpop.f32.mrf.mxu0
      %v4654 = vadd.f32 %v4499, %v4653
      %4655 = vmatmul.f32.gmra.mxu0 %v4544
      %v4656 = vpop.f32.mrf.mxu0
      %v4657 = vadd.f32 %v4499, %v4656
      %4658 = vmatmul.f32.gmra.mxu0 %v4547
      %v4659 = vpop.f32.mrf.mxu0
      %v4660 = vadd.f32 %v4499, %v4659
      %4661 = vmatmul.f32.gmra.mxu0 %v4550
      %v4662 = vpop.f32.mrf.mxu0
      %v4663 = vadd.f32 %v4499, %v4662
      %4664 = vmatmul.f32.gmra.mxu0 %v4553
      %v4665 = vpop.f32.mrf.mxu0
      %v4666 = vadd.f32 %v4499, %v4665
      %4667 = vmatmul.f32.gmra.mxu0 %v4556
      %v4668 = vpop.f32.mrf.mxu0
      %v4669 = vadd.f32 %v4499, %v4668
      %4670 = vmatmul.f32.gmra.mxu0 %v4559
      %v4671 = vpop.f32.mrf.mxu0
      %v4672 = vadd.f32 %v4499, %v4671
      %4673 = vmatmul.f32.gmra.mxu0 %v4562
      %v4674 = vpop.f32.mrf.mxu0
      %v4675 = vadd.f32 %v4499, %v4674
      %4676 = vmatmul.f32.gmra.mxu0 %v4565
      %v4677 = vpop.f32.mrf.mxu0
      %v4678 = vadd.f32 %v4499, %v4677
      %4679 = vmatmul.f32.gmra.mxu0 %v4568
      %v4680 = vpop.f32.mrf.mxu0
      %v4681 = vadd.f32 %v4499, %v4680
      %4682 = vmatmul.f32.gmra.mxu0 %v4571
      %v4683 = vpop.f32.mrf.mxu0
      %v4684 = vadd.f32 %v4499, %v4683
      %4685 = vmatmul.f32.gmra.mxu0 %v4574
      %v4686 = vpop.f32.mrf.mxu0
      %v4687 = vadd.f32 %v4499, %v4686
      %4688 = vmatmul.f32.gmra.mxu0 %v4577
      %v4689 = vpop.f32.mrf.mxu0
      %v4690 = vadd.f32 %v4499, %v4689
      %4691 = vmatmul.f32.gmra.mxu0 %v4580
      %v4692 = vpop.f32.mrf.mxu0
      %v4693 = vadd.f32 %v4499, %v4692
      %4694 = vmatmul.f32.gmra.mxu0 %v4583
      %v4695 = vpop.f32.mrf.mxu0
      %v4696 = vadd.f32 %v4499, %v4695
      %4697 = vmatmul.f32.gmra.mxu0 %v4586
      %v4698 = vpop.f32.mrf.mxu0
      %v4699 = vadd.f32 %v4499, %v4698
      %4700 = vmatmul.f32.gmra.mxu0 %v4589
      %v4701 = vpop.f32.mrf.mxu0
      %v4702 = vadd.f32 %v4499, %v4701
      %4703 = vmatmul.f32.gmra.mxu0 %v4592
      %v4704 = vpop.f32.mrf.mxu0
      %v4705 = vadd.f32 %v4499, %v4704
      %4706 = vmatmul.f32.gmra.mxu0 %v4595
      %v4707 = vpop.f32.mrf.mxu0
      %v4708 = vadd.f32 %v4499, %v4707
      %4709 = vdwg.mxu0
      %vm4710 = vcmp.eq.s32.totalorder %v954, 4
      %v4711 = vxor.u32 %v4615, 2147483648
      %v4712 = vxor.u32 %v4618, 2147483648
      %v4713 = vxor.u32 %v4621, 2147483648
      %v4714 = vxor.u32 %v4624, 2147483648
      %v4715 = vxor.u32 %v4627, 2147483648
      %v4716 = vxor.u32 %v4630, 2147483648
      %v4717 = vxor.u32 %v4633, 2147483648
      %v4718 = vxor.u32 %v4636, 2147483648
      %v4719 = vxor.u32 %v4639, 2147483648
      %v4720 = vxor.u32 %v4642, 2147483648
      %v4721 = vxor.u32 %v4645, 2147483648
      %v4722 = vxor.u32 %v4648, 2147483648
      %v4723 = vxor.u32 %v4651, 2147483648
      %v4724 = vxor.u32 %v4654, 2147483648
      %v4725 = vxor.u32 %v4657, 2147483648
      %v4726 = vxor.u32 %v4660, 2147483648
      %v4727 = vxor.u32 %v4663, 2147483648
      %v4728 = vxor.u32 %v4666, 2147483648
      %v4729 = vxor.u32 %v4669, 2147483648
      %v4730 = vxor.u32 %v4672, 2147483648
      %v4731 = vxor.u32 %v4675, 2147483648
      %v4732 = vxor.u32 %v4678, 2147483648
      %v4733 = vxor.u32 %v4681, 2147483648
      %v4734 = vxor.u32 %v4684, 2147483648
      %v4735 = vxor.u32 %v4687, 2147483648
      %v4736 = vxor.u32 %v4690, 2147483648
      %v4737 = vxor.u32 %v4693, 2147483648
      %v4738 = vxor.u32 %v4696, 2147483648
      %v4739 = vxor.u32 %v4699, 2147483648
      %v4740 = vxor.u32 %v4702, 2147483648
      %v4741 = vxor.u32 %v4705, 2147483648
      %v4742 = vxor.u32 %v4708, 2147483648
      %v4743 = vmul.f32 %v4711, 1.442695
      %v4744 = vpow.pop %v4743
      %v4745 = vmul.f32 %v4712, 1.442695
      %v4746 = vpow.pop %v4745
      %v4747 = vmul.f32 %v4713, 1.442695
      %v4748 = vpow.pop %v4747
      %v4749 = vmul.f32 %v4714, 1.442695
      %v4750 = vpow.pop %v4749
      %v4751 = vmul.f32 %v4715, 1.442695
      %v4752 = vpow.pop %v4751
      %v4753 = vmul.f32 %v4716, 1.442695
      %v4754 = vpow.pop %v4753
      %v4755 = vmul.f32 %v4717, 1.442695
      %v4756 = vpow.pop %v4755
      %v4757 = vmul.f32 %v4718, 1.442695
      %v4758 = vpow.pop %v4757
      %v4759 = vmul.f32 %v4719, 1.442695
      %v4760 = vpow.pop %v4759
      %v4761 = vmul.f32 %v4720, 1.442695
      %v4762 = vpow.pop %v4761
      %v4763 = vmul.f32 %v4721, 1.442695
      %v4764 = vpow.pop %v4763
      %v4765 = vmul.f32 %v4722, 1.442695
      %v4766 = vpow.pop %v4765
      %v4767 = vmul.f32 %v4723, 1.442695
      %v4768 = vpow.pop %v4767
      %v4769 = vmul.f32 %v4724, 1.442695
      %v4770 = vpow.pop %v4769
      %v4771 = vmul.f32 %v4725, 1.442695
      %v4772 = vpow.pop %v4771
      %v4773 = vmul.f32 %v4726, 1.442695
      %v4774 = vpow.pop %v4773
      %v4775 = vmul.f32 %v4727, 1.442695
      %v4776 = vpow.pop %v4775
      %v4777 = vmul.f32 %v4728, 1.442695
      %v4778 = vpow.pop %v4777
      %v4779 = vmul.f32 %v4729, 1.442695
      %v4780 = vpow.pop %v4779
      %v4781 = vmul.f32 %v4730, 1.442695
      %v4782 = vpow.pop %v4781
      %v4783 = vmul.f32 %v4731, 1.442695
      %v4784 = vpow.pop %v4783
      %v4785 = vmul.f32 %v4732, 1.442695
      %v4786 = vpow.pop %v4785
      %v4787 = vmul.f32 %v4733, 1.442695
      %v4788 = vpow.pop %v4787
      %v4789 = vmul.f32 %v4734, 1.442695
      %v4790 = vpow.pop %v4789
      %v4791 = vmul.f32 %v4735, 1.442695
      %v4792 = vpow.pop %v4791
      %v4793 = vmul.f32 %v4736, 1.442695
      %v4794 = vpow.pop %v4793
      %v4795 = vmul.f32 %v4737, 1.442695
      %v4796 = vpow.pop %v4795
      %v4797 = vmul.f32 %v4738, 1.442695
      %v4798 = vpow.pop %v4797
      %v4799 = vmul.f32 %v4739, 1.442695
      %v4800 = vpow.pop %v4799
      %v4801 = vmul.f32 %v4740, 1.442695
      %v4802 = vpow.pop %v4801
      %v4803 = vmul.f32 %v4741, 1.442695
      %v4804 = vpow.pop %v4803
      %v4805 = vmul.f32 %v4742, 1.442695
      %v4806 = vpow.pop %v4805
      %v4807 = vadd.f32 %v4744, 1.0
      %v4808 = vadd.f32 %v4746, 1.0
      %v4809 = vadd.f32 %v4748, 1.0
      %v4810 = vadd.f32 %v4750, 1.0
      %v4811 = vadd.f32 %v4752, 1.0
      %v4812 = vadd.f32 %v4754, 1.0
      %v4813 = vadd.f32 %v4756, 1.0
      %v4814 = vadd.f32 %v4758, 1.0
      %v4815 = vadd.f32 %v4760, 1.0
      %v4816 = vadd.f32 %v4762, 1.0
      %v4817 = vadd.f32 %v4764, 1.0
      %v4818 = vadd.f32 %v4766, 1.0
      %v4819 = vadd.f32 %v4768, 1.0
      %v4820 = vadd.f32 %v4770, 1.0
      %v4821 = vadd.f32 %v4772, 1.0
      %v4822 = vadd.f32 %v4774, 1.0
      %v4823 = vadd.f32 %v4776, 1.0
      %v4824 = vadd.f32 %v4778, 1.0
      %v4825 = vadd.f32 %v4780, 1.0
      %v4826 = vadd.f32 %v4782, 1.0
      %v4827 = vadd.f32 %v4784, 1.0
      %v4828 = vadd.f32 %v4786, 1.0
      %v4829 = vadd.f32 %v4788, 1.0
      %v4830 = vadd.f32 %v4790, 1.0
      %v4831 = vadd.f32 %v4792, 1.0
      %v4832 = vadd.f32 %v4794, 1.0
      %v4833 = vadd.f32 %v4796, 1.0
      %v4834 = vadd.f32 %v4798, 1.0
      %v4835 = vadd.f32 %v4800, 1.0
      %v4836 = vadd.f32 %v4802, 1.0
      %v4837 = vadd.f32 %v4804, 1.0
      %v4838 = vadd.f32 %v4806, 1.0
      %v4839 = vrcp.pop %v4807
      %v4840 = vmul.f32 %v4807, %v4839
      %v4841 = vsub.f32 1.0, %v4840
      %v4842 = vmul.f32 %v4839, %v4841
      %v4843 = vadd.f32 %v4839, %v4842
      %vm4844 = vweird.f32 %v4807
      %vm4845 = vweird.f32 %v4839
      %vm4846 = vmor %vm4844, %vm4845
      %v4847 = vsel %vm4846, %v4839, %v4843
      %v4848 = vand.u32 2147483647, %v4807
      %vm4849 = vcmp.eq.f32.partialorder %v4848, 8.507059e+37
      %v4850 = vand.u32 %v4807, 2147483648
      %v4851 = vor.u32 1.1754944e-38, %v4850
      %v4852 = vsel %vm4849, %v4851, %v4847
      %v4853 = vmul.f32 1.0, %v4852
      %v4854 = vrcp.pop %v4808
      %v4855 = vmul.f32 %v4808, %v4854
      %v4856 = vsub.f32 1.0, %v4855
      %v4857 = vmul.f32 %v4854, %v4856
      %v4858 = vadd.f32 %v4854, %v4857
      %vm4859 = vweird.f32 %v4808
      %vm4860 = vweird.f32 %v4854
      %vm4861 = vmor %vm4859, %vm4860
      %v4862 = vsel %vm4861, %v4854, %v4858
      %v4863 = vand.u32 2147483647, %v4808
      %vm4864 = vcmp.eq.f32.partialorder %v4863, 8.507059e+37
      %v4865 = vand.u32 %v4808, 2147483648
      %v4866 = vor.u32 1.1754944e-38, %v4865
      %v4867 = vsel %vm4864, %v4866, %v4862
      %v4868 = vmul.f32 1.0, %v4867
      %v4869 = vrcp.pop %v4809
      %v4870 = vmul.f32 %v4809, %v4869
      %v4871 = vsub.f32 1.0, %v4870
      %v4872 = vmul.f32 %v4869, %v4871
      %v4873 = vadd.f32 %v4869, %v4872
      %vm4874 = vweird.f32 %v4809
      %vm4875 = vweird.f32 %v4869
      %vm4876 = vmor %vm4874, %vm4875
      %v4877 = vsel %vm4876, %v4869, %v4873
      %v4878 = vand.u32 2147483647, %v4809
      %vm4879 = vcmp.eq.f32.partialorder %v4878, 8.507059e+37
      %v4880 = vand.u32 %v4809, 2147483648
      %v4881 = vor.u32 1.1754944e-38, %v4880
      %v4882 = vsel %vm4879, %v4881, %v4877
      %v4883 = vmul.f32 1.0, %v4882
      %v4884 = vrcp.pop %v4810
      %v4885 = vmul.f32 %v4810, %v4884
      %v4886 = vsub.f32 1.0, %v4885
      %v4887 = vmul.f32 %v4884, %v4886
      %v4888 = vadd.f32 %v4884, %v4887
      %vm4889 = vweird.f32 %v4810
      %vm4890 = vweird.f32 %v4884
      %vm4891 = vmor %vm4889, %vm4890
      %v4892 = vsel %vm4891, %v4884, %v4888
      %v4893 = vand.u32 2147483647, %v4810
      %vm4894 = vcmp.eq.f32.partialorder %v4893, 8.507059e+37
      %v4895 = vand.u32 %v4810, 2147483648
      %v4896 = vor.u32 1.1754944e-38, %v4895
      %v4897 = vsel %vm4894, %v4896, %v4892
      %v4898 = vmul.f32 1.0, %v4897
      %v4899 = vrcp.pop %v4811
      %v4900 = vmul.f32 %v4811, %v4899
      %v4901 = vsub.f32 1.0, %v4900
      %v4902 = vmul.f32 %v4899, %v4901
      %v4903 = vadd.f32 %v4899, %v4902
      %vm4904 = vweird.f32 %v4811
      %vm4905 = vweird.f32 %v4899
      %vm4906 = vmor %vm4904, %vm4905
      %v4907 = vsel %vm4906, %v4899, %v4903
      %v4908 = vand.u32 2147483647, %v4811
      %vm4909 = vcmp.eq.f32.partialorder %v4908, 8.507059e+37
      %v4910 = vand.u32 %v4811, 2147483648
      %v4911 = vor.u32 1.1754944e-38, %v4910
      %v4912 = vsel %vm4909, %v4911, %v4907
      %v4913 = vmul.f32 1.0, %v4912
      %v4914 = vrcp.pop %v4812
      %v4915 = vmul.f32 %v4812, %v4914
      %v4916 = vsub.f32 1.0, %v4915
      %v4917 = vmul.f32 %v4914, %v4916
      %v4918 = vadd.f32 %v4914, %v4917
      %vm4919 = vweird.f32 %v4812
      %vm4920 = vweird.f32 %v4914
      %vm4921 = vmor %vm4919, %vm4920
      %v4922 = vsel %vm4921, %v4914, %v4918
      %v4923 = vand.u32 2147483647, %v4812
      %vm4924 = vcmp.eq.f32.partialorder %v4923, 8.507059e+37
      %v4925 = vand.u32 %v4812, 2147483648
      %v4926 = vor.u32 1.1754944e-38, %v4925
      %v4927 = vsel %vm4924, %v4926, %v4922
      %v4928 = vmul.f32 1.0, %v4927
      %v4929 = vrcp.pop %v4813
      %v4930 = vmul.f32 %v4813, %v4929
      %v4931 = vsub.f32 1.0, %v4930
      %v4932 = vmul.f32 %v4929, %v4931
      %v4933 = vadd.f32 %v4929, %v4932
      %vm4934 = vweird.f32 %v4813
      %vm4935 = vweird.f32 %v4929
      %vm4936 = vmor %vm4934, %vm4935
      %v4937 = vsel %vm4936, %v4929, %v4933
      %v4938 = vand.u32 2147483647, %v4813
      %vm4939 = vcmp.eq.f32.partialorder %v4938, 8.507059e+37
      %v4940 = vand.u32 %v4813, 2147483648
      %v4941 = vor.u32 1.1754944e-38, %v4940
      %v4942 = vsel %vm4939, %v4941, %v4937
      %v4943 = vmul.f32 1.0, %v4942
      %v4944 = vrcp.pop %v4814
      %v4945 = vmul.f32 %v4814, %v4944
      %v4946 = vsub.f32 1.0, %v4945
      %v4947 = vmul.f32 %v4944, %v4946
      %v4948 = vadd.f32 %v4944, %v4947
      %vm4949 = vweird.f32 %v4814
      %vm4950 = vweird.f32 %v4944
      %vm4951 = vmor %vm4949, %vm4950
      %v4952 = vsel %vm4951, %v4944, %v4948
      %v4953 = vand.u32 2147483647, %v4814
      %vm4954 = vcmp.eq.f32.partialorder %v4953, 8.507059e+37
      %v4955 = vand.u32 %v4814, 2147483648
      %v4956 = vor.u32 1.1754944e-38, %v4955
      %v4957 = vsel %vm4954, %v4956, %v4952
      %v4958 = vmul.f32 1.0, %v4957
      %v4959 = vrcp.pop %v4815
      %v4960 = vmul.f32 %v4815, %v4959
      %v4961 = vsub.f32 1.0, %v4960
      %v4962 = vmul.f32 %v4959, %v4961
      %v4963 = vadd.f32 %v4959, %v4962
      %vm4964 = vweird.f32 %v4815
      %vm4965 = vweird.f32 %v4959
      %vm4966 = vmor %vm4964, %vm4965
      %v4967 = vsel %vm4966, %v4959, %v4963
      %v4968 = vand.u32 2147483647, %v4815
      %vm4969 = vcmp.eq.f32.partialorder %v4968, 8.507059e+37
      %v4970 = vand.u32 %v4815, 2147483648
      %v4971 = vor.u32 1.1754944e-38, %v4970
      %v4972 = vsel %vm4969, %v4971, %v4967
      %v4973 = vmul.f32 1.0, %v4972
      %v4974 = vrcp.pop %v4816
      %v4975 = vmul.f32 %v4816, %v4974
      %v4976 = vsub.f32 1.0, %v4975
      %v4977 = vmul.f32 %v4974, %v4976
      %v4978 = vadd.f32 %v4974, %v4977
      %vm4979 = vweird.f32 %v4816
      %vm4980 = vweird.f32 %v4974
      %vm4981 = vmor %vm4979, %vm4980
      %v4982 = vsel %vm4981, %v4974, %v4978
      %v4983 = vand.u32 2147483647, %v4816
      %vm4984 = vcmp.eq.f32.partialorder %v4983, 8.507059e+37
      %v4985 = vand.u32 %v4816, 2147483648
      %v4986 = vor.u32 1.1754944e-38, %v4985
      %v4987 = vsel %vm4984, %v4986, %v4982
      %v4988 = vmul.f32 1.0, %v4987
      %v4989 = vrcp.pop %v4817
      %v4990 = vmul.f32 %v4817, %v4989
      %v4991 = vsub.f32 1.0, %v4990
      %v4992 = vmul.f32 %v4989, %v4991
      %v4993 = vadd.f32 %v4989, %v4992
      %vm4994 = vweird.f32 %v4817
      %vm4995 = vweird.f32 %v4989
      %vm4996 = vmor %vm4994, %vm4995
      %v4997 = vsel %vm4996, %v4989, %v4993
      %v4998 = vand.u32 2147483647, %v4817
      %vm4999 = vcmp.eq.f32.partialorder %v4998, 8.507059e+37
      %v5000 = vand.u32 %v4817, 2147483648
      %v5001 = vor.u32 1.1754944e-38, %v5000
      %v5002 = vsel %vm4999, %v5001, %v4997
      %v5003 = vmul.f32 1.0, %v5002
      %v5004 = vrcp.pop %v4818
      %v5005 = vmul.f32 %v4818, %v5004
      %v5006 = vsub.f32 1.0, %v5005
      %v5007 = vmul.f32 %v5004, %v5006
      %v5008 = vadd.f32 %v5004, %v5007
      %vm5009 = vweird.f32 %v4818
      %vm5010 = vweird.f32 %v5004
      %vm5011 = vmor %vm5009, %vm5010
      %v5012 = vsel %vm5011, %v5004, %v5008
      %v5013 = vand.u32 2147483647, %v4818
      %vm5014 = vcmp.eq.f32.partialorder %v5013, 8.507059e+37
      %v5015 = vand.u32 %v4818, 2147483648
      %v5016 = vor.u32 1.1754944e-38, %v5015
      %v5017 = vsel %vm5014, %v5016, %v5012
      %v5018 = vmul.f32 1.0, %v5017
      %v5019 = vrcp.pop %v4819
      %v5020 = vmul.f32 %v4819, %v5019
      %v5021 = vsub.f32 1.0, %v5020
      %v5022 = vmul.f32 %v5019, %v5021
      %v5023 = vadd.f32 %v5019, %v5022
      %vm5024 = vweird.f32 %v4819
      %vm5025 = vweird.f32 %v5019
      %vm5026 = vmor %vm5024, %vm5025
      %v5027 = vsel %vm5026, %v5019, %v5023
      %v5028 = vand.u32 2147483647, %v4819
      %vm5029 = vcmp.eq.f32.partialorder %v5028, 8.507059e+37
      %v5030 = vand.u32 %v4819, 2147483648
      %v5031 = vor.u32 1.1754944e-38, %v5030
      %v5032 = vsel %vm5029, %v5031, %v5027
      %v5033 = vmul.f32 1.0, %v5032
      %v5034 = vrcp.pop %v4820
      %v5035 = vmul.f32 %v4820, %v5034
      %v5036 = vsub.f32 1.0, %v5035
      %v5037 = vmul.f32 %v5034, %v5036
      %v5038 = vadd.f32 %v5034, %v5037
      %vm5039 = vweird.f32 %v4820
      %vm5040 = vweird.f32 %v5034
      %vm5041 = vmor %vm5039, %vm5040
      %v5042 = vsel %vm5041, %v5034, %v5038
      %v5043 = vand.u32 2147483647, %v4820
      %vm5044 = vcmp.eq.f32.partialorder %v5043, 8.507059e+37
      %v5045 = vand.u32 %v4820, 2147483648
      %v5046 = vor.u32 1.1754944e-38, %v5045
      %v5047 = vsel %vm5044, %v5046, %v5042
      %v5048 = vmul.f32 1.0, %v5047
      %v5049 = vrcp.pop %v4821
      %v5050 = vmul.f32 %v4821, %v5049
      %v5051 = vsub.f32 1.0, %v5050
      %v5052 = vmul.f32 %v5049, %v5051
      %v5053 = vadd.f32 %v5049, %v5052
      %vm5054 = vweird.f32 %v4821
      %vm5055 = vweird.f32 %v5049
      %vm5056 = vmor %vm5054, %vm5055
      %v5057 = vsel %vm5056, %v5049, %v5053
      %v5058 = vand.u32 2147483647, %v4821
      %vm5059 = vcmp.eq.f32.partialorder %v5058, 8.507059e+37
      %v5060 = vand.u32 %v4821, 2147483648
      %v5061 = vor.u32 1.1754944e-38, %v5060
      %v5062 = vsel %vm5059, %v5061, %v5057
      %v5063 = vmul.f32 1.0, %v5062
      %v5064 = vrcp.pop %v4822
      %v5065 = vmul.f32 %v4822, %v5064
      %v5066 = vsub.f32 1.0, %v5065
      %v5067 = vmul.f32 %v5064, %v5066
      %v5068 = vadd.f32 %v5064, %v5067
      %vm5069 = vweird.f32 %v4822
      %vm5070 = vweird.f32 %v5064
      %vm5071 = vmor %vm5069, %vm5070
      %v5072 = vsel %vm5071, %v5064, %v5068
      %v5073 = vand.u32 2147483647, %v4822
      %vm5074 = vcmp.eq.f32.partialorder %v5073, 8.507059e+37
      %v5075 = vand.u32 %v4822, 2147483648
      %v5076 = vor.u32 1.1754944e-38, %v5075
      %v5077 = vsel %vm5074, %v5076, %v5072
      %v5078 = vmul.f32 1.0, %v5077
      %v5079 = vrcp.pop %v4823
      %v5080 = vmul.f32 %v4823, %v5079
      %v5081 = vsub.f32 1.0, %v5080
      %v5082 = vmul.f32 %v5079, %v5081
      %v5083 = vadd.f32 %v5079, %v5082
      %vm5084 = vweird.f32 %v4823
      %vm5085 = vweird.f32 %v5079
      %vm5086 = vmor %vm5084, %vm5085
      %v5087 = vsel %vm5086, %v5079, %v5083
      %v5088 = vand.u32 2147483647, %v4823
      %vm5089 = vcmp.eq.f32.partialorder %v5088, 8.507059e+37
      %v5090 = vand.u32 %v4823, 2147483648
      %v5091 = vor.u32 1.1754944e-38, %v5090
      %v5092 = vsel %vm5089, %v5091, %v5087
      %v5093 = vmul.f32 1.0, %v5092
      %v5094 = vrcp.pop %v4824
      %v5095 = vmul.f32 %v4824, %v5094
      %v5096 = vsub.f32 1.0, %v5095
      %v5097 = vmul.f32 %v5094, %v5096
      %v5098 = vadd.f32 %v5094, %v5097
      %vm5099 = vweird.f32 %v4824
      %vm5100 = vweird.f32 %v5094
      %vm5101 = vmor %vm5099, %vm5100
      %v5102 = vsel %vm5101, %v5094, %v5098
      %v5103 = vand.u32 2147483647, %v4824
      %vm5104 = vcmp.eq.f32.partialorder %v5103, 8.507059e+37
      %v5105 = vand.u32 %v4824, 2147483648
      %v5106 = vor.u32 1.1754944e-38, %v5105
      %v5107 = vsel %vm5104, %v5106, %v5102
      %v5108 = vmul.f32 1.0, %v5107
      %v5109 = vrcp.pop %v4825
      %v5110 = vmul.f32 %v4825, %v5109
      %v5111 = vsub.f32 1.0, %v5110
      %v5112 = vmul.f32 %v5109, %v5111
      %v5113 = vadd.f32 %v5109, %v5112
      %vm5114 = vweird.f32 %v4825
      %vm5115 = vweird.f32 %v5109
      %vm5116 = vmor %vm5114, %vm5115
      %v5117 = vsel %vm5116, %v5109, %v5113
      %v5118 = vand.u32 2147483647, %v4825
      %vm5119 = vcmp.eq.f32.partialorder %v5118, 8.507059e+37
      %v5120 = vand.u32 %v4825, 2147483648
      %v5121 = vor.u32 1.1754944e-38, %v5120
      %v5122 = vsel %vm5119, %v5121, %v5117
      %v5123 = vmul.f32 1.0, %v5122
      %v5124 = vrcp.pop %v4826
      %v5125 = vmul.f32 %v4826, %v5124
      %v5126 = vsub.f32 1.0, %v5125
      %v5127 = vmul.f32 %v5124, %v5126
      %v5128 = vadd.f32 %v5124, %v5127
      %vm5129 = vweird.f32 %v4826
      %vm5130 = vweird.f32 %v5124
      %vm5131 = vmor %vm5129, %vm5130
      %v5132 = vsel %vm5131, %v5124, %v5128
      %v5133 = vand.u32 2147483647, %v4826
      %vm5134 = vcmp.eq.f32.partialorder %v5133, 8.507059e+37
      %v5135 = vand.u32 %v4826, 2147483648
      %v5136 = vor.u32 1.1754944e-38, %v5135
      %v5137 = vsel %vm5134, %v5136, %v5132
      %v5138 = vmul.f32 1.0, %v5137
      %v5139 = vrcp.pop %v4827
      %v5140 = vmul.f32 %v4827, %v5139
      %v5141 = vsub.f32 1.0, %v5140
      %v5142 = vmul.f32 %v5139, %v5141
      %v5143 = vadd.f32 %v5139, %v5142
      %vm5144 = vweird.f32 %v4827
      %vm5145 = vweird.f32 %v5139
      %vm5146 = vmor %vm5144, %vm5145
      %v5147 = vsel %vm5146, %v5139, %v5143
      %v5148 = vand.u32 2147483647, %v4827
      %vm5149 = vcmp.eq.f32.partialorder %v5148, 8.507059e+37
      %v5150 = vand.u32 %v4827, 2147483648
      %v5151 = vor.u32 1.1754944e-38, %v5150
      %v5152 = vsel %vm5149, %v5151, %v5147
      %v5153 = vmul.f32 1.0, %v5152
      %v5154 = vrcp.pop %v4828
      %v5155 = vmul.f32 %v4828, %v5154
      %v5156 = vsub.f32 1.0, %v5155
      %v5157 = vmul.f32 %v5154, %v5156
      %v5158 = vadd.f32 %v5154, %v5157
      %vm5159 = vweird.f32 %v4828
      %vm5160 = vweird.f32 %v5154
      %vm5161 = vmor %vm5159, %vm5160
      %v5162 = vsel %vm5161, %v5154, %v5158
      %v5163 = vand.u32 2147483647, %v4828
      %vm5164 = vcmp.eq.f32.partialorder %v5163, 8.507059e+37
      %v5165 = vand.u32 %v4828, 2147483648
      %v5166 = vor.u32 1.1754944e-38, %v5165
      %v5167 = vsel %vm5164, %v5166, %v5162
      %v5168 = vmul.f32 1.0, %v5167
      %v5169 = vrcp.pop %v4829
      %v5170 = vmul.f32 %v4829, %v5169
      %v5171 = vsub.f32 1.0, %v5170
      %v5172 = vmul.f32 %v5169, %v5171
      %v5173 = vadd.f32 %v5169, %v5172
      %vm5174 = vweird.f32 %v4829
      %vm5175 = vweird.f32 %v5169
      %vm5176 = vmor %vm5174, %vm5175
      %v5177 = vsel %vm5176, %v5169, %v5173
      %v5178 = vand.u32 2147483647, %v4829
      %vm5179 = vcmp.eq.f32.partialorder %v5178, 8.507059e+37
      %v5180 = vand.u32 %v4829, 2147483648
      %v5181 = vor.u32 1.1754944e-38, %v5180
      %v5182 = vsel %vm5179, %v5181, %v5177
      %v5183 = vmul.f32 1.0, %v5182
      %v5184 = vrcp.pop %v4830
      %v5185 = vmul.f32 %v4830, %v5184
      %v5186 = vsub.f32 1.0, %v5185
      %v5187 = vmul.f32 %v5184, %v5186
      %v5188 = vadd.f32 %v5184, %v5187
      %vm5189 = vweird.f32 %v4830
      %vm5190 = vweird.f32 %v5184
      %vm5191 = vmor %vm5189, %vm5190
      %v5192 = vsel %vm5191, %v5184, %v5188
      %v5193 = vand.u32 2147483647, %v4830
      %vm5194 = vcmp.eq.f32.partialorder %v5193, 8.507059e+37
      %v5195 = vand.u32 %v4830, 2147483648
      %v5196 = vor.u32 1.1754944e-38, %v5195
      %v5197 = vsel %vm5194, %v5196, %v5192
      %v5198 = vmul.f32 1.0, %v5197
      %v5199 = vrcp.pop %v4831
      %v5200 = vmul.f32 %v4831, %v5199
      %v5201 = vsub.f32 1.0, %v5200
      %v5202 = vmul.f32 %v5199, %v5201
      %v5203 = vadd.f32 %v5199, %v5202
      %vm5204 = vweird.f32 %v4831
      %vm5205 = vweird.f32 %v5199
      %vm5206 = vmor %vm5204, %vm5205
      %v5207 = vsel %vm5206, %v5199, %v5203
      %v5208 = vand.u32 2147483647, %v4831
      %vm5209 = vcmp.eq.f32.partialorder %v5208, 8.507059e+37
      %v5210 = vand.u32 %v4831, 2147483648
      %v5211 = vor.u32 1.1754944e-38, %v5210
      %v5212 = vsel %vm5209, %v5211, %v5207
      %v5213 = vmul.f32 1.0, %v5212
      %v5214 = vrcp.pop %v4832
      %v5215 = vmul.f32 %v4832, %v5214
      %v5216 = vsub.f32 1.0, %v5215
      %v5217 = vmul.f32 %v5214, %v5216
      %v5218 = vadd.f32 %v5214, %v5217
      %vm5219 = vweird.f32 %v4832
      %vm5220 = vweird.f32 %v5214
      %vm5221 = vmor %vm5219, %vm5220
      %v5222 = vsel %vm5221, %v5214, %v5218
      %v5223 = vand.u32 2147483647, %v4832
      %vm5224 = vcmp.eq.f32.partialorder %v5223, 8.507059e+37
      %v5225 = vand.u32 %v4832, 2147483648
      %v5226 = vor.u32 1.1754944e-38, %v5225
      %v5227 = vsel %vm5224, %v5226, %v5222
      %v5228 = vmul.f32 1.0, %v5227
      %v5229 = vrcp.pop %v4833
      %v5230 = vmul.f32 %v4833, %v5229
      %v5231 = vsub.f32 1.0, %v5230
      %v5232 = vmul.f32 %v5229, %v5231
      %v5233 = vadd.f32 %v5229, %v5232
      %vm5234 = vweird.f32 %v4833
      %vm5235 = vweird.f32 %v5229
      %vm5236 = vmor %vm5234, %vm5235
      %v5237 = vsel %vm5236, %v5229, %v5233
      %v5238 = vand.u32 2147483647, %v4833
      %vm5239 = vcmp.eq.f32.partialorder %v5238, 8.507059e+37
      %v5240 = vand.u32 %v4833, 2147483648
      %v5241 = vor.u32 1.1754944e-38, %v5240
      %v5242 = vsel %vm5239, %v5241, %v5237
      %v5243 = vmul.f32 1.0, %v5242
      %v5244 = vrcp.pop %v4834
      %v5245 = vmul.f32 %v4834, %v5244
      %v5246 = vsub.f32 1.0, %v5245
      %v5247 = vmul.f32 %v5244, %v5246
      %v5248 = vadd.f32 %v5244, %v5247
      %vm5249 = vweird.f32 %v4834
      %vm5250 = vweird.f32 %v5244
      %vm5251 = vmor %vm5249, %vm5250
      %v5252 = vsel %vm5251, %v5244, %v5248
      %v5253 = vand.u32 2147483647, %v4834
      %vm5254 = vcmp.eq.f32.partialorder %v5253, 8.507059e+37
      %v5255 = vand.u32 %v4834, 2147483648
      %v5256 = vor.u32 1.1754944e-38, %v5255
      %v5257 = vsel %vm5254, %v5256, %v5252
      %v5258 = vmul.f32 1.0, %v5257
      %v5259 = vrcp.pop %v4835
      %v5260 = vmul.f32 %v4835, %v5259
      %v5261 = vsub.f32 1.0, %v5260
      %v5262 = vmul.f32 %v5259, %v5261
      %v5263 = vadd.f32 %v5259, %v5262
      %vm5264 = vweird.f32 %v4835
      %vm5265 = vweird.f32 %v5259
      %vm5266 = vmor %vm5264, %vm5265
      %v5267 = vsel %vm5266, %v5259, %v5263
      %v5268 = vand.u32 2147483647, %v4835
      %vm5269 = vcmp.eq.f32.partialorder %v5268, 8.507059e+37
      %v5270 = vand.u32 %v4835, 2147483648
      %v5271 = vor.u32 1.1754944e-38, %v5270
      %v5272 = vsel %vm5269, %v5271, %v5267
      %v5273 = vmul.f32 1.0, %v5272
      %v5274 = vrcp.pop %v4836
      %v5275 = vmul.f32 %v4836, %v5274
      %v5276 = vsub.f32 1.0, %v5275
      %v5277 = vmul.f32 %v5274, %v5276
      %v5278 = vadd.f32 %v5274, %v5277
      %vm5279 = vweird.f32 %v4836
      %vm5280 = vweird.f32 %v5274
      %vm5281 = vmor %vm5279, %vm5280
      %v5282 = vsel %vm5281, %v5274, %v5278
      %v5283 = vand.u32 2147483647, %v4836
      %vm5284 = vcmp.eq.f32.partialorder %v5283, 8.507059e+37
      %v5285 = vand.u32 %v4836, 2147483648
      %v5286 = vor.u32 1.1754944e-38, %v5285
      %v5287 = vsel %vm5284, %v5286, %v5282
      %v5288 = vmul.f32 1.0, %v5287
      %v5289 = vrcp.pop %v4837
      %v5290 = vmul.f32 %v4837, %v5289
      %v5291 = vsub.f32 1.0, %v5290
      %v5292 = vmul.f32 %v5289, %v5291
      %v5293 = vadd.f32 %v5289, %v5292
      %vm5294 = vweird.f32 %v4837
      %vm5295 = vweird.f32 %v5289
      %vm5296 = vmor %vm5294, %vm5295
      %v5297 = vsel %vm5296, %v5289, %v5293
      %v5298 = vand.u32 2147483647, %v4837
      %vm5299 = vcmp.eq.f32.partialorder %v5298, 8.507059e+37
      %v5300 = vand.u32 %v4837, 2147483648
      %v5301 = vor.u32 1.1754944e-38, %v5300
      %v5302 = vsel %vm5299, %v5301, %v5297
      %v5303 = vmul.f32 1.0, %v5302
      %v5304 = vrcp.pop %v4838
      %v5305 = vmul.f32 %v4838, %v5304
      %v5306 = vsub.f32 1.0, %v5305
      %v5307 = vmul.f32 %v5304, %v5306
      %v5308 = vadd.f32 %v5304, %v5307
      %vm5309 = vweird.f32 %v4838
      %vm5310 = vweird.f32 %v5304
      %vm5311 = vmor %vm5309, %vm5310
      %v5312 = vsel %vm5311, %v5304, %v5308
      %v5313 = vand.u32 2147483647, %v4838
      %vm5314 = vcmp.eq.f32.partialorder %v5313, 8.507059e+37
      %v5315 = vand.u32 %v4838, 2147483648
      %v5316 = vor.u32 1.1754944e-38, %v5315
      %v5317 = vsel %vm5314, %v5316, %v5312
      %v5318 = vmul.f32 1.0, %v5317
      %v5319 = vsel %vm4710, %v4853, %v4615
      %v5320 = vsel %vm4710, %v4868, %v4618
      %v5321 = vsel %vm4710, %v4883, %v4621
      %v5322 = vsel %vm4710, %v4898, %v4624
      %v5323 = vsel %vm4710, %v4913, %v4627
      %v5324 = vsel %vm4710, %v4928, %v4630
      %v5325 = vsel %vm4710, %v4943, %v4633
      %v5326 = vsel %vm4710, %v4958, %v4636
      %v5327 = vsel %vm4710, %v4973, %v4639
      %v5328 = vsel %vm4710, %v4988, %v4642
      %v5329 = vsel %vm4710, %v5003, %v4645
      %v5330 = vsel %vm4710, %v5018, %v4648
      %v5331 = vsel %vm4710, %v5033, %v4651
      %v5332 = vsel %vm4710, %v5048, %v4654
      %v5333 = vsel %vm4710, %v5063, %v4657
      %v5334 = vsel %vm4710, %v5078, %v4660
      %v5335 = vsel %vm4710, %v5093, %v4663
      %v5336 = vsel %vm4710, %v5108, %v4666
      %v5337 = vsel %vm4710, %v5123, %v4669
      %v5338 = vsel %vm4710, %v5138, %v4672
      %v5339 = vsel %vm4710, %v5153, %v4675
      %v5340 = vsel %vm4710, %v5168, %v4678
      %v5341 = vsel %vm4710, %v5183, %v4681
      %v5342 = vsel %vm4710, %v5198, %v4684
      %v5343 = vsel %vm4710, %v5213, %v4687
      %v5344 = vsel %vm4710, %v5228, %v4690
      %v5345 = vsel %vm4710, %v5243, %v4693
      %v5346 = vsel %vm4710, %v5258, %v4696
      %v5347 = vsel %vm4710, %v5273, %v4699
      %v5348 = vsel %vm4710, %v5288, %v4702
      %v5349 = vsel %vm4710, %v5303, %v4705
      %v5350 = vsel %vm4710, %v5318, %v4708
      %5351 = vst.msk [vmem:[%s426] sm:$0xff] %vm1729, %v5319
      %5352 = vst.msk [vmem:[%s426 + $0x8] sm:$0xff] %vm1729, %v5320
      %5353 = vst.msk [vmem:[%s426 + $0x10] sm:$0xff] %vm1729, %v5321
      %5354 = vst.msk [vmem:[%s426 + $0x18] sm:$0xff] %vm1729, %v5322
      %5355 = vst.msk [vmem:[%s426 + $0x20] sm:$0xff] %vm1729, %v5323
      %5356 = vst.msk [vmem:[%s426 + $0x28] sm:$0xff] %vm1729, %v5324
      %5357 = vst.msk [vmem:[%s426 + $0x30] sm:$0xff] %vm1729, %v5325
      %5358 = vst.msk [vmem:[%s426 + $0x38] sm:$0xff] %vm1729, %v5326
      %5359 = vst.msk [vmem:[%s426 + $0x40] sm:$0xff] %vm1729, %v5327
      %5360 = vst.msk [vmem:[%s426 + $0x48] sm:$0xff] %vm1729, %v5328
      %5361 = vst.msk [vmem:[%s426 + $0x50] sm:$0xff] %vm1729, %v5329
      %5362 = vst.msk [vmem:[%s426 + $0x58] sm:$0xff] %vm1729, %v5330
      %5363 = vst.msk [vmem:[%s426 + $0x60] sm:$0xff] %vm1729, %v5331
      %5364 = vst.msk [vmem:[%s426 + $0x68] sm:$0xff] %vm1729, %v5332
      %5365 = vst.msk [vmem:[%s426 + $0x70] sm:$0xff] %vm1729, %v5333
      %5366 = vst.msk [vmem:[%s426 + $0x78] sm:$0xff] %vm1729, %v5334
      %5367 = vst.msk [vmem:[%s426 + $0x80] sm:$0xff] %vm1729, %v5335
      %5368 = vst.msk [vmem:[%s426 + $0x88] sm:$0xff] %vm1729, %v5336
      %5369 = vst.msk [vmem:[%s426 + $0x90] sm:$0xff] %vm1729, %v5337
      %5370 = vst.msk [vmem:[%s426 + $0x98] sm:$0xff] %vm1729, %v5338
      %5371 = vst.msk [vmem:[%s426 + $0xa0] sm:$0xff] %vm1729, %v5339
      %5372 = vst.msk [vmem:[%s426 + $0xa8] sm:$0xff] %vm1729, %v5340
      %5373 = vst.msk [vmem:[%s426 + $0xb0] sm:$0xff] %vm1729, %v5341
      %5374 = vst.msk [vmem:[%s426 + $0xb8] sm:$0xff] %vm1729, %v5342
      %5375 = vst.msk [vmem:[%s426 + $0xc0] sm:$0xff] %vm1729, %v5343
      %5376 = vst.msk [vmem:[%s426 + $0xc8] sm:$0xff] %vm1729, %v5344
      %5377 = vst.msk [vmem:[%s426 + $0xd0] sm:$0xff] %vm1729, %v5345
      %5378 = vst.msk [vmem:[%s426 + $0xd8] sm:$0xff] %vm1729, %v5346
      %5379 = vst.msk [vmem:[%s426 + $0xe0] sm:$0xff] %vm1729, %v5347
      %5380 = vst.msk [vmem:[%s426 + $0xe8] sm:$0xff] %vm1729, %v5348
      %5381 = vst.msk [vmem:[%s426 + $0xf0] sm:$0xff] %vm1729, %v5349
      %5382 = vst.msk [vmem:[%s426 + $0xf8] sm:$0xff] %vm1729, %v5350
      %p5383 = scmp.lt.s32.totalorder %s22, 1
      %s5384 = scalar_select %p5383, %s22, 1
      %s5385 = smul.addr %s5384, 32
      %s5386 = smul.addr %s5385, 8
      %s5387 = scalar_lea.vmem %s11, %s5386
      // Predicated region
      $region65: #{decoder_shallow_forward.1} parent=63 // pred_check
        %p5388 = pneg %p286
      $region66: #{decoder_shallow_forward.1} parent=63 // pred_check_branch
        %5390 = sbr.rel (%p5388) target = $region68
      $region67: #{decoder_shallow_forward.1} parent=63 // pred_region
        _
      $region68: #{decoder_shallow_forward.1} parent=63 // pred_fallthru
        _
    $region64: #{decoder_shallow_forward.1} parent=5 // pred_fallthru
      _
    %p5391 = scmp.le.s32.totalorder 2, %s17
    // Predicated region
    $region69: #{decoder_shallow_forward.1} parent=5 // pred_check
      %p5392 = pneg %p5391
    $region70: #{decoder_shallow_forward.1} parent=5 // pred_check_branch
      %5394 = sbr.rel (%p5392) target = $region72
    $region71: #{decoder_shallow_forward.1} parent=5 // pred_region
      %s5395 = ssub.s32 %s17, 2
      // Predicated region
      $region73: #{decoder_shallow_forward.1} parent=71 // pred_check
        %p5396 = pneg %p292
      $region74: #{decoder_shallow_forward.1} parent=71 // pred_check_branch
        %5398 = sbr.rel (%p5396) target = $region76
      $region75: #{decoder_shallow_forward.1} parent=71 // pred_region
        %p5399 = scmp.lt.s32.totalorder %s23, 1
        %s5400 = scalar_select %p5399, %s23, 1
        %s5401 = smul.addr %s5400, 32
        %s5402 = smul.addr %s5401, 8
        %s5403 = scalar_lea.vmem %s11, %s5402
      $region76: #{decoder_shallow_forward.1} parent=71 // pred_fallthru
        _
    $region72: #{decoder_shallow_forward.1} parent=5 // pred_fallthru
      _
  $region6: #{decoder_shallow_forward.1} parent=0 // loop_footer
    %s21 = sadd.s32 1, %s17
  $region7: #{decoder_shallow_forward.1} parent=0 // loop_footer_branch
    %16 = sbr.rel target = $region3
  $region8: #{decoder_shallow_forward.1} parent=0 // loop_exit
    _

</llo_original>
